<compile_context>
chip_gen: v6e
topology: v6e:2x2x1
jax: 0.10.0
libtpu: 0.0.40
codegen_flags: <defaults>
</compile_context>

<pallas_src>
import math

import numpy as np
import jax
import jax.numpy as jnp
from jax.experimental import pallas as pl
from jax.experimental.pallas import tpu as pltpu


# ----------------------------------------------------------------------------
# Host-side constant vectors describing the 26 feature rows (passed as inputs,
# NOT captured, so Pallas tracing is happy):
#   rows  0- 5 : cos(x0 * e * pi)        e = exp2([0..5]) = [1,2,4,8,16,32]
#   rows  6-11 : sin(x0 * e * pi) = cos(x0*e*pi - pi/2)
#   rows 12-17 : cos(x1 * e * pi)
#   rows 18-23 : sin(x1 * e * pi)
#   row  24    : x0
#   row  25    : x1
# ----------------------------------------------------------------------------
_EMB = np.exp2(np.arange(6, dtype=np.float32))                       # [1,2,4,8,16,32]
_FREQ = (np.concatenate([_EMB, _EMB, _EMB, _EMB, np.zeros(2, np.float32)])
         * np.float32(math.pi)).astype(np.float32).reshape(26, 1)
_PHASE = np.concatenate(
    [np.zeros(6, np.float32), np.full(6, -math.pi / 2, np.float32),
     np.zeros(6, np.float32), np.full(6, -math.pi / 2, np.float32),
     np.zeros(2, np.float32)]).reshape(26, 1)
_SEL_X1 = np.concatenate(
    [np.zeros(12, np.float32), np.ones(12, np.float32),
     np.array([0.0, 1.0], np.float32)]).reshape(26, 1)
_IS_TRIG = np.concatenate(
    [np.ones(24, np.float32), np.zeros(2, np.float32)]).reshape(26, 1)

_HIDDEN = [(26, 200), (200, 400), (400, 200), (200, 2)]


def diffusion_kernel(x_ref, freq_ref, phase_ref, sel_ref, istrig_ref,
                     w1_ref, b1_ref, w2_ref, b2_ref,
                     w3_ref, b3_ref, w4_ref, b4_ref, sigma_ref, out_ref):
    f32 = jnp.float32
    bf16 = jnp.bfloat16

    x = x_ref[...]                                  # (2, tn) f32
    x0 = x[0:1, :]                                  # (1, tn)
    x1 = x[1:2, :]                                  # (1, tn)

    # Build all 26 feature rows with a single cos() pass.
    coord = x0 + sel_ref[...] * (x1 - x0)           # (26, tn): x0 or x1 per row
    trig = jnp.cos(coord * freq_ref[...] + phase_ref[...])   # one EUP pass
    feat = coord + istrig_ref[...] * (trig - coord)           # rows 24/25 stay raw

    # Layer 1: (200,26)bf16 @ (26,tn)bf16 -> (200,tn) f32 accumulate.
    h = jnp.dot(w1_ref[...], feat.astype(bf16),
                preferred_element_type=f32) + b1_ref[...]
    h = jnp.maximum(h, 0.0).astype(bf16)            # fused ReLU + bf16 cast

    h = jnp.dot(w2_ref[...], h, preferred_element_type=f32) + b2_ref[...]
    h = jnp.maximum(h, 0.0).astype(bf16)            # (400, tn)

    h = jnp.dot(w3_ref[...], h, preferred_element_type=f32) + b3_ref[...]
    h = jnp.maximum(h, 0.0).astype(bf16)            # (200, tn)

    out = jnp.dot(w4_ref[...], h, preferred_element_type=f32) + b4_ref[...]

    inv_sigma = 1.0 / sigma_ref[0, 0]               # SMEM scalar
    out_ref[...] = out * inv_sigma                  # (2, tn) lane-dense store


def _pick_tile_n(N, cap=8192):
    """Tile over the batch (lane) axis.

    Small/medium batches -> a single grid step (per-step overhead dominates on
    1-TC v5e/v6e).  Large batches -> 128-aligned tiles capped at `cap` rows
    (keeps peak activations well under v7x's 64 MiB VMEM), preferring an even
    grid so the two v7x TensorCores get balanced work.
    """
    if N <= cap:
        return N
    cands = [t for t in (8192, 4096, 2048, 1024, 512, 256, 128)
             if t <= cap and N % t == 0]
    for t in cands:                       # prefer even grid (v7x megacore)
        if (N // t) % 2 == 0:
            return t
    if cands:
        return cands[0]
    return N                              # fallback: one whole-batch step


def diffusion_forward(x, sigma, params, *, tile_n=None):
    """x: (N, 2) f32, sigma: scalar-like, params: dict (bf16 W (dout,din), f32 b (dout,1))."""
    N = x.shape[0]
    if tile_n is None:
        tile_n = _pick_tile_n(N)
    assert N % tile_n == 0, "batch must be a multiple of tile_n"

    w1, b1 = params["w1"], params["b1"]
    w2, b2 = params["w2"], params["b2"]
    w3, b3 = params["w3"], params["b3"]
    w4, b4 = params["w4"], params["b4"]
    sigma_s = jnp.asarray(sigma, jnp.float32).reshape(1, 1)

    x_t = x.T                                           # (2, N) — lane-dense batch
    freq = jnp.asarray(_FREQ)
    phase = jnp.asarray(_PHASE)
    sel = jnp.asarray(_SEL_X1)
    istrig = jnp.asarray(_IS_TRIG)

    # Whole array, constant block index -> stays VMEM-resident across the grid.
    full = lambda a: pl.BlockSpec(a.shape, lambda i: (0, 0))

    flops = 2 * N * sum(din * dout for din, dout in _HIDDEN)
    bytes_accessed = (4 * N * 2 * 2                               # x + out (f32)
                      + 2 * sum(din * dout for din, dout in _HIDDEN)  # bf16 W
                      + 4 * sum(dout for _, dout in _HIDDEN))         # f32 b

    out_t = pl.pallas_call(
        diffusion_kernel,
        out_shape=jax.ShapeDtypeStruct((2, N), jnp.float32),
        grid_spec=pltpu.PrefetchScalarGridSpec(
            num_scalar_prefetch=0,
            grid=(N // tile_n,),
            in_specs=[
                pl.BlockSpec((2, tile_n), lambda i: (0, i)),     # x (transposed)
                full(freq), full(phase), full(sel), full(istrig),
                full(w1), full(b1),
                full(w2), full(b2),
                full(w3), full(b3),
                full(w4), full(b4),
                pl.BlockSpec((1, 1), lambda i: (0, 0),
                             memory_space=pltpu.MemorySpace.SMEM),  # sigma
            ],
            out_specs=pl.BlockSpec((2, tile_n), lambda i: (0, i)),
        ),
        compiler_params=pltpu.CompilerParams(
            dimension_semantics=("parallel",),
            vmem_limit_bytes=48 * 1024 * 1024),
        cost_estimate=pl.CostEstimate(
            flops=flops, transcendentals=24 * N,
            bytes_accessed=bytes_accessed),
    )(x_t, freq, phase, sel, istrig,
      w1, b1, w2, b2, w3, b3, w4, b4, sigma_s)

    return out_t.T                                      # back to (N, 2)


def make_params(key):
    """Deterministic synthetic parameters matching nn.Linear shapes.

    Weights stored as (out, in) bf16 (kernel computes W @ feat + b);
    biases stored as (out, 1) f32."""
    params = {}
    for idx, (din, dout) in enumerate(_HIDDEN, start=1):
        key, kw, kb = jax.random.split(key, 3)
        scale = 1.0 / math.sqrt(din)
        w = jax.random.uniform(kw, (dout, din), jnp.float32, -scale, scale)
        b = jax.random.uniform(kb, (dout, 1), jnp.float32, -scale, scale)
        params[f"w{idx}"] = w.astype(jnp.bfloat16)
        params[f"b{idx}"] = b
    return params


# ----------------------------------------------------------------------------
# Pure-JAX references
# ----------------------------------------------------------------------------
def _features_exact(x):
    emb = jnp.exp2(jnp.linspace(0.0, 5.0, 6))
    xc = jnp.cos(jnp.outer(x[:, 0], emb) * jnp.pi)
    xs = jnp.sin(jnp.outer(x[:, 0], emb) * jnp.pi)
    yc = jnp.cos(jnp.outer(x[:, 1], emb) * jnp.pi)
    ys = jnp.sin(jnp.outer(x[:, 1], emb) * jnp.pi)
    return jnp.concatenate([xc, xs, yc, ys, x], axis=1)


def _features_fused(x):
    """Same lane construction the kernel uses (sin == cos(t - pi/2))."""
    freq = jnp.asarray(_FREQ[:, 0])[None, :]
    phase = jnp.asarray(_PHASE[:, 0])[None, :]
    sel = jnp.asarray(_SEL_X1[:, 0])[None, :]
    ist = jnp.asarray(_IS_TRIG[:, 0])[None, :]
    x0 = x[:, 0:1]
    x1 = x[:, 1:2]
    coord = x0 + sel * (x1 - x0)
    trig = jnp.cos(coord * freq + phase)
    return coord + ist * (trig - coord)


def reference_forward_bf16(x, sigma, params):
    """Mirrors the kernel: bf16 operands, f32 accumulate, bf16 inter-layer acts."""
    def layer(h, w, b, relu):
        y = jnp.dot(h.astype(jnp.bfloat16), w.T,
                    preferred_element_type=jnp.float32) + b.reshape(1, -1)
        if relu:
            y = jnp.maximum(y, 0.0).astype(jnp.bfloat16)
        return y
    h = layer(_features_fused(x), params["w1"], params["b1"], True)
    h = layer(h, params["w2"], params["b2"], True)
    h = layer(h, params["w3"], params["b3"], True)
    out = layer(h, params["w4"], params["b4"], False)
    return out / jnp.reshape(jnp.asarray(sigma, jnp.float32), ())


def reference_forward_f32(x, sigma, params):
    """Full-f32 reference mirroring the PyTorch forward (sanity check)."""
    def layer(h, w, b, relu):
        y = h @ w.astype(jnp.float32).T + b.reshape(1, -1)
        return jnp.maximum(y, 0.0) if relu else y
    h = layer(_features_exact(x), params["w1"], params["b1"], True)
    h = layer(h, params["w2"], params["b2"], True)
    h = layer(h, params["w3"], params["b3"], True)
    out = layer(h, params["w4"], params["b4"], False)
    return out / jnp.reshape(jnp.asarray(sigma, jnp.float32), ())


if __name__ == "__main__":
    key = jax.random.PRNGKey(0)
    key, kx = jax.random.split(key)

    N = 256
    x = jax.random.normal(kx, (N, 2), jnp.float32)
    sigma = jnp.float32(0.5)
    params = make_params(key)

    out = diffusion_forward(x, sigma, params)
    out = jax.block_until_ready(out)
    assert out.shape == (N, 2)

    ref_bf = reference_forward_bf16(x, sigma, params)
    assert jnp.allclose(out, ref_bf, atol=2e-2, rtol=2e-2), \
        "mismatch vs bf16-matmul reference"

    ref_f32 = reference_forward_f32(x, sigma, params)
    assert jnp.allclose(out, ref_f32, atol=1e-1, rtol=1e-1), \
        "mismatch vs f32 reference (beyond bf16 tolerance)"

    print("KERNEL_OK")
</pallas_src>

<mosaic_0001>
module attributes {stable_mosaic.version = 11 : i64} {
  func.func @diffusion_kernel(%arg0: i32, %arg1: memref<2x256xf32, #tpu.memory_space<vmem>>, %arg2: memref<26x1xf32, #tpu.memory_space<vmem>>, %arg3: memref<26x1xf32, #tpu.memory_space<vmem>>, %arg4: memref<26x1xf32, #tpu.memory_space<vmem>>, %arg5: memref<26x1xf32, #tpu.memory_space<vmem>>, %arg6: memref<200x26xbf16, #tpu.memory_space<vmem>>, %arg7: memref<200x1xf32, #tpu.memory_space<vmem>>, %arg8: memref<400x200xbf16, #tpu.memory_space<vmem>>, %arg9: memref<400x1xf32, #tpu.memory_space<vmem>>, %arg10: memref<200x400xbf16, #tpu.memory_space<vmem>>, %arg11: memref<200x1xf32, #tpu.memory_space<vmem>>, %arg12: memref<2x200xbf16, #tpu.memory_space<vmem>>, %arg13: memref<2x1xf32, #tpu.memory_space<vmem>>, %arg14: memref<1x1xf32, #tpu.memory_space<smem>>, %arg15: memref<2x256xf32, #tpu.memory_space<vmem>>) attributes {dimension_semantics = [#tpu.dimension_semantics<parallel>], iteration_bounds = array<i64: 1>, scalar_prefetch = 0 : i64, scratch_operands = 0 : i64, tpu.core_type = #tpu.core_type<tc>, window_params = [{transform_indices = @transform_0, window_bounds = array<i64: 2, 256>}, {pipeline_mode = #tpu.pipeline_mode<synchronous>, transform_indices = @transform_1, window_bounds = array<i64: 26, 1>}, {pipeline_mode = #tpu.pipeline_mode<synchronous>, transform_indices = @transform_2, window_bounds = array<i64: 26, 1>}, {pipeline_mode = #tpu.pipeline_mode<synchronous>, transform_indices = @transform_3, window_bounds = array<i64: 26, 1>}, {pipeline_mode = #tpu.pipeline_mode<synchronous>, transform_indices = @transform_4, window_bounds = array<i64: 26, 1>}, {pipeline_mode = #tpu.pipeline_mode<synchronous>, transform_indices = @transform_5, window_bounds = array<i64: 200, 26>}, {pipeline_mode = #tpu.pipeline_mode<synchronous>, transform_indices = @transform_6, window_bounds = array<i64: 200, 1>}, {pipeline_mode = #tpu.pipeline_mode<synchronous>, transform_indices = @transform_7, window_bounds = array<i64: 400, 200>}, {pipeline_mode = #tpu.pipeline_mode<synchronous>, transform_indices = @transform_8, window_bounds = array<i64: 400, 1>}, {pipeline_mode = #tpu.pipeline_mode<synchronous>, transform_indices = @transform_9, window_bounds = array<i64: 200, 400>}, {pipeline_mode = #tpu.pipeline_mode<synchronous>, transform_indices = @transform_10, window_bounds = array<i64: 200, 1>}, {pipeline_mode = #tpu.pipeline_mode<synchronous>, transform_indices = @transform_11, window_bounds = array<i64: 2, 200>}, {pipeline_mode = #tpu.pipeline_mode<synchronous>, transform_indices = @transform_12, window_bounds = array<i64: 2, 1>}, {transform_indices = @transform_13, window_bounds = array<i64: 1, 1>}, {transform_indices = @transform_14, window_bounds = array<i64: 2, 256>}]} {
    %c0 = arith.constant 0 : index
    %c0_0 = arith.constant 0 : index
    %0 = vector.load %arg1[%c0, %c0_0] : memref<2x256xf32, #tpu.memory_space<vmem>>, vector<2x256xf32>
    %1 = vector.extract_strided_slice %0 {offsets = [0, 0], sizes = [1, 256], strides = [1, 1]} : vector<2x256xf32> to vector<1x256xf32>
    %2 = vector.extract_strided_slice %0 {offsets = [1, 0], sizes = [1, 256], strides = [1, 1]} : vector<2x256xf32> to vector<1x256xf32>
    %c0_1 = arith.constant 0 : index
    %c0_2 = arith.constant 0 : index
    %3 = vector.load %arg4[%c0_1, %c0_2] : memref<26x1xf32, #tpu.memory_space<vmem>>, vector<26x1xf32>
    %4 = arith.subf %2, %1 : vector<1x256xf32>
    %5 = vector.broadcast %3 : vector<26x1xf32> to vector<26x256xf32>
    %6 = vector.broadcast %4 : vector<1x256xf32> to vector<26x256xf32>
    %7 = arith.mulf %5, %6 : vector<26x256xf32>
    %8 = vector.broadcast %1 : vector<1x256xf32> to vector<26x256xf32>
    %9 = arith.addf %8, %7 : vector<26x256xf32>
    %c0_3 = arith.constant 0 : index
    %c0_4 = arith.constant 0 : index
    %10 = vector.load %arg2[%c0_3, %c0_4] : memref<26x1xf32, #tpu.memory_space<vmem>>, vector<26x1xf32>
    %11 = vector.broadcast %10 : vector<26x1xf32> to vector<26x256xf32>
    %12 = arith.mulf %9, %11 : vector<26x256xf32>
    %c0_5 = arith.constant 0 : index
    %c0_6 = arith.constant 0 : index
    %13 = vector.load %arg3[%c0_5, %c0_6] : memref<26x1xf32, #tpu.memory_space<vmem>>, vector<26x1xf32>
    %14 = vector.broadcast %13 : vector<26x1xf32> to vector<26x256xf32>
    %15 = arith.addf %12, %14 : vector<26x256xf32>
    %16 = math.cos %15 : vector<26x256xf32>
    %c0_7 = arith.constant 0 : index
    %c0_8 = arith.constant 0 : index
    %17 = vector.load %arg5[%c0_7, %c0_8] : memref<26x1xf32, #tpu.memory_space<vmem>>, vector<26x1xf32>
    %18 = arith.subf %16, %9 : vector<26x256xf32>
    %19 = vector.broadcast %17 : vector<26x1xf32> to vector<26x256xf32>
    %20 = arith.mulf %19, %18 : vector<26x256xf32>
    %21 = arith.addf %9, %20 : vector<26x256xf32>
    %c0_9 = arith.constant 0 : index
    %c0_10 = arith.constant 0 : index
    %22 = vector.load %arg6[%c0_9, %c0_10] : memref<200x26xbf16, #tpu.memory_space<vmem>>, vector<200x26xbf16>
    %23 = arith.truncf %21 : vector<26x256xf32> to vector<26x256xbf16>
    %cst = arith.constant dense<0.000000e+00> : vector<200x256xf32>
    %24 = tpu.matmul %22, %23, %cst {dimension_numbers = #tpu.dot_dimension_numbers<[1], [0], [0], [1], [0, 0, 1, 1], [], []>} : vector<200x26xbf16>, vector<26x256xbf16>, vector<200x256xf32> -> vector<200x256xf32>
    %c0_11 = arith.constant 0 : index
    %c0_12 = arith.constant 0 : index
    %25 = vector.load %arg7[%c0_11, %c0_12] : memref<200x1xf32, #tpu.memory_space<vmem>>, vector<200x1xf32>
    %26 = vector.broadcast %25 : vector<200x1xf32> to vector<200x256xf32>
    %27 = arith.addf %24, %26 : vector<200x256xf32>
    %cst_13 = arith.constant 0.000000e+00 : f32
    %28 = vector.broadcast %cst_13 : f32 to vector<200x256xf32>
    %29 = arith.maximumf %27, %28 : vector<200x256xf32>
    %30 = arith.truncf %29 : vector<200x256xf32> to vector<200x256xbf16>
    %c0_14 = arith.constant 0 : index
    %c0_15 = arith.constant 0 : index
    %31 = vector.load %arg8[%c0_14, %c0_15] : memref<400x200xbf16, #tpu.memory_space<vmem>>, vector<400x200xbf16>
    %cst_16 = arith.constant dense<0.000000e+00> : vector<400x256xf32>
    %32 = tpu.matmul %31, %30, %cst_16 {dimension_numbers = #tpu.dot_dimension_numbers<[1], [0], [0], [1], [0, 0, 1, 1], [], []>} : vector<400x200xbf16>, vector<200x256xbf16>, vector<400x256xf32> -> vector<400x256xf32>
    %c0_17 = arith.constant 0 : index
    %c0_18 = arith.constant 0 : index
    %33 = vector.load %arg9[%c0_17, %c0_18] : memref<400x1xf32, #tpu.memory_space<vmem>>, vector<400x1xf32>
    %34 = vector.broadcast %33 : vector<400x1xf32> to vector<400x256xf32>
    %35 = arith.addf %32, %34 : vector<400x256xf32>
    %cst_19 = arith.constant 0.000000e+00 : f32
    %36 = vector.broadcast %cst_19 : f32 to vector<400x256xf32>
    %37 = arith.maximumf %35, %36 : vector<400x256xf32>
    %38 = arith.truncf %37 : vector<400x256xf32> to vector<400x256xbf16>
    %c0_20 = arith.constant 0 : index
    %c0_21 = arith.constant 0 : index
    %39 = vector.load %arg10[%c0_20, %c0_21] : memref<200x400xbf16, #tpu.memory_space<vmem>>, vector<200x400xbf16>
    %cst_22 = arith.constant dense<0.000000e+00> : vector<200x256xf32>
    %40 = tpu.matmul %39, %38, %cst_22 {dimension_numbers = #tpu.dot_dimension_numbers<[1], [0], [0], [1], [0, 0, 1, 1], [], []>} : vector<200x400xbf16>, vector<400x256xbf16>, vector<200x256xf32> -> vector<200x256xf32>
    %c0_23 = arith.constant 0 : index
    %c0_24 = arith.constant 0 : index
    %41 = vector.load %arg11[%c0_23, %c0_24] : memref<200x1xf32, #tpu.memory_space<vmem>>, vector<200x1xf32>
    %42 = vector.broadcast %41 : vector<200x1xf32> to vector<200x256xf32>
    %43 = arith.addf %40, %42 : vector<200x256xf32>
    %cst_25 = arith.constant 0.000000e+00 : f32
    %44 = vector.broadcast %cst_25 : f32 to vector<200x256xf32>
    %45 = arith.maximumf %43, %44 : vector<200x256xf32>
    %46 = arith.truncf %45 : vector<200x256xf32> to vector<200x256xbf16>
    %c0_26 = arith.constant 0 : index
    %c0_27 = arith.constant 0 : index
    %47 = vector.load %arg12[%c0_26, %c0_27] : memref<2x200xbf16, #tpu.memory_space<vmem>>, vector<2x200xbf16>
    %cst_28 = arith.constant dense<0.000000e+00> : vector<2x256xf32>
    %48 = tpu.matmul %47, %46, %cst_28 {dimension_numbers = #tpu.dot_dimension_numbers<[1], [0], [0], [1], [0, 0, 1, 1], [], []>} : vector<2x200xbf16>, vector<200x256xbf16>, vector<2x256xf32> -> vector<2x256xf32>
    %c0_29 = arith.constant 0 : index
    %c0_30 = arith.constant 0 : index
    %49 = vector.load %arg13[%c0_29, %c0_30] : memref<2x1xf32, #tpu.memory_space<vmem>>, vector<2x1xf32>
    %50 = vector.broadcast %49 : vector<2x1xf32> to vector<2x256xf32>
    %51 = arith.addf %48, %50 : vector<2x256xf32>
    %c0_31 = arith.constant 0 : index
    %c0_32 = arith.constant 0 : index
    %52 = memref.load %arg14[%c0_31, %c0_32] : memref<1x1xf32, #tpu.memory_space<smem>>
    %cst_33 = arith.constant 1.000000e+00 : f32
    %53 = arith.divf %cst_33, %52 : f32
    %54 = vector.broadcast %53 : f32 to vector<2x256xf32>
    %55 = arith.mulf %51, %54 : vector<2x256xf32>
    %c0_34 = arith.constant 0 : index
    %c0_35 = arith.constant 0 : index
    %56 = vector.load %arg15[%c0_34, %c0_35] : memref<2x256xf32, #tpu.memory_space<vmem>>, vector<2x256xf32>
    tpu.vector_store %arg15[%c0_34, %c0_35], %55 {strides = array<i32>} : memref<2x256xf32, #tpu.memory_space<vmem>>, vector<2x256xf32>,
    return
  }
  func.func @transform_0(%arg0: i32) -> (i32, i32) {
    %c0_i32 = arith.constant 0 : i32
    %c0_i32_0 = arith.constant 0 : i32
    return %c0_i32, %arg0 : i32, i32
  }
  func.func @transform_1(%arg0: i32) -> (i32, i32) {
    %c0_i32 = arith.constant 0 : i32
    %c0_i32_0 = arith.constant 0 : i32
    %c0_i32_1 = arith.constant 0 : i32
    return %c0_i32, %c0_i32_0 : i32, i32
  }
  func.func @transform_2(%arg0: i32) -> (i32, i32) {
    %c0_i32 = arith.constant 0 : i32
    %c0_i32_0 = arith.constant 0 : i32
    %c0_i32_1 = arith.constant 0 : i32
    return %c0_i32, %c0_i32_0 : i32, i32
  }
  func.func @transform_3(%arg0: i32) -> (i32, i32) {
    %c0_i32 = arith.constant 0 : i32
    %c0_i32_0 = arith.constant 0 : i32
    %c0_i32_1 = arith.constant 0 : i32
    return %c0_i32, %c0_i32_0 : i32, i32
  }
  func.func @transform_4(%arg0: i32) -> (i32, i32) {
    %c0_i32 = arith.constant 0 : i32
    %c0_i32_0 = arith.constant 0 : i32
    %c0_i32_1 = arith.constant 0 : i32
    return %c0_i32, %c0_i32_0 : i32, i32
  }
  func.func @transform_5(%arg0: i32) -> (i32, i32) {
    %c0_i32 = arith.constant 0 : i32
    %c0_i32_0 = arith.constant 0 : i32
    %c0_i32_1 = arith.constant 0 : i32
    return %c0_i32, %c0_i32_0 : i32, i32
  }
  func.func @transform_6(%arg0: i32) -> (i32, i32) {
    %c0_i32 = arith.constant 0 : i32
    %c0_i32_0 = arith.constant 0 : i32
    %c0_i32_1 = arith.constant 0 : i32
    return %c0_i32, %c0_i32_0 : i32, i32
  }
  func.func @transform_7(%arg0: i32) -> (i32, i32) {
    %c0_i32 = arith.constant 0 : i32
    %c0_i32_0 = arith.constant 0 : i32
    %c0_i32_1 = arith.constant 0 : i32
    return %c0_i32, %c0_i32_0 : i32, i32
  }
  func.func @transform_8(%arg0: i32) -> (i32, i32) {
    %c0_i32 = arith.constant 0 : i32
    %c0_i32_0 = arith.constant 0 : i32
    %c0_i32_1 = arith.constant 0 : i32
    return %c0_i32, %c0_i32_0 : i32, i32
  }
  func.func @transform_9(%arg0: i32) -> (i32, i32) {
    %c0_i32 = arith.constant 0 : i32
    %c0_i32_0 = arith.constant 0 : i32
    %c0_i32_1 = arith.constant 0 : i32
    return %c0_i32, %c0_i32_0 : i32, i32
  }
  func.func @transform_10(%arg0: i32) -> (i32, i32) {
    %c0_i32 = arith.constant 0 : i32
    %c0_i32_0 = arith.constant 0 : i32
    %c0_i32_1 = arith.constant 0 : i32
    return %c0_i32, %c0_i32_0 : i32, i32
  }
  func.func @transform_11(%arg0: i32) -> (i32, i32) {
    %c0_i32 = arith.constant 0 : i32
    %c0_i32_0 = arith.constant 0 : i32
    %c0_i32_1 = arith.constant 0 : i32
    return %c0_i32, %c0_i32_0 : i32, i32
  }
  func.func @transform_12(%arg0: i32) -> (i32, i32) {
    %c0_i32 = arith.constant 0 : i32
    %c0_i32_0 = arith.constant 0 : i32
    %c0_i32_1 = arith.constant 0 : i32
    return %c0_i32, %c0_i32_0 : i32, i32
  }
  func.func @transform_13(%arg0: i32) -> (i32, i32) {
    %c0_i32 = arith.constant 0 : i32
    %c0_i32_0 = arith.constant 0 : i32
    %c0_i32_1 = arith.constant 0 : i32
    return %c0_i32, %c0_i32_0 : i32, i32
  }
  func.func @transform_14(%arg0: i32) -> (i32, i32) {
    %c0_i32 = arith.constant 0 : i32
    %c0_i32_0 = arith.constant 0 : i32
    return %c0_i32, %arg0 : i32, i32
  }
}

</mosaic_0001>

<llo_original>
// kernel: tpu_custom_call.1
$region0: #{tpu_custom_call.1}
  #allocation0 [shape = 'u32[]', space=smem, size = 0x4, offset = 0x4, fixed_abs, tag = 'smem constant byte address 0x4 - core index']
  #allocation1 [shape = 'u32[144,128]{1,0:T(1,128)}', space=vmem, size = 0x12000, scoped, tag = 'internal scratch']
  #allocation2 [shape = 'f32[1,1]{1,0:T(1,128)S(6)}', space=smem, size = 0x200, scoped, tag = 'scoped memory for tpu_custom_call.1']
  %s0 = inlined_call_operand.vmem [shape: f32[2,256], index: 0, kind: input, shape index: {}]
  %s1 = inlined_call_operand.vmem [shape: f32[26,1], index: 1, kind: input, shape index: {}]
  %s2 = inlined_call_operand.vmem [shape: f32[26,1], index: 2, kind: input, shape index: {}]
  %s3 = inlined_call_operand.vmem [shape: f32[26,1], index: 3, kind: input, shape index: {}]
  %s4 = inlined_call_operand.vmem [shape: f32[26,1], index: 4, kind: input, shape index: {}]
  %s5 = inlined_call_operand.vmem [shape: bf16[200,26], index: 5, kind: input, shape index: {}]
  %s6 = inlined_call_operand.vmem [shape: f32[200,1], index: 6, kind: input, shape index: {}]
  %s7 = inlined_call_operand.vmem [shape: bf16[400,200], index: 7, kind: input, shape index: {}]
  %s8 = inlined_call_operand.vmem [shape: f32[400,1], index: 8, kind: input, shape index: {}]
  %s9 = inlined_call_operand.vmem [shape: bf16[200,400], index: 9, kind: input, shape index: {}]
  %s10 = inlined_call_operand.vmem [shape: f32[200,1], index: 10, kind: input, shape index: {}]
  %s11 = inlined_call_operand.vmem [shape: bf16[2,200], index: 11, kind: input, shape index: {}]
  %s12 = inlined_call_operand.vmem [shape: f32[2,1], index: 12, kind: input, shape index: {}]
  %s13 = inlined_call_operand.<no memory space> [shape: f32[1,1], index: 13, kind: input, shape index: {}]
  %s14 = inlined_call_operand.hbm [shape: f32[2,256], index: 14, kind: output, shape index: {}]
  %s15 = sld [smem:[#allocation0]]
  $region66: #{tpu_custom_call.1} parent=0
    _
  %s17 = ssub.s32 1, %s15
  %s18 = scalar_select 0, %s17, %s15
  %19 = sst [smem:[#allocation2]] %s13
  $region1: #{tpu_custom_call.1} parent=0
    #allocation3 [shape = 'u8[2048]{0}', space=vmem, size = 0x800, scoped, tag = 'output window, operand 0, single buffered']
    #allocation4 [shape = 's32[1]{0}', space=sflag, size = 0x4, scoped, tag = 'scoped memory for tpu_custom_call.1']
    %20 = vsyncpa [#allocation4], 0
    // Predicated region
    $region2: #{tpu_custom_call.1} parent=1 // pred_check
      _
    $region3: #{tpu_custom_call.1} parent=1 // pred_check_branch
      %22 = sbr.rel (0) target = $region5
    $region4: #{tpu_custom_call.1} parent=1 // pred_region
      _
    $region5: #{tpu_custom_call.1} parent=1 // pred_fallthru
      _
    // Predicated region
    $region6: #{tpu_custom_call.1} parent=1 // pred_check
      _
    $region7: #{tpu_custom_call.1} parent=1 // pred_check_branch
      %24 = sbr.rel (0) target = $region9
    $region8: #{tpu_custom_call.1} parent=1 // pred_region
      _
    $region9: #{tpu_custom_call.1} parent=1 // pred_fallthru
      _
    // Predicated region
    $region10: #{tpu_custom_call.1} parent=1 // pred_check
      _
    $region11: #{tpu_custom_call.1} parent=1 // pred_check_branch
      %26 = sbr.rel (0) target = $region13
    $region12: #{tpu_custom_call.1} parent=1 // pred_region
      _
    $region13: #{tpu_custom_call.1} parent=1 // pred_fallthru
      _
    // Predicated region
    $region14: #{tpu_custom_call.1} parent=1 // pred_check
      _
    $region15: #{tpu_custom_call.1} parent=1 // pred_check_branch
      %28 = sbr.rel (0) target = $region17
    $region16: #{tpu_custom_call.1} parent=1 // pred_region
      _
    $region17: #{tpu_custom_call.1} parent=1 // pred_fallthru
      _
    // Predicated region
    $region18: #{tpu_custom_call.1} parent=1 // pred_check
      _
    $region19: #{tpu_custom_call.1} parent=1 // pred_check_branch
      %30 = sbr.rel (0) target = $region21
    $region20: #{tpu_custom_call.1} parent=1 // pred_region
      _
    $region21: #{tpu_custom_call.1} parent=1 // pred_fallthru
      _
    // Predicated region
    $region22: #{tpu_custom_call.1} parent=1 // pred_check
      _
    $region23: #{tpu_custom_call.1} parent=1 // pred_check_branch
      %32 = sbr.rel (0) target = $region25
    $region24: #{tpu_custom_call.1} parent=1 // pred_region
      _
    $region25: #{tpu_custom_call.1} parent=1 // pred_fallthru
      _
    // Predicated region
    $region26: #{tpu_custom_call.1} parent=1 // pred_check
      _
    $region27: #{tpu_custom_call.1} parent=1 // pred_check_branch
      %34 = sbr.rel (0) target = $region29
    $region28: #{tpu_custom_call.1} parent=1 // pred_region
      _
    $region29: #{tpu_custom_call.1} parent=1 // pred_fallthru
      _
    // Predicated region
    $region30: #{tpu_custom_call.1} parent=1 // pred_check
      _
    $region31: #{tpu_custom_call.1} parent=1 // pred_check_branch
      %36 = sbr.rel (0) target = $region33
    $region32: #{tpu_custom_call.1} parent=1 // pred_region
      _
    $region33: #{tpu_custom_call.1} parent=1 // pred_fallthru
      _
    // Predicated region
    $region34: #{tpu_custom_call.1} parent=1 // pred_check
      _
    $region35: #{tpu_custom_call.1} parent=1 // pred_check_branch
      %38 = sbr.rel (0) target = $region37
    $region36: #{tpu_custom_call.1} parent=1 // pred_region
      _
    $region37: #{tpu_custom_call.1} parent=1 // pred_fallthru
      _
    // Predicated region
    $region38: #{tpu_custom_call.1} parent=1 // pred_check
      _
    $region39: #{tpu_custom_call.1} parent=1 // pred_check_branch
      %40 = sbr.rel (0) target = $region41
    $region40: #{tpu_custom_call.1} parent=1 // pred_region
      _
    $region41: #{tpu_custom_call.1} parent=1 // pred_fallthru
      _
    // Predicated region
    $region42: #{tpu_custom_call.1} parent=1 // pred_check
      _
    $region43: #{tpu_custom_call.1} parent=1 // pred_check_branch
      %42 = sbr.rel (0) target = $region45
    $region44: #{tpu_custom_call.1} parent=1 // pred_region
      _
    $region45: #{tpu_custom_call.1} parent=1 // pred_fallthru
      _
    // Predicated region
    $region46: #{tpu_custom_call.1} parent=1 // pred_check
      _
    $region47: #{tpu_custom_call.1} parent=1 // pred_check_branch
      %44 = sbr.rel (0) target = $region49
    $region48: #{tpu_custom_call.1} parent=1 // pred_region
      _
    $region49: #{tpu_custom_call.1} parent=1 // pred_fallthru
      _
    // Predicated region
    $region50: #{tpu_custom_call.1} parent=1 // pred_check
      _
    $region51: #{tpu_custom_call.1} parent=1 // pred_check_branch
      %46 = sbr.rel (0) target = $region53
    $region52: #{tpu_custom_call.1} parent=1 // pred_region
      _
    $region53: #{tpu_custom_call.1} parent=1 // pred_fallthru
      _
    // Predicated region
    $region54: #{tpu_custom_call.1} parent=1 // pred_check
      _
    $region55: #{tpu_custom_call.1} parent=1 // pred_check_branch
      %48 = sbr.rel (0) target = $region57
    $region56: #{tpu_custom_call.1} parent=1 // pred_region
      _
    $region57: #{tpu_custom_call.1} parent=1 // pred_fallthru
      _
    %v50 = vld [vmem:[%s0] sm:$0xf]
    %v51 = vld [vmem:[%s3] sm:$0xff]
    %v52 = vld [vmem:[%s3 + $0x8] sm:$0xff]
    %v53 = vld [vmem:[%s3 + $0x10] sm:$0xff]
    %v54 = vld [vmem:[%s3 + $0x18] sm:$0x3]
    %v56 = vrot.slane %v50, 7
    %v58 = vsub.f32 %v50, %v56
    %60 = vset.pattern.permute.xlu0 0
    %61 = vperm.xlu0 %60, %v51
    %v62 = vpop.permute.xlu0 %61
    %65 = vset.pattern.permute.xlu0 0
    %66 = vperm.xlu0 %65, %v52
    %v67 = vpop.permute.xlu0 %66
    %70 = vset.pattern.permute.xlu0 0
    %71 = vperm.xlu0 %70, %v53
    %v72 = vpop.permute.xlu0 %71
    %75 = vset.pattern.permute.xlu0 0
    %76 = vperm.xlu0 %75, %v54
    %v77 = vpop.permute.xlu0 %76
    %v80 = vlaneseq
    %v81 = vshrl.u32 %v80, 7
    %v82 = vsub.s32 1, %v81
    %v83 = vrot.slane %v58, %v82
    %v84 = vlaneseq
    %v85 = vshrl.u32 %v84, 7
    %v86 = vsub.s32 3, %v85
    %v87 = vrot.slane %v58, %v86
    %v90 = vlaneseq
    %v91 = vshrl.u32 %v90, 7
    %v92 = vsub.s32 1, %v91
    %v93 = vrot.slane %v83, %v92
    %v94 = vlaneseq
    %v95 = vshrl.u32 %v94, 7
    %v96 = vsub.s32 1, %v95
    %v97 = vrot.slane %v87, %v96
    %v98 = vmul.f32 %v62, %v93
    %v99 = vmul.f32 %v62, %v97
    %v100 = vmul.f32 %v67, %v93
    %v101 = vmul.f32 %v67, %v97
    %v102 = vmul.f32 %v72, %v93
    %v103 = vmul.f32 %v72, %v97
    %v104 = vmul.f32 %v77, %v93
    %v105 = vmul.f32 %v77, %v97
    %v106 = vlaneseq
    %v107 = vshrl.u32 %v106, 7
    %v108 = vsub.s32 0, %v107
    %v109 = vrot.slane %v50, %v108
    %v110 = vlaneseq
    %v111 = vshrl.u32 %v110, 7
    %v112 = vsub.s32 2, %v111
    %v113 = vrot.slane %v50, %v112
    %v116 = vlaneseq
    %v117 = vshrl.u32 %v116, 7
    %v118 = vsub.s32 0, %v117
    %v119 = vrot.slane %v109, %v118
    %v120 = vlaneseq
    %v121 = vshrl.u32 %v120, 7
    %v122 = vsub.s32 0, %v121
    %v123 = vrot.slane %v113, %v122
    %v124 = vadd.f32 %v119, %v98
    %v125 = vadd.f32 %v123, %v99
    %v126 = vadd.f32 %v119, %v100
    %v127 = vadd.f32 %v123, %v101
    %v128 = vadd.f32 %v119, %v102
    %v129 = vadd.f32 %v123, %v103
    %v130 = vadd.f32 %v119, %v104
    %v131 = vadd.f32 %v123, %v105
    %v132 = vld [vmem:[%s1] sm:$0xff]
    %v133 = vld [vmem:[%s1 + $0x8] sm:$0xff]
    %v134 = vld [vmem:[%s1 + $0x10] sm:$0xff]
    %v135 = vld [vmem:[%s1 + $0x18] sm:$0x3]
    %137 = vset.pattern.permute.xlu0 0
    %138 = vperm.xlu0 %137, %v132
    %v139 = vpop.permute.xlu0 %138
    %142 = vset.pattern.permute.xlu0 0
    %143 = vperm.xlu0 %142, %v133
    %v144 = vpop.permute.xlu0 %143
    %147 = vset.pattern.permute.xlu0 0
    %148 = vperm.xlu0 %147, %v134
    %v149 = vpop.permute.xlu0 %148
    %152 = vset.pattern.permute.xlu0 0
    %153 = vperm.xlu0 %152, %v135
    %v154 = vpop.permute.xlu0 %153
    %v156 = vmul.f32 %v124, %v139
    %v157 = vmul.f32 %v125, %v139
    %v158 = vmul.f32 %v126, %v144
    %v159 = vmul.f32 %v127, %v144
    %v160 = vmul.f32 %v128, %v149
    %v161 = vmul.f32 %v129, %v149
    %v162 = vmul.f32 %v130, %v154
    %v163 = vmul.f32 %v131, %v154
    %v164 = vld [vmem:[%s2] sm:$0xff]
    %v165 = vld [vmem:[%s2 + $0x8] sm:$0xff]
    %v166 = vld [vmem:[%s2 + $0x10] sm:$0xff]
    %v167 = vld [vmem:[%s2 + $0x18] sm:$0x3]
    %169 = vset.pattern.permute.xlu0 0
    %170 = vperm.xlu0 %169, %v164
    %v171 = vpop.permute.xlu0 %170
    %174 = vset.pattern.permute.xlu0 0
    %175 = vperm.xlu0 %174, %v165
    %v176 = vpop.permute.xlu0 %175
    %179 = vset.pattern.permute.xlu0 0
    %180 = vperm.xlu0 %179, %v166
    %v181 = vpop.permute.xlu0 %180
    %184 = vset.pattern.permute.xlu0 0
    %185 = vperm.xlu0 %184, %v167
    %v186 = vpop.permute.xlu0 %185
    %v188 = vadd.f32 %v156, %v171
    %v189 = vadd.f32 %v157, %v171
    %v190 = vadd.f32 %v158, %v176
    %v191 = vadd.f32 %v159, %v176
    %v192 = vadd.f32 %v160, %v181
    %v193 = vadd.f32 %v161, %v181
    %v194 = vadd.f32 %v162, %v186
    %v195 = vadd.f32 %v163, %v186
    %v196 = vand.u32 2147483647, %v188
    %vm197 = vcmp.le.f32.partialorder %v196, 0.7853982
    %vm198 = vcmp.lt.s32.totalorder %v188, 0
    %v199 = vand.u32 %v188, 2139095040
    %v200 = vshrl.u32 %v199, 23
    %v201 = vsub.s32 %v200, 127
    %v202 = vand.u32 2147483647, %v188
    %v203 = vand.u32 %v202, 8388607
    %v204 = vor.u32 %v203, 8388608
    %v205 = vsub.s32 0, %v204
    %v206 = vadd.s32 %v201, 1
    %vm207 = vcmp.gt.s32.totalorder %v206, 0
    %v208 = vsel %vm207, %v206, 0
    %v209 = vshrl.u32 %v208, 5
    %v210 = vand.u32 %v208, 31
    %v211 = vsub.s32 32, %v210
    %v212 = vshrl.u32 683565275, %v211
    %v213 = vshll.u32 683565275, %v210
    %v214 = vshrl.u32 2475754826, %v211
    %v215 = vor.u32 %v213, %v214
    %v216 = vshll.u32 2475754826, %v210
    %v217 = vshrl.u32 2131351028, %v211
    %v218 = vor.u32 %v216, %v217
    %v219 = vshll.u32 2131351028, %v210
    %v220 = vshrl.u32 2102212464, %v211
    %v221 = vor.u32 %v219, %v220
    %v222 = vshll.u32 2102212464, %v210
    %v223 = vshrl.u32 920167782, %v211
    %v224 = vor.u32 %v222, %v223
    %v225 = vshll.u32 920167782, %v210
    %v226 = vshrl.u32 1326507024, %v211
    %v227 = vor.u32 %v225, %v226
    %vm228 = vcmp.lt.s32.totalorder %v209, 1
    %vm229 = vcmp.lt.s32.totalorder %v209, 2
    %vm230 = vcmp.lt.s32.totalorder %v209, 3
    %vm231 = vcmp.lt.s32.totalorder %v209, 4
    %v232 = vsel %vm228, %v212, %v215
    %v233 = vsel %vm231, %v221, 2102212464
    %v234 = vsel %vm230, %v218, %v233
    %v235 = vsel %vm229, %v232, %v234
    %v236 = vsel %vm228, %v215, %v218
    %v237 = vsel %vm231, %v224, 920167782
    %v238 = vsel %vm230, %v221, %v237
    %v239 = vsel %vm229, %v236, %v238
    %v240 = vsel %vm228, %v218, %v221
    %v241 = vsel %vm231, %v227, 1326507024
    %v242 = vsel %vm230, %v224, %v241
    %v243 = vsel %vm229, %v240, %v242
    %v244 = vshll.u32 %v204, 8
    %v245 = vmul.u32.u64.compose %v244, %v243
    %v246 = vextract.low.u32 %v245
    %v247 = vextract.high.u32 %v245
    %v248 = vmul.u32.u64.compose %v244, %v239
    %v249 = vextract.low.u32 %v248
    %v250 = vextract.high.u32 %v248
    %v251 = vmul.u32 %v244, %v235
    %v252 = vadd.s32 %v247, %v249
    %vm253 = vc.u32 %v247, %v249
    %v254 = vadd.s32 %v250, 1
    %v255 = vsel %vm253, %v254, %v250
    %v256 = vadd.s32 %v251, %v255
    %v257 = vadd.s32 %v256, 536870912
    %v258 = vshrl.u32 %v257, 30
    %v259 = vshll.u32 %v258, 30
    %v260 = vsub.s32 %v256, %v259
    %vm261 = vcmp.lt.s32.totalorder %v260, 0
    %v262 = vsub.s32 0, %v260
    %v263 = vsel %vm261, %v262, %v260
    %v264 = vclz %v263
    %v265 = vsub.s32 %v264, 2
    %vm266 = vcmp.gt.s32.totalorder 0, %v265
    %v267 = vsel %vm266, 0, %v265
    %v268 = vsub.s32 32, %v267
    %v269 = vshll.u32 %v260, %v267
    %v270 = vshrl.u32 %v252, %v268
    %v271 = vor.u32 %v269, %v270
    %v272 = vsub.s32 4294967266, %v267
    %v273 = vadd.s32 %v272, 127
    %v274 = vshll.u32 %v273, 23
    %v275 = vor.u32 4788187, %v274
    %v276 = vand.u32 2147483647, %v275
    %v278 = vcvt.s32.f32 %v271
    %v279 = vmul.f32 %v278, %v276
    %v280 = vxor.u32 %v279, 2147483648
    %v281 = vsel %vm198, %v280, %v279
    %v282 = vsub.s32 4, %v258
    %v283 = vsel %vm198, %v282, %v258
    %v284 = vsel %vm197, %v188, %v281
    %v285 = vsel %vm197, 0, %v283
    %v286 = vcosq.f32.pop %v284
    %v287 = vsinq.f32.pop %v284
    %vm288 = vweird.f32 %v188
    %v289 = vand.u32 %v285, 3
    %vm290 = vcmp.lt.s32.totalorder %v289, 2
    %vm291 = vcmp.eq.s32.totalorder %v289, 0
    %v292 = vxor.u32 %v287, 2147483648
    %v293 = vsel %vm291, %v286, %v292
    %vm294 = vcmp.eq.s32.totalorder %v289, 2
    %v295 = vxor.u32 %v286, 2147483648
    %v296 = vsel %vm294, %v295, %v287
    %v297 = vsel %vm290, %v293, %v296
    %v298 = vsel %vm288, nan, %v297
    %v299 = vand.u32 2147483647, %v189
    %vm300 = vcmp.le.f32.partialorder %v299, 0.7853982
    %vm301 = vcmp.lt.s32.totalorder %v189, 0
    %v302 = vand.u32 %v189, 2139095040
    %v303 = vshrl.u32 %v302, 23
    %v304 = vsub.s32 %v303, 127
    %v305 = vand.u32 2147483647, %v189
    %v306 = vand.u32 %v305, 8388607
    %v307 = vor.u32 %v306, 8388608
    %v308 = vsub.s32 0, %v307
    %v309 = vadd.s32 %v304, 1
    %vm310 = vcmp.gt.s32.totalorder %v309, 0
    %v311 = vsel %vm310, %v309, 0
    %v312 = vshrl.u32 %v311, 5
    %v313 = vand.u32 %v311, 31
    %v314 = vsub.s32 32, %v313
    %v315 = vshrl.u32 683565275, %v314
    %v316 = vshll.u32 683565275, %v313
    %v317 = vshrl.u32 2475754826, %v314
    %v318 = vor.u32 %v316, %v317
    %v319 = vshll.u32 2475754826, %v313
    %v320 = vshrl.u32 2131351028, %v314
    %v321 = vor.u32 %v319, %v320
    %v322 = vshll.u32 2131351028, %v313
    %v323 = vshrl.u32 2102212464, %v314
    %v324 = vor.u32 %v322, %v323
    %v325 = vshll.u32 2102212464, %v313
    %v326 = vshrl.u32 920167782, %v314
    %v327 = vor.u32 %v325, %v326
    %v328 = vshll.u32 920167782, %v313
    %v329 = vshrl.u32 1326507024, %v314
    %v330 = vor.u32 %v328, %v329
    %vm331 = vcmp.lt.s32.totalorder %v312, 1
    %vm332 = vcmp.lt.s32.totalorder %v312, 2
    %vm333 = vcmp.lt.s32.totalorder %v312, 3
    %vm334 = vcmp.lt.s32.totalorder %v312, 4
    %v335 = vsel %vm331, %v315, %v318
    %v336 = vsel %vm334, %v324, 2102212464
    %v337 = vsel %vm333, %v321, %v336
    %v338 = vsel %vm332, %v335, %v337
    %v339 = vsel %vm331, %v318, %v321
    %v340 = vsel %vm334, %v327, 920167782
    %v341 = vsel %vm333, %v324, %v340
    %v342 = vsel %vm332, %v339, %v341
    %v343 = vsel %vm331, %v321, %v324
    %v344 = vsel %vm334, %v330, 1326507024
    %v345 = vsel %vm333, %v327, %v344
    %v346 = vsel %vm332, %v343, %v345
    %v347 = vshll.u32 %v307, 8
    %v348 = vmul.u32.u64.compose %v347, %v346
    %v349 = vextract.low.u32 %v348
    %v350 = vextract.high.u32 %v348
    %v351 = vmul.u32.u64.compose %v347, %v342
    %v352 = vextract.low.u32 %v351
    %v353 = vextract.high.u32 %v351
    %v354 = vmul.u32 %v347, %v338
    %v355 = vadd.s32 %v350, %v352
    %vm356 = vc.u32 %v350, %v352
    %v357 = vadd.s32 %v353, 1
    %v358 = vsel %vm356, %v357, %v353
    %v359 = vadd.s32 %v354, %v358
    %v360 = vadd.s32 %v359, 536870912
    %v361 = vshrl.u32 %v360, 30
    %v362 = vshll.u32 %v361, 30
    %v363 = vsub.s32 %v359, %v362
    %vm364 = vcmp.lt.s32.totalorder %v363, 0
    %v365 = vsub.s32 0, %v363
    %v366 = vsel %vm364, %v365, %v363
    %v367 = vclz %v366
    %v368 = vsub.s32 %v367, 2
    %vm369 = vcmp.gt.s32.totalorder 0, %v368
    %v370 = vsel %vm369, 0, %v368
    %v371 = vsub.s32 32, %v370
    %v372 = vshll.u32 %v363, %v370
    %v373 = vshrl.u32 %v355, %v371
    %v374 = vor.u32 %v372, %v373
    %v375 = vsub.s32 4294967266, %v370
    %v376 = vadd.s32 %v375, 127
    %v377 = vshll.u32 %v376, 23
    %v378 = vor.u32 4788187, %v377
    %v379 = vand.u32 2147483647, %v378
    %v381 = vcvt.s32.f32 %v374
    %v382 = vmul.f32 %v381, %v379
    %v383 = vxor.u32 %v382, 2147483648
    %v384 = vsel %vm301, %v383, %v382
    %v385 = vsub.s32 4, %v361
    %v386 = vsel %vm301, %v385, %v361
    %v387 = vsel %vm300, %v189, %v384
    %v388 = vsel %vm300, 0, %v386
    %v389 = vcosq.f32.pop %v387
    %v390 = vsinq.f32.pop %v387
    %vm391 = vweird.f32 %v189
    %v392 = vand.u32 %v388, 3
    %vm393 = vcmp.lt.s32.totalorder %v392, 2
    %vm394 = vcmp.eq.s32.totalorder %v392, 0
    %v395 = vxor.u32 %v390, 2147483648
    %v396 = vsel %vm394, %v389, %v395
    %vm397 = vcmp.eq.s32.totalorder %v392, 2
    %v398 = vxor.u32 %v389, 2147483648
    %v399 = vsel %vm397, %v398, %v390
    %v400 = vsel %vm393, %v396, %v399
    %v401 = vsel %vm391, nan, %v400
    %v402 = vand.u32 2147483647, %v190
    %vm403 = vcmp.le.f32.partialorder %v402, 0.7853982
    %vm404 = vcmp.lt.s32.totalorder %v190, 0
    %v405 = vand.u32 %v190, 2139095040
    %v406 = vshrl.u32 %v405, 23
    %v407 = vsub.s32 %v406, 127
    %v408 = vand.u32 2147483647, %v190
    %v409 = vand.u32 %v408, 8388607
    %v410 = vor.u32 %v409, 8388608
    %v411 = vsub.s32 0, %v410
    %v412 = vadd.s32 %v407, 1
    %vm413 = vcmp.gt.s32.totalorder %v412, 0
    %v414 = vsel %vm413, %v412, 0
    %v415 = vshrl.u32 %v414, 5
    %v416 = vand.u32 %v414, 31
    %v417 = vsub.s32 32, %v416
    %v418 = vshrl.u32 683565275, %v417
    %v419 = vshll.u32 683565275, %v416
    %v420 = vshrl.u32 2475754826, %v417
    %v421 = vor.u32 %v419, %v420
    %v422 = vshll.u32 2475754826, %v416
    %v423 = vshrl.u32 2131351028, %v417
    %v424 = vor.u32 %v422, %v423
    %v425 = vshll.u32 2131351028, %v416
    %v426 = vshrl.u32 2102212464, %v417
    %v427 = vor.u32 %v425, %v426
    %v428 = vshll.u32 2102212464, %v416
    %v429 = vshrl.u32 920167782, %v417
    %v430 = vor.u32 %v428, %v429
    %v431 = vshll.u32 920167782, %v416
    %v432 = vshrl.u32 1326507024, %v417
    %v433 = vor.u32 %v431, %v432
    %vm434 = vcmp.lt.s32.totalorder %v415, 1
    %vm435 = vcmp.lt.s32.totalorder %v415, 2
    %vm436 = vcmp.lt.s32.totalorder %v415, 3
    %vm437 = vcmp.lt.s32.totalorder %v415, 4
    %v438 = vsel %vm434, %v418, %v421
    %v439 = vsel %vm437, %v427, 2102212464
    %v440 = vsel %vm436, %v424, %v439
    %v441 = vsel %vm435, %v438, %v440
    %v442 = vsel %vm434, %v421, %v424
    %v443 = vsel %vm437, %v430, 920167782
    %v444 = vsel %vm436, %v427, %v443
    %v445 = vsel %vm435, %v442, %v444
    %v446 = vsel %vm434, %v424, %v427
    %v447 = vsel %vm437, %v433, 1326507024
    %v448 = vsel %vm436, %v430, %v447
    %v449 = vsel %vm435, %v446, %v448
    %v450 = vshll.u32 %v410, 8
    %v451 = vmul.u32.u64.compose %v450, %v449
    %v452 = vextract.low.u32 %v451
    %v453 = vextract.high.u32 %v451
    %v454 = vmul.u32.u64.compose %v450, %v445
    %v455 = vextract.low.u32 %v454
    %v456 = vextract.high.u32 %v454
    %v457 = vmul.u32 %v450, %v441
    %v458 = vadd.s32 %v453, %v455
    %vm459 = vc.u32 %v453, %v455
    %v460 = vadd.s32 %v456, 1
    %v461 = vsel %vm459, %v460, %v456
    %v462 = vadd.s32 %v457, %v461
    %v463 = vadd.s32 %v462, 536870912
    %v464 = vshrl.u32 %v463, 30
    %v465 = vshll.u32 %v464, 30
    %v466 = vsub.s32 %v462, %v465
    %vm467 = vcmp.lt.s32.totalorder %v466, 0
    %v468 = vsub.s32 0, %v466
    %v469 = vsel %vm467, %v468, %v466
    %v470 = vclz %v469
    %v471 = vsub.s32 %v470, 2
    %vm472 = vcmp.gt.s32.totalorder 0, %v471
    %v473 = vsel %vm472, 0, %v471
    %v474 = vsub.s32 32, %v473
    %v475 = vshll.u32 %v466, %v473
    %v476 = vshrl.u32 %v458, %v474
    %v477 = vor.u32 %v475, %v476
    %v478 = vsub.s32 4294967266, %v473
    %v479 = vadd.s32 %v478, 127
    %v480 = vshll.u32 %v479, 23
    %v481 = vor.u32 4788187, %v480
    %v482 = vand.u32 2147483647, %v481
    %v484 = vcvt.s32.f32 %v477
    %v485 = vmul.f32 %v484, %v482
    %v486 = vxor.u32 %v485, 2147483648
    %v487 = vsel %vm404, %v486, %v485
    %v488 = vsub.s32 4, %v464
    %v489 = vsel %vm404, %v488, %v464
    %v490 = vsel %vm403, %v190, %v487
    %v491 = vsel %vm403, 0, %v489
    %v492 = vcosq.f32.pop %v490
    %v493 = vsinq.f32.pop %v490
    %vm494 = vweird.f32 %v190
    %v495 = vand.u32 %v491, 3
    %vm496 = vcmp.lt.s32.totalorder %v495, 2
    %vm497 = vcmp.eq.s32.totalorder %v495, 0
    %v498 = vxor.u32 %v493, 2147483648
    %v499 = vsel %vm497, %v492, %v498
    %vm500 = vcmp.eq.s32.totalorder %v495, 2
    %v501 = vxor.u32 %v492, 2147483648
    %v502 = vsel %vm500, %v501, %v493
    %v503 = vsel %vm496, %v499, %v502
    %v504 = vsel %vm494, nan, %v503
    %v505 = vand.u32 2147483647, %v191
    %vm506 = vcmp.le.f32.partialorder %v505, 0.7853982
    %vm507 = vcmp.lt.s32.totalorder %v191, 0
    %v508 = vand.u32 %v191, 2139095040
    %v509 = vshrl.u32 %v508, 23
    %v510 = vsub.s32 %v509, 127
    %v511 = vand.u32 2147483647, %v191
    %v512 = vand.u32 %v511, 8388607
    %v513 = vor.u32 %v512, 8388608
    %v514 = vsub.s32 0, %v513
    %v515 = vadd.s32 %v510, 1
    %vm516 = vcmp.gt.s32.totalorder %v515, 0
    %v517 = vsel %vm516, %v515, 0
    %v518 = vshrl.u32 %v517, 5
    %v519 = vand.u32 %v517, 31
    %v520 = vsub.s32 32, %v519
    %v521 = vshrl.u32 683565275, %v520
    %v522 = vshll.u32 683565275, %v519
    %v523 = vshrl.u32 2475754826, %v520
    %v524 = vor.u32 %v522, %v523
    %v525 = vshll.u32 2475754826, %v519
    %v526 = vshrl.u32 2131351028, %v520
    %v527 = vor.u32 %v525, %v526
    %v528 = vshll.u32 2131351028, %v519
    %v529 = vshrl.u32 2102212464, %v520
    %v530 = vor.u32 %v528, %v529
    %v531 = vshll.u32 2102212464, %v519
    %v532 = vshrl.u32 920167782, %v520
    %v533 = vor.u32 %v531, %v532
    %v534 = vshll.u32 920167782, %v519
    %v535 = vshrl.u32 1326507024, %v520
    %v536 = vor.u32 %v534, %v535
    %vm537 = vcmp.lt.s32.totalorder %v518, 1
    %vm538 = vcmp.lt.s32.totalorder %v518, 2
    %vm539 = vcmp.lt.s32.totalorder %v518, 3
    %vm540 = vcmp.lt.s32.totalorder %v518, 4
    %v541 = vsel %vm537, %v521, %v524
    %v542 = vsel %vm540, %v530, 2102212464
    %v543 = vsel %vm539, %v527, %v542
    %v544 = vsel %vm538, %v541, %v543
    %v545 = vsel %vm537, %v524, %v527
    %v546 = vsel %vm540, %v533, 920167782
    %v547 = vsel %vm539, %v530, %v546
    %v548 = vsel %vm538, %v545, %v547
    %v549 = vsel %vm537, %v527, %v530
    %v550 = vsel %vm540, %v536, 1326507024
    %v551 = vsel %vm539, %v533, %v550
    %v552 = vsel %vm538, %v549, %v551
    %v553 = vshll.u32 %v513, 8
    %v554 = vmul.u32.u64.compose %v553, %v552
    %v555 = vextract.low.u32 %v554
    %v556 = vextract.high.u32 %v554
    %v557 = vmul.u32.u64.compose %v553, %v548
    %v558 = vextract.low.u32 %v557
    %v559 = vextract.high.u32 %v557
    %v560 = vmul.u32 %v553, %v544
    %v561 = vadd.s32 %v556, %v558
    %vm562 = vc.u32 %v556, %v558
    %v563 = vadd.s32 %v559, 1
    %v564 = vsel %vm562, %v563, %v559
    %v565 = vadd.s32 %v560, %v564
    %v566 = vadd.s32 %v565, 536870912
    %v567 = vshrl.u32 %v566, 30
    %v568 = vshll.u32 %v567, 30
    %v569 = vsub.s32 %v565, %v568
    %vm570 = vcmp.lt.s32.totalorder %v569, 0
    %v571 = vsub.s32 0, %v569
    %v572 = vsel %vm570, %v571, %v569
    %v573 = vclz %v572
    %v574 = vsub.s32 %v573, 2
    %vm575 = vcmp.gt.s32.totalorder 0, %v574
    %v576 = vsel %vm575, 0, %v574
    %v577 = vsub.s32 32, %v576
    %v578 = vshll.u32 %v569, %v576
    %v579 = vshrl.u32 %v561, %v577
    %v580 = vor.u32 %v578, %v579
    %v581 = vsub.s32 4294967266, %v576
    %v582 = vadd.s32 %v581, 127
    %v583 = vshll.u32 %v582, 23
    %v584 = vor.u32 4788187, %v583
    %v585 = vand.u32 2147483647, %v584
    %v587 = vcvt.s32.f32 %v580
    %v588 = vmul.f32 %v587, %v585
    %v589 = vxor.u32 %v588, 2147483648
    %v590 = vsel %vm507, %v589, %v588
    %v591 = vsub.s32 4, %v567
    %v592 = vsel %vm507, %v591, %v567
    %v593 = vsel %vm506, %v191, %v590
    %v594 = vsel %vm506, 0, %v592
    %v595 = vcosq.f32.pop %v593
    %v596 = vsinq.f32.pop %v593
    %vm597 = vweird.f32 %v191
    %v598 = vand.u32 %v594, 3
    %vm599 = vcmp.lt.s32.totalorder %v598, 2
    %vm600 = vcmp.eq.s32.totalorder %v598, 0
    %v601 = vxor.u32 %v596, 2147483648
    %v602 = vsel %vm600, %v595, %v601
    %vm603 = vcmp.eq.s32.totalorder %v598, 2
    %v604 = vxor.u32 %v595, 2147483648
    %v605 = vsel %vm603, %v604, %v596
    %v606 = vsel %vm599, %v602, %v605
    %v607 = vsel %vm597, nan, %v606
    %v608 = vand.u32 2147483647, %v192
    %vm609 = vcmp.le.f32.partialorder %v608, 0.7853982
    %vm610 = vcmp.lt.s32.totalorder %v192, 0
    %v611 = vand.u32 %v192, 2139095040
    %v612 = vshrl.u32 %v611, 23
    %v613 = vsub.s32 %v612, 127
    %v614 = vand.u32 2147483647, %v192
    %v615 = vand.u32 %v614, 8388607
    %v616 = vor.u32 %v615, 8388608
    %v617 = vsub.s32 0, %v616
    %v618 = vadd.s32 %v613, 1
    %vm619 = vcmp.gt.s32.totalorder %v618, 0
    %v620 = vsel %vm619, %v618, 0
    %v621 = vshrl.u32 %v620, 5
    %v622 = vand.u32 %v620, 31
    %v623 = vsub.s32 32, %v622
    %v624 = vshrl.u32 683565275, %v623
    %v625 = vshll.u32 683565275, %v622
    %v626 = vshrl.u32 2475754826, %v623
    %v627 = vor.u32 %v625, %v626
    %v628 = vshll.u32 2475754826, %v622
    %v629 = vshrl.u32 2131351028, %v623
    %v630 = vor.u32 %v628, %v629
    %v631 = vshll.u32 2131351028, %v622
    %v632 = vshrl.u32 2102212464, %v623
    %v633 = vor.u32 %v631, %v632
    %v634 = vshll.u32 2102212464, %v622
    %v635 = vshrl.u32 920167782, %v623
    %v636 = vor.u32 %v634, %v635
    %v637 = vshll.u32 920167782, %v622
    %v638 = vshrl.u32 1326507024, %v623
    %v639 = vor.u32 %v637, %v638
    %vm640 = vcmp.lt.s32.totalorder %v621, 1
    %vm641 = vcmp.lt.s32.totalorder %v621, 2
    %vm642 = vcmp.lt.s32.totalorder %v621, 3
    %vm643 = vcmp.lt.s32.totalorder %v621, 4
    %v644 = vsel %vm640, %v624, %v627
    %v645 = vsel %vm643, %v633, 2102212464
    %v646 = vsel %vm642, %v630, %v645
    %v647 = vsel %vm641, %v644, %v646
    %v648 = vsel %vm640, %v627, %v630
    %v649 = vsel %vm643, %v636, 920167782
    %v650 = vsel %vm642, %v633, %v649
    %v651 = vsel %vm641, %v648, %v650
    %v652 = vsel %vm640, %v630, %v633
    %v653 = vsel %vm643, %v639, 1326507024
    %v654 = vsel %vm642, %v636, %v653
    %v655 = vsel %vm641, %v652, %v654
    %v656 = vshll.u32 %v616, 8
    %v657 = vmul.u32.u64.compose %v656, %v655
    %v658 = vextract.low.u32 %v657
    %v659 = vextract.high.u32 %v657
    %v660 = vmul.u32.u64.compose %v656, %v651
    %v661 = vextract.low.u32 %v660
    %v662 = vextract.high.u32 %v660
    %v663 = vmul.u32 %v656, %v647
    %v664 = vadd.s32 %v659, %v661
    %vm665 = vc.u32 %v659, %v661
    %v666 = vadd.s32 %v662, 1
    %v667 = vsel %vm665, %v666, %v662
    %v668 = vadd.s32 %v663, %v667
    %v669 = vadd.s32 %v668, 536870912
    %v670 = vshrl.u32 %v669, 30
    %v671 = vshll.u32 %v670, 30
    %v672 = vsub.s32 %v668, %v671
    %vm673 = vcmp.lt.s32.totalorder %v672, 0
    %v674 = vsub.s32 0, %v672
    %v675 = vsel %vm673, %v674, %v672
    %v676 = vclz %v675
    %v677 = vsub.s32 %v676, 2
    %vm678 = vcmp.gt.s32.totalorder 0, %v677
    %v679 = vsel %vm678, 0, %v677
    %v680 = vsub.s32 32, %v679
    %v681 = vshll.u32 %v672, %v679
    %v682 = vshrl.u32 %v664, %v680
    %v683 = vor.u32 %v681, %v682
    %v684 = vsub.s32 4294967266, %v679
    %v685 = vadd.s32 %v684, 127
    %v686 = vshll.u32 %v685, 23
    %v687 = vor.u32 4788187, %v686
    %v688 = vand.u32 2147483647, %v687
    %v690 = vcvt.s32.f32 %v683
    %v691 = vmul.f32 %v690, %v688
    %v692 = vxor.u32 %v691, 2147483648
    %v693 = vsel %vm610, %v692, %v691
    %v694 = vsub.s32 4, %v670
    %v695 = vsel %vm610, %v694, %v670
    %v696 = vsel %vm609, %v192, %v693
    %v697 = vsel %vm609, 0, %v695
    %v698 = vcosq.f32.pop %v696
    %v699 = vsinq.f32.pop %v696
    %vm700 = vweird.f32 %v192
    %v701 = vand.u32 %v697, 3
    %vm702 = vcmp.lt.s32.totalorder %v701, 2
    %vm703 = vcmp.eq.s32.totalorder %v701, 0
    %v704 = vxor.u32 %v699, 2147483648
    %v705 = vsel %vm703, %v698, %v704
    %vm706 = vcmp.eq.s32.totalorder %v701, 2
    %v707 = vxor.u32 %v698, 2147483648
    %v708 = vsel %vm706, %v707, %v699
    %v709 = vsel %vm702, %v705, %v708
    %v710 = vsel %vm700, nan, %v709
    %v711 = vand.u32 2147483647, %v193
    %vm712 = vcmp.le.f32.partialorder %v711, 0.7853982
    %vm713 = vcmp.lt.s32.totalorder %v193, 0
    %v714 = vand.u32 %v193, 2139095040
    %v715 = vshrl.u32 %v714, 23
    %v716 = vsub.s32 %v715, 127
    %v717 = vand.u32 2147483647, %v193
    %v718 = vand.u32 %v717, 8388607
    %v719 = vor.u32 %v718, 8388608
    %v720 = vsub.s32 0, %v719
    %v721 = vadd.s32 %v716, 1
    %vm722 = vcmp.gt.s32.totalorder %v721, 0
    %v723 = vsel %vm722, %v721, 0
    %v724 = vshrl.u32 %v723, 5
    %v725 = vand.u32 %v723, 31
    %v726 = vsub.s32 32, %v725
    %v727 = vshrl.u32 683565275, %v726
    %v728 = vshll.u32 683565275, %v725
    %v729 = vshrl.u32 2475754826, %v726
    %v730 = vor.u32 %v728, %v729
    %v731 = vshll.u32 2475754826, %v725
    %v732 = vshrl.u32 2131351028, %v726
    %v733 = vor.u32 %v731, %v732
    %v734 = vshll.u32 2131351028, %v725
    %v735 = vshrl.u32 2102212464, %v726
    %v736 = vor.u32 %v734, %v735
    %v737 = vshll.u32 2102212464, %v725
    %v738 = vshrl.u32 920167782, %v726
    %v739 = vor.u32 %v737, %v738
    %v740 = vshll.u32 920167782, %v725
    %v741 = vshrl.u32 1326507024, %v726
    %v742 = vor.u32 %v740, %v741
    %vm743 = vcmp.lt.s32.totalorder %v724, 1
    %vm744 = vcmp.lt.s32.totalorder %v724, 2
    %vm745 = vcmp.lt.s32.totalorder %v724, 3
    %vm746 = vcmp.lt.s32.totalorder %v724, 4
    %v747 = vsel %vm743, %v727, %v730
    %v748 = vsel %vm746, %v736, 2102212464
    %v749 = vsel %vm745, %v733, %v748
    %v750 = vsel %vm744, %v747, %v749
    %v751 = vsel %vm743, %v730, %v733
    %v752 = vsel %vm746, %v739, 920167782
    %v753 = vsel %vm745, %v736, %v752
    %v754 = vsel %vm744, %v751, %v753
    %v755 = vsel %vm743, %v733, %v736
    %v756 = vsel %vm746, %v742, 1326507024
    %v757 = vsel %vm745, %v739, %v756
    %v758 = vsel %vm744, %v755, %v757
    %v759 = vshll.u32 %v719, 8
    %v760 = vmul.u32.u64.compose %v759, %v758
    %v761 = vextract.low.u32 %v760
    %v762 = vextract.high.u32 %v760
    %v763 = vmul.u32.u64.compose %v759, %v754
    %v764 = vextract.low.u32 %v763
    %v765 = vextract.high.u32 %v763
    %v766 = vmul.u32 %v759, %v750
    %v767 = vadd.s32 %v762, %v764
    %vm768 = vc.u32 %v762, %v764
    %v769 = vadd.s32 %v765, 1
    %v770 = vsel %vm768, %v769, %v765
    %v771 = vadd.s32 %v766, %v770
    %v772 = vadd.s32 %v771, 536870912
    %v773 = vshrl.u32 %v772, 30
    %v774 = vshll.u32 %v773, 30
    %v775 = vsub.s32 %v771, %v774
    %vm776 = vcmp.lt.s32.totalorder %v775, 0
    %v777 = vsub.s32 0, %v775
    %v778 = vsel %vm776, %v777, %v775
    %v779 = vclz %v778
    %v780 = vsub.s32 %v779, 2
    %vm781 = vcmp.gt.s32.totalorder 0, %v780
    %v782 = vsel %vm781, 0, %v780
    %v783 = vsub.s32 32, %v782
    %v784 = vshll.u32 %v775, %v782
    %v785 = vshrl.u32 %v767, %v783
    %v786 = vor.u32 %v784, %v785
    %v787 = vsub.s32 4294967266, %v782
    %v788 = vadd.s32 %v787, 127
    %v789 = vshll.u32 %v788, 23
    %v790 = vor.u32 4788187, %v789
    %v791 = vand.u32 2147483647, %v790
    %v793 = vcvt.s32.f32 %v786
    %v794 = vmul.f32 %v793, %v791
    %v795 = vxor.u32 %v794, 2147483648
    %v796 = vsel %vm713, %v795, %v794
    %v797 = vsub.s32 4, %v773
    %v798 = vsel %vm713, %v797, %v773
    %v799 = vsel %vm712, %v193, %v796
    %v800 = vsel %vm712, 0, %v798
    %v801 = vcosq.f32.pop %v799
    %v802 = vsinq.f32.pop %v799
    %vm803 = vweird.f32 %v193
    %v804 = vand.u32 %v800, 3
    %vm805 = vcmp.lt.s32.totalorder %v804, 2
    %vm806 = vcmp.eq.s32.totalorder %v804, 0
    %v807 = vxor.u32 %v802, 2147483648
    %v808 = vsel %vm806, %v801, %v807
    %vm809 = vcmp.eq.s32.totalorder %v804, 2
    %v810 = vxor.u32 %v801, 2147483648
    %v811 = vsel %vm809, %v810, %v802
    %v812 = vsel %vm805, %v808, %v811
    %v813 = vsel %vm803, nan, %v812
    %v814 = vand.u32 2147483647, %v194
    %vm815 = vcmp.le.f32.partialorder %v814, 0.7853982
    %vm816 = vcmp.lt.s32.totalorder %v194, 0
    %v817 = vand.u32 %v194, 2139095040
    %v818 = vshrl.u32 %v817, 23
    %v819 = vsub.s32 %v818, 127
    %v820 = vand.u32 2147483647, %v194
    %v821 = vand.u32 %v820, 8388607
    %v822 = vor.u32 %v821, 8388608
    %v823 = vsub.s32 0, %v822
    %v824 = vadd.s32 %v819, 1
    %vm825 = vcmp.gt.s32.totalorder %v824, 0
    %v826 = vsel %vm825, %v824, 0
    %v827 = vshrl.u32 %v826, 5
    %v828 = vand.u32 %v826, 31
    %v829 = vsub.s32 32, %v828
    %v830 = vshrl.u32 683565275, %v829
    %v831 = vshll.u32 683565275, %v828
    %v832 = vshrl.u32 2475754826, %v829
    %v833 = vor.u32 %v831, %v832
    %v834 = vshll.u32 2475754826, %v828
    %v835 = vshrl.u32 2131351028, %v829
    %v836 = vor.u32 %v834, %v835
    %v837 = vshll.u32 2131351028, %v828
    %v838 = vshrl.u32 2102212464, %v829
    %v839 = vor.u32 %v837, %v838
    %v840 = vshll.u32 2102212464, %v828
    %v841 = vshrl.u32 920167782, %v829
    %v842 = vor.u32 %v840, %v841
    %v843 = vshll.u32 920167782, %v828
    %v844 = vshrl.u32 1326507024, %v829
    %v845 = vor.u32 %v843, %v844
    %vm846 = vcmp.lt.s32.totalorder %v827, 1
    %vm847 = vcmp.lt.s32.totalorder %v827, 2
    %vm848 = vcmp.lt.s32.totalorder %v827, 3
    %vm849 = vcmp.lt.s32.totalorder %v827, 4
    %v850 = vsel %vm846, %v830, %v833
    %v851 = vsel %vm849, %v839, 2102212464
    %v852 = vsel %vm848, %v836, %v851
    %v853 = vsel %vm847, %v850, %v852
    %v854 = vsel %vm846, %v833, %v836
    %v855 = vsel %vm849, %v842, 920167782
    %v856 = vsel %vm848, %v839, %v855
    %v857 = vsel %vm847, %v854, %v856
    %v858 = vsel %vm846, %v836, %v839
    %v859 = vsel %vm849, %v845, 1326507024
    %v860 = vsel %vm848, %v842, %v859
    %v861 = vsel %vm847, %v858, %v860
    %v862 = vshll.u32 %v822, 8
    %v863 = vmul.u32.u64.compose %v862, %v861
    %v864 = vextract.low.u32 %v863
    %v865 = vextract.high.u32 %v863
    %v866 = vmul.u32.u64.compose %v862, %v857
    %v867 = vextract.low.u32 %v866
    %v868 = vextract.high.u32 %v866
    %v869 = vmul.u32 %v862, %v853
    %v870 = vadd.s32 %v865, %v867
    %vm871 = vc.u32 %v865, %v867
    %v872 = vadd.s32 %v868, 1
    %v873 = vsel %vm871, %v872, %v868
    %v874 = vadd.s32 %v869, %v873
    %v875 = vadd.s32 %v874, 536870912
    %v876 = vshrl.u32 %v875, 30
    %v877 = vshll.u32 %v876, 30
    %v878 = vsub.s32 %v874, %v877
    %vm879 = vcmp.lt.s32.totalorder %v878, 0
    %v880 = vsub.s32 0, %v878
    %v881 = vsel %vm879, %v880, %v878
    %v882 = vclz %v881
    %v883 = vsub.s32 %v882, 2
    %vm884 = vcmp.gt.s32.totalorder 0, %v883
    %v885 = vsel %vm884, 0, %v883
    %v886 = vsub.s32 32, %v885
    %v887 = vshll.u32 %v878, %v885
    %v888 = vshrl.u32 %v870, %v886
    %v889 = vor.u32 %v887, %v888
    %v890 = vsub.s32 4294967266, %v885
    %v891 = vadd.s32 %v890, 127
    %v892 = vshll.u32 %v891, 23
    %v893 = vor.u32 4788187, %v892
    %v894 = vand.u32 2147483647, %v893
    %v896 = vcvt.s32.f32 %v889
    %v897 = vmul.f32 %v896, %v894
    %v898 = vxor.u32 %v897, 2147483648
    %v899 = vsel %vm816, %v898, %v897
    %v900 = vsub.s32 4, %v876
    %v901 = vsel %vm816, %v900, %v876
    %v902 = vsel %vm815, %v194, %v899
    %v903 = vsel %vm815, 0, %v901
    %v904 = vcosq.f32.pop %v902
    %v905 = vsinq.f32.pop %v902
    %vm906 = vweird.f32 %v194
    %v907 = vand.u32 %v903, 3
    %vm908 = vcmp.lt.s32.totalorder %v907, 2
    %vm909 = vcmp.eq.s32.totalorder %v907, 0
    %v910 = vxor.u32 %v905, 2147483648
    %v911 = vsel %vm909, %v904, %v910
    %vm912 = vcmp.eq.s32.totalorder %v907, 2
    %v913 = vxor.u32 %v904, 2147483648
    %v914 = vsel %vm912, %v913, %v905
    %v915 = vsel %vm908, %v911, %v914
    %v916 = vsel %vm906, nan, %v915
    %v917 = vand.u32 2147483647, %v195
    %vm918 = vcmp.le.f32.partialorder %v917, 0.7853982
    %vm919 = vcmp.lt.s32.totalorder %v195, 0
    %v920 = vand.u32 %v195, 2139095040
    %v921 = vshrl.u32 %v920, 23
    %v922 = vsub.s32 %v921, 127
    %v923 = vand.u32 2147483647, %v195
    %v924 = vand.u32 %v923, 8388607
    %v925 = vor.u32 %v924, 8388608
    %v926 = vsub.s32 0, %v925
    %v927 = vadd.s32 %v922, 1
    %vm928 = vcmp.gt.s32.totalorder %v927, 0
    %v929 = vsel %vm928, %v927, 0
    %v930 = vshrl.u32 %v929, 5
    %v931 = vand.u32 %v929, 31
    %v932 = vsub.s32 32, %v931
    %v933 = vshrl.u32 683565275, %v932
    %v934 = vshll.u32 683565275, %v931
    %v935 = vshrl.u32 2475754826, %v932
    %v936 = vor.u32 %v934, %v935
    %v937 = vshll.u32 2475754826, %v931
    %v938 = vshrl.u32 2131351028, %v932
    %v939 = vor.u32 %v937, %v938
    %v940 = vshll.u32 2131351028, %v931
    %v941 = vshrl.u32 2102212464, %v932
    %v942 = vor.u32 %v940, %v941
    %v943 = vshll.u32 2102212464, %v931
    %v944 = vshrl.u32 920167782, %v932
    %v945 = vor.u32 %v943, %v944
    %v946 = vshll.u32 920167782, %v931
    %v947 = vshrl.u32 1326507024, %v932
    %v948 = vor.u32 %v946, %v947
    %vm949 = vcmp.lt.s32.totalorder %v930, 1
    %vm950 = vcmp.lt.s32.totalorder %v930, 2
    %vm951 = vcmp.lt.s32.totalorder %v930, 3
    %vm952 = vcmp.lt.s32.totalorder %v930, 4
    %v953 = vsel %vm949, %v933, %v936
    %v954 = vsel %vm952, %v942, 2102212464
    %v955 = vsel %vm951, %v939, %v954
    %v956 = vsel %vm950, %v953, %v955
    %v957 = vsel %vm949, %v936, %v939
    %v958 = vsel %vm952, %v945, 920167782
    %v959 = vsel %vm951, %v942, %v958
    %v960 = vsel %vm950, %v957, %v959
    %v961 = vsel %vm949, %v939, %v942
    %v962 = vsel %vm952, %v948, 1326507024
    %v963 = vsel %vm951, %v945, %v962
    %v964 = vsel %vm950, %v961, %v963
    %v965 = vshll.u32 %v925, 8
    %v966 = vmul.u32.u64.compose %v965, %v964
    %v967 = vextract.low.u32 %v966
    %v968 = vextract.high.u32 %v966
    %v969 = vmul.u32.u64.compose %v965, %v960
    %v970 = vextract.low.u32 %v969
    %v971 = vextract.high.u32 %v969
    %v972 = vmul.u32 %v965, %v956
    %v973 = vadd.s32 %v968, %v970
    %vm974 = vc.u32 %v968, %v970
    %v975 = vadd.s32 %v971, 1
    %v976 = vsel %vm974, %v975, %v971
    %v977 = vadd.s32 %v972, %v976
    %v978 = vadd.s32 %v977, 536870912
    %v979 = vshrl.u32 %v978, 30
    %v980 = vshll.u32 %v979, 30
    %v981 = vsub.s32 %v977, %v980
    %vm982 = vcmp.lt.s32.totalorder %v981, 0
    %v983 = vsub.s32 0, %v981
    %v984 = vsel %vm982, %v983, %v981
    %v985 = vclz %v984
    %v986 = vsub.s32 %v985, 2
    %vm987 = vcmp.gt.s32.totalorder 0, %v986
    %v988 = vsel %vm987, 0, %v986
    %v989 = vsub.s32 32, %v988
    %v990 = vshll.u32 %v981, %v988
    %v991 = vshrl.u32 %v973, %v989
    %v992 = vor.u32 %v990, %v991
    %v993 = vsub.s32 4294967266, %v988
    %v994 = vadd.s32 %v993, 127
    %v995 = vshll.u32 %v994, 23
    %v996 = vor.u32 4788187, %v995
    %v997 = vand.u32 2147483647, %v996
    %v999 = vcvt.s32.f32 %v992
    %v1000 = vmul.f32 %v999, %v997
    %v1001 = vxor.u32 %v1000, 2147483648
    %v1002 = vsel %vm919, %v1001, %v1000
    %v1003 = vsub.s32 4, %v979
    %v1004 = vsel %vm919, %v1003, %v979
    %v1005 = vsel %vm918, %v195, %v1002
    %v1006 = vsel %vm918, 0, %v1004
    %v1007 = vcosq.f32.pop %v1005
    %v1008 = vsinq.f32.pop %v1005
    %vm1009 = vweird.f32 %v195
    %v1010 = vand.u32 %v1006, 3
    %vm1011 = vcmp.lt.s32.totalorder %v1010, 2
    %vm1012 = vcmp.eq.s32.totalorder %v1010, 0
    %v1013 = vxor.u32 %v1008, 2147483648
    %v1014 = vsel %vm1012, %v1007, %v1013
    %vm1015 = vcmp.eq.s32.totalorder %v1010, 2
    %v1016 = vxor.u32 %v1007, 2147483648
    %v1017 = vsel %vm1015, %v1016, %v1008
    %v1018 = vsel %vm1011, %v1014, %v1017
    %v1019 = vsel %vm1009, nan, %v1018
    %v1020 = vld [vmem:[%s4] sm:$0xff]
    %v1021 = vld [vmem:[%s4 + $0x8] sm:$0xff]
    %v1022 = vld [vmem:[%s4 + $0x10] sm:$0xff]
    %v1023 = vld [vmem:[%s4 + $0x18] sm:$0x3]
    %v1024 = vsub.f32 %v298, %v124
    %v1025 = vsub.f32 %v401, %v125
    %v1026 = vsub.f32 %v504, %v126
    %v1027 = vsub.f32 %v607, %v127
    %v1028 = vsub.f32 %v710, %v128
    %v1029 = vsub.f32 %v813, %v129
    %v1030 = vsub.f32 %v916, %v130
    %v1031 = vsub.f32 %v1019, %v131
    %1033 = vset.pattern.permute.xlu0 0
    %1034 = vperm.xlu0 %1033, %v1020
    %v1035 = vpop.permute.xlu0 %1034
    %1038 = vset.pattern.permute.xlu0 0
    %1039 = vperm.xlu0 %1038, %v1021
    %v1040 = vpop.permute.xlu0 %1039
    %1043 = vset.pattern.permute.xlu0 0
    %1044 = vperm.xlu0 %1043, %v1022
    %v1045 = vpop.permute.xlu0 %1044
    %1048 = vset.pattern.permute.xlu0 0
    %1049 = vperm.xlu0 %1048, %v1023
    %v1050 = vpop.permute.xlu0 %1049
    %v1052 = vmul.f32 %v1035, %v1024
    %v1053 = vmul.f32 %v1035, %v1025
    %v1054 = vmul.f32 %v1040, %v1026
    %v1055 = vmul.f32 %v1040, %v1027
    %v1056 = vmul.f32 %v1045, %v1028
    %v1057 = vmul.f32 %v1045, %v1029
    %v1058 = vmul.f32 %v1050, %v1030
    %v1059 = vmul.f32 %v1050, %v1031
    %v1060 = vadd.f32 %v124, %v1052
    %v1061 = vadd.f32 %v125, %v1053
    %v1062 = vadd.f32 %v126, %v1054
    %v1063 = vadd.f32 %v127, %v1055
    %v1064 = vadd.f32 %v128, %v1056
    %v1065 = vadd.f32 %v129, %v1057
    %v1066 = vadd.f32 %v130, %v1058
    %v1067 = vadd.f32 %v131, %v1059
    %v1068 = vld [vmem:[%s5] sm:$0xf]
    %v1069 = vld [vmem:[%s5 + $0x4] sm:$0xf]
    %v1070 = vld [vmem:[%s5 + $0x8] sm:$0xf]
    %v1071 = vld [vmem:[%s5 + $0xc] sm:$0xf]
    %v1072 = vld [vmem:[%s5 + $0x10] sm:$0xf]
    %v1073 = vld [vmem:[%s5 + $0x14] sm:$0xf]
    %v1074 = vld [vmem:[%s5 + $0x18] sm:$0xf]
    %v1075 = vld [vmem:[%s5 + $0x1c] sm:$0xf]
    %v1076 = vld [vmem:[%s5 + $0x20] sm:$0xf]
    %v1077 = vld [vmem:[%s5 + $0x24] sm:$0xf]
    %v1078 = vld [vmem:[%s5 + $0x28] sm:$0xf]
    %v1079 = vld [vmem:[%s5 + $0x2c] sm:$0xf]
    %v1080 = vld [vmem:[%s5 + $0x30] sm:$0xf]
    %v1081 = vld [vmem:[%s5 + $0x34] sm:$0xf]
    %v1082 = vld [vmem:[%s5 + $0x38] sm:$0xf]
    %v1083 = vld [vmem:[%s5 + $0x3c] sm:$0xf]
    %v1084 = vld [vmem:[%s5 + $0x40] sm:$0xf]
    %v1085 = vld [vmem:[%s5 + $0x44] sm:$0xf]
    %v1086 = vld [vmem:[%s5 + $0x48] sm:$0xf]
    %v1087 = vld [vmem:[%s5 + $0x4c] sm:$0xf]
    %v1088 = vld [vmem:[%s5 + $0x50] sm:$0xf]
    %v1089 = vld [vmem:[%s5 + $0x54] sm:$0xf]
    %v1090 = vld [vmem:[%s5 + $0x58] sm:$0xf]
    %v1091 = vld [vmem:[%s5 + $0x5c] sm:$0xf]
    %v1092 = vld [vmem:[%s5 + $0x60] sm:$0xf]
    %v1093 = vpack.c.bf16 %v1062, %v1060
    %v1094 = vpack.c.bf16 %v1063, %v1061
    %v1095 = vpack.c.bf16 %v1066, %v1064
    %v1096 = vpack.c.bf16 %v1067, %v1065
    %v1097 = vld [vmem:[%s6] sm:$0xff]
    %v1098 = vld [vmem:[%s6 + $0x8] sm:$0xff]
    %v1099 = vld [vmem:[%s6 + $0x10] sm:$0xff]
    %v1100 = vld [vmem:[%s6 + $0x18] sm:$0xff]
    %v1101 = vld [vmem:[%s6 + $0x20] sm:$0xff]
    %v1102 = vld [vmem:[%s6 + $0x28] sm:$0xff]
    %v1103 = vld [vmem:[%s6 + $0x30] sm:$0xff]
    %v1104 = vld [vmem:[%s6 + $0x38] sm:$0xff]
    %v1105 = vld [vmem:[%s6 + $0x40] sm:$0xff]
    %v1106 = vld [vmem:[%s6 + $0x48] sm:$0xff]
    %v1107 = vld [vmem:[%s6 + $0x50] sm:$0xff]
    %v1108 = vld [vmem:[%s6 + $0x58] sm:$0xff]
    %v1109 = vld [vmem:[%s6 + $0x60] sm:$0xff]
    %v1110 = vld [vmem:[%s6 + $0x68] sm:$0xff]
    %v1111 = vld [vmem:[%s6 + $0x70] sm:$0xff]
    %v1112 = vld [vmem:[%s6 + $0x78] sm:$0xff]
    %v1113 = vld [vmem:[%s6 + $0x80] sm:$0xff]
    %v1114 = vld [vmem:[%s6 + $0x88] sm:$0xff]
    %v1115 = vld [vmem:[%s6 + $0x90] sm:$0xff]
    %v1116 = vld [vmem:[%s6 + $0x98] sm:$0xff]
    %v1117 = vld [vmem:[%s6 + $0xa0] sm:$0xff]
    %v1118 = vld [vmem:[%s6 + $0xa8] sm:$0xff]
    %v1119 = vld [vmem:[%s6 + $0xb0] sm:$0xff]
    %v1120 = vld [vmem:[%s6 + $0xb8] sm:$0xff]
    %v1121 = vld [vmem:[%s6 + $0xc0] sm:$0xff]
    %1123 = vset.pattern.permute.xlu0 0
    %1124 = vperm.xlu0 %1123, %v1097
    %v1125 = vpop.permute.xlu0 %1124
    %1128 = vset.pattern.permute.xlu0 0
    %1129 = vperm.xlu0 %1128, %v1098
    %v1130 = vpop.permute.xlu0 %1129
    %1133 = vset.pattern.permute.xlu0 0
    %1134 = vperm.xlu0 %1133, %v1099
    %v1135 = vpop.permute.xlu0 %1134
    %1138 = vset.pattern.permute.xlu0 0
    %1139 = vperm.xlu0 %1138, %v1100
    %v1140 = vpop.permute.xlu0 %1139
    %1143 = vset.pattern.permute.xlu0 0
    %1144 = vperm.xlu0 %1143, %v1101
    %v1145 = vpop.permute.xlu0 %1144
    %1148 = vset.pattern.permute.xlu0 0
    %1149 = vperm.xlu0 %1148, %v1102
    %v1150 = vpop.permute.xlu0 %1149
    %1153 = vset.pattern.permute.xlu0 0
    %1154 = vperm.xlu0 %1153, %v1103
    %v1155 = vpop.permute.xlu0 %1154
    %1158 = vset.pattern.permute.xlu0 0
    %1159 = vperm.xlu0 %1158, %v1104
    %v1160 = vpop.permute.xlu0 %1159
    %1163 = vset.pattern.permute.xlu0 0
    %1164 = vperm.xlu0 %1163, %v1105
    %v1165 = vpop.permute.xlu0 %1164
    %1168 = vset.pattern.permute.xlu0 0
    %1169 = vperm.xlu0 %1168, %v1106
    %v1170 = vpop.permute.xlu0 %1169
    %1173 = vset.pattern.permute.xlu0 0
    %1174 = vperm.xlu0 %1173, %v1107
    %v1175 = vpop.permute.xlu0 %1174
    %1178 = vset.pattern.permute.xlu0 0
    %1179 = vperm.xlu0 %1178, %v1108
    %v1180 = vpop.permute.xlu0 %1179
    %1183 = vset.pattern.permute.xlu0 0
    %1184 = vperm.xlu0 %1183, %v1109
    %v1185 = vpop.permute.xlu0 %1184
    %1188 = vset.pattern.permute.xlu0 0
    %1189 = vperm.xlu0 %1188, %v1110
    %v1190 = vpop.permute.xlu0 %1189
    %1193 = vset.pattern.permute.xlu0 0
    %1194 = vperm.xlu0 %1193, %v1111
    %v1195 = vpop.permute.xlu0 %1194
    %1198 = vset.pattern.permute.xlu0 0
    %1199 = vperm.xlu0 %1198, %v1112
    %v1200 = vpop.permute.xlu0 %1199
    %1203 = vset.pattern.permute.xlu0 0
    %1204 = vperm.xlu0 %1203, %v1113
    %v1205 = vpop.permute.xlu0 %1204
    %1208 = vset.pattern.permute.xlu0 0
    %1209 = vperm.xlu0 %1208, %v1114
    %v1210 = vpop.permute.xlu0 %1209
    %1213 = vset.pattern.permute.xlu0 0
    %1214 = vperm.xlu0 %1213, %v1115
    %v1215 = vpop.permute.xlu0 %1214
    %1218 = vset.pattern.permute.xlu0 0
    %1219 = vperm.xlu0 %1218, %v1116
    %v1220 = vpop.permute.xlu0 %1219
    %1223 = vset.pattern.permute.xlu0 0
    %1224 = vperm.xlu0 %1223, %v1117
    %v1225 = vpop.permute.xlu0 %1224
    %1228 = vset.pattern.permute.xlu0 0
    %1229 = vperm.xlu0 %1228, %v1118
    %v1230 = vpop.permute.xlu0 %1229
    %1233 = vset.pattern.permute.xlu0 0
    %1234 = vperm.xlu0 %1233, %v1119
    %v1235 = vpop.permute.xlu0 %1234
    %1238 = vset.pattern.permute.xlu0 0
    %1239 = vperm.xlu0 %1238, %v1120
    %v1240 = vpop.permute.xlu0 %1239
    %1243 = vset.pattern.permute.xlu0 0
    %1244 = vperm.xlu0 %1243, %v1121
    %v1245 = vpop.permute.xlu0 %1244
    %v1272 = vunpack.c.l.b16 %v1068
    %v1273 = vunpack.c.l.b16 %v1069
    %v1274 = vunpack.c.l.b16 %v1070
    %v1275 = vunpack.c.l.b16 %v1071
    %v1276 = vunpack.c.l.b16 %v1072
    %v1277 = vunpack.c.l.b16 %v1073
    %v1278 = vunpack.c.l.b16 %v1074
    %v1279 = vunpack.c.l.b16 %v1075
    %v1280 = vunpack.c.l.b16 %v1076
    %v1281 = vunpack.c.l.b16 %v1077
    %v1282 = vunpack.c.l.b16 %v1078
    %v1283 = vunpack.c.l.b16 %v1079
    %v1284 = vunpack.c.l.b16 %v1080
    %v1285 = vunpack.c.l.b16 %v1081
    %v1286 = vunpack.c.l.b16 %v1082
    %v1287 = vunpack.c.l.b16 %v1083
    %v1288 = vunpack.c.l.b16 %v1084
    %v1289 = vunpack.c.l.b16 %v1085
    %v1290 = vunpack.c.l.b16 %v1086
    %v1291 = vunpack.c.l.b16 %v1087
    %v1292 = vunpack.c.l.b16 %v1088
    %v1293 = vunpack.c.l.b16 %v1089
    %v1294 = vunpack.c.l.b16 %v1090
    %v1295 = vunpack.c.l.b16 %v1091
    %v1296 = vunpack.c.l.b16 %v1092
    %v1297 = vpack.c.b16 %v1273, %v1272
    %v1298 = vpack.c.b16 %v1275, %v1274
    %v1299 = vpack.c.b16 %v1277, %v1276
    %v1300 = vpack.c.b16 %v1279, %v1278
    %v1301 = vpack.c.b16 %v1281, %v1280
    %v1302 = vpack.c.b16 %v1283, %v1282
    %v1303 = vpack.c.b16 %v1285, %v1284
    %v1304 = vpack.c.b16 %v1287, %v1286
    %v1305 = vpack.c.b16 %v1289, %v1288
    %v1306 = vpack.c.b16 %v1291, %v1290
    %v1307 = vpack.c.b16 %v1293, %v1292
    %v1308 = vpack.c.b16 %v1295, %v1294
    %v1309 = vpack.c.b16 %v1296, %v1296
    %vm1310 = vcmask 211968
    %v1312 = vsel %vm1310, %v1297, 0
    %v1315 = vsel %vm1310, %v1298, 0
    %v1318 = vsel %vm1310, %v1299, 0
    %v1321 = vsel %vm1310, %v1300, 0
    %v1324 = vsel %vm1310, %v1301, 0
    %v1327 = vsel %vm1310, %v1302, 0
    %v1330 = vsel %vm1310, %v1303, 0
    %v1333 = vsel %vm1310, %v1304, 0
    %v1336 = vsel %vm1310, %v1305, 0
    %v1339 = vsel %vm1310, %v1306, 0
    %v1342 = vsel %vm1310, %v1307, 0
    %v1345 = vsel %vm1310, %v1308, 0
    %v1348 = vsel %vm1310, %v1309, 0
    %vm1350 = vcmask 1044480
    %v1352 = vsel %vm1350, %v1095, 0
    %v1355 = vsel %vm1350, %v1096, 0
    %1357 = vmatprep.subr.bf16.mxu0 0
    %1358 = vmatpush1.bf16.msra.mxu0 0
    %1359 = vmatprep.subr.bf16.mxu0 0
    %1360 = vmatpush1.bf16.msra.mxu0 0
    %1361 = vmatprep.subr.bf16.mxu0 0
    %1362 = vmatpush1.bf16.msra.mxu0 0
    %1363 = vmatprep.subr.bf16.mxu0 0
    %1364 = vmatpush1.bf16.msra.mxu0 0
    %1365 = vmatprep.subr.bf16.mxu0 0
    %1366 = vmatpush1.bf16.msra.mxu0 0
    %1367 = vmatprep.subr.bf16.mxu0 0
    %1368 = vmatpush1.bf16.msra.mxu0 0
    %1369 = vmatprep.subr.bf16.mxu0 %v1355
    %1370 = vmatpush1.bf16.msra.mxu0 %v1352
    %1371 = vmatprep.subr.bf16.mxu0 %v1094
    %1372 = vmatpush1.bf16.msra.mxu0 %v1093
    %1373 = vmatprep.subr.bf16.mxu0 0
    %1374 = vmatpush2.bf16.msra.mxu0 0
    %1375 = vmatprep.subr.bf16.mxu0 0
    %1376 = vmatpush2.bf16.msra.mxu0 0
    %1377 = vmatprep.subr.bf16.mxu0 0
    %1378 = vmatpush2.bf16.msra.mxu0 0
    %1379 = vmatprep.subr.bf16.mxu0 0
    %1380 = vmatpush2.bf16.msra.mxu0 0
    %1381 = vmatprep.subr.bf16.mxu0 0
    %1382 = vmatpush2.bf16.msra.mxu0 0
    %1383 = vmatprep.subr.bf16.mxu0 0
    %1384 = vmatpush2.bf16.msra.mxu0 0
    %1385 = vmatprep.subr.bf16.mxu0 0
    %1386 = vmatpush2.bf16.msra.mxu0 0
    %1387 = vmatprep.subr.bf16.mxu0 0
    %1388 = vmatpush2.bf16.msra.mxu0 0
    %1389 = vmatprep.mubr.bf16.mxu0 0
    %1390 = vmatmul.mubr.bf16.gmra.mxu0 %v1312
    %v1391 = vpop.f32.mrf.mxu0
    %v1392 = vadd.f32 %v1125, %v1391
    %v1393 = vpop.f32.mrf.mxu0
    %v1394 = vadd.f32 %v1125, %v1393
    %v1395 = vpop.f32.mrf.mxu0
    %v1396 = vadd.f32 %v1130, %v1395
    %v1397 = vpop.f32.mrf.mxu0
    %v1398 = vadd.f32 %v1130, %v1397
    %1399 = vmatprep.mubr.bf16.mxu0 0
    %1400 = vmatmul.mubr.bf16.gmra.mxu0 %v1315
    %v1401 = vpop.f32.mrf.mxu0
    %v1402 = vadd.f32 %v1135, %v1401
    %v1403 = vpop.f32.mrf.mxu0
    %v1404 = vadd.f32 %v1135, %v1403
    %v1405 = vpop.f32.mrf.mxu0
    %v1406 = vadd.f32 %v1140, %v1405
    %v1407 = vpop.f32.mrf.mxu0
    %v1408 = vadd.f32 %v1140, %v1407
    %1409 = vmatprep.mubr.bf16.mxu0 0
    %1410 = vmatmul.mubr.bf16.gmra.mxu0 %v1318
    %v1411 = vpop.f32.mrf.mxu0
    %v1412 = vadd.f32 %v1145, %v1411
    %v1413 = vpop.f32.mrf.mxu0
    %v1414 = vadd.f32 %v1145, %v1413
    %v1415 = vpop.f32.mrf.mxu0
    %v1416 = vadd.f32 %v1150, %v1415
    %v1417 = vpop.f32.mrf.mxu0
    %v1418 = vadd.f32 %v1150, %v1417
    %1419 = vmatprep.mubr.bf16.mxu0 0
    %1420 = vmatmul.mubr.bf16.gmra.mxu0 %v1321
    %v1421 = vpop.f32.mrf.mxu0
    %v1422 = vadd.f32 %v1155, %v1421
    %v1423 = vpop.f32.mrf.mxu0
    %v1424 = vadd.f32 %v1155, %v1423
    %v1425 = vpop.f32.mrf.mxu0
    %v1426 = vadd.f32 %v1160, %v1425
    %v1427 = vpop.f32.mrf.mxu0
    %v1428 = vadd.f32 %v1160, %v1427
    %1429 = vmatprep.mubr.bf16.mxu0 0
    %1430 = vmatmul.mubr.bf16.gmra.mxu0 %v1324
    %v1431 = vpop.f32.mrf.mxu0
    %v1432 = vadd.f32 %v1165, %v1431
    %v1433 = vpop.f32.mrf.mxu0
    %v1434 = vadd.f32 %v1165, %v1433
    %v1435 = vpop.f32.mrf.mxu0
    %v1436 = vadd.f32 %v1170, %v1435
    %v1437 = vpop.f32.mrf.mxu0
    %v1438 = vadd.f32 %v1170, %v1437
    %1439 = vmatprep.mubr.bf16.mxu0 0
    %1440 = vmatmul.mubr.bf16.gmra.mxu0 %v1327
    %v1441 = vpop.f32.mrf.mxu0
    %v1442 = vadd.f32 %v1175, %v1441
    %v1443 = vpop.f32.mrf.mxu0
    %v1444 = vadd.f32 %v1175, %v1443
    %v1445 = vpop.f32.mrf.mxu0
    %v1446 = vadd.f32 %v1180, %v1445
    %v1447 = vpop.f32.mrf.mxu0
    %v1448 = vadd.f32 %v1180, %v1447
    %1449 = vmatprep.mubr.bf16.mxu0 0
    %1450 = vmatmul.mubr.bf16.gmra.mxu0 %v1330
    %v1451 = vpop.f32.mrf.mxu0
    %v1452 = vadd.f32 %v1185, %v1451
    %v1453 = vpop.f32.mrf.mxu0
    %v1454 = vadd.f32 %v1185, %v1453
    %v1455 = vpop.f32.mrf.mxu0
    %v1456 = vadd.f32 %v1190, %v1455
    %v1457 = vpop.f32.mrf.mxu0
    %v1458 = vadd.f32 %v1190, %v1457
    %1459 = vmatprep.mubr.bf16.mxu0 0
    %1460 = vmatmul.mubr.bf16.gmra.mxu0 %v1333
    %v1461 = vpop.f32.mrf.mxu0
    %v1462 = vadd.f32 %v1195, %v1461
    %v1463 = vpop.f32.mrf.mxu0
    %v1464 = vadd.f32 %v1195, %v1463
    %v1465 = vpop.f32.mrf.mxu0
    %v1466 = vadd.f32 %v1200, %v1465
    %v1467 = vpop.f32.mrf.mxu0
    %v1468 = vadd.f32 %v1200, %v1467
    %1469 = vmatprep.mubr.bf16.mxu0 0
    %1470 = vmatmul.mubr.bf16.gmra.mxu0 %v1336
    %v1471 = vpop.f32.mrf.mxu0
    %v1472 = vadd.f32 %v1205, %v1471
    %v1473 = vpop.f32.mrf.mxu0
    %v1474 = vadd.f32 %v1205, %v1473
    %v1475 = vpop.f32.mrf.mxu0
    %v1476 = vadd.f32 %v1210, %v1475
    %v1477 = vpop.f32.mrf.mxu0
    %v1478 = vadd.f32 %v1210, %v1477
    %1479 = vmatprep.mubr.bf16.mxu0 0
    %1480 = vmatmul.mubr.bf16.gmra.mxu0 %v1339
    %v1481 = vpop.f32.mrf.mxu0
    %v1482 = vadd.f32 %v1215, %v1481
    %v1483 = vpop.f32.mrf.mxu0
    %v1484 = vadd.f32 %v1215, %v1483
    %v1485 = vpop.f32.mrf.mxu0
    %v1486 = vadd.f32 %v1220, %v1485
    %v1487 = vpop.f32.mrf.mxu0
    %v1488 = vadd.f32 %v1220, %v1487
    %1489 = vmatprep.mubr.bf16.mxu0 0
    %1490 = vmatmul.mubr.bf16.gmra.mxu0 %v1342
    %v1491 = vpop.f32.mrf.mxu0
    %v1492 = vadd.f32 %v1225, %v1491
    %v1493 = vpop.f32.mrf.mxu0
    %v1494 = vadd.f32 %v1225, %v1493
    %v1495 = vpop.f32.mrf.mxu0
    %v1496 = vadd.f32 %v1230, %v1495
    %v1497 = vpop.f32.mrf.mxu0
    %v1498 = vadd.f32 %v1230, %v1497
    %1499 = vmatprep.mubr.bf16.mxu0 0
    %1500 = vmatmul.mubr.bf16.gmra.mxu0 %v1345
    %v1501 = vpop.f32.mrf.mxu0
    %v1502 = vadd.f32 %v1235, %v1501
    %v1503 = vpop.f32.mrf.mxu0
    %v1504 = vadd.f32 %v1235, %v1503
    %v1505 = vpop.f32.mrf.mxu0
    %v1506 = vadd.f32 %v1240, %v1505
    %v1507 = vpop.f32.mrf.mxu0
    %v1508 = vadd.f32 %v1240, %v1507
    %1509 = vmatprep.mubr.bf16.mxu0 0
    %1510 = vmatmul.mubr.bf16.gmra.mxu0 %v1348
    %v1511 = vpop.f32.mrf.mxu0
    %v1512 = vadd.f32 %v1245, %v1511
    %v1513 = vpop.f32.mrf.mxu0
    %v1514 = vadd.f32 %v1245, %v1513
    %v1515 = vpop.f32.mrf.mxu0
    %v1516 = vpop.f32.mrf.mxu0
    %1517 = vdwg.mxu0
    %v1518 = vmax.f32 %v1392, 0.0
    %v1519 = vmax.f32 %v1394, 0.0
    %v1520 = vmax.f32 %v1396, 0.0
    %v1521 = vmax.f32 %v1398, 0.0
    %v1522 = vmax.f32 %v1402, 0.0
    %v1523 = vmax.f32 %v1404, 0.0
    %v1524 = vmax.f32 %v1406, 0.0
    %v1525 = vmax.f32 %v1408, 0.0
    %v1526 = vmax.f32 %v1412, 0.0
    %v1527 = vmax.f32 %v1414, 0.0
    %v1528 = vmax.f32 %v1416, 0.0
    %v1529 = vmax.f32 %v1418, 0.0
    %v1530 = vmax.f32 %v1422, 0.0
    %v1531 = vmax.f32 %v1424, 0.0
    %v1532 = vmax.f32 %v1426, 0.0
    %v1533 = vmax.f32 %v1428, 0.0
    %v1534 = vmax.f32 %v1432, 0.0
    %v1535 = vmax.f32 %v1434, 0.0
    %v1536 = vmax.f32 %v1436, 0.0
    %v1537 = vmax.f32 %v1438, 0.0
    %v1538 = vmax.f32 %v1442, 0.0
    %v1539 = vmax.f32 %v1444, 0.0
    %v1540 = vmax.f32 %v1446, 0.0
    %v1541 = vmax.f32 %v1448, 0.0
    %v1542 = vmax.f32 %v1452, 0.0
    %v1543 = vmax.f32 %v1454, 0.0
    %v1544 = vmax.f32 %v1456, 0.0
    %v1545 = vmax.f32 %v1458, 0.0
    %v1546 = vmax.f32 %v1462, 0.0
    %v1547 = vmax.f32 %v1464, 0.0
    %v1548 = vmax.f32 %v1466, 0.0
    %v1549 = vmax.f32 %v1468, 0.0
    %v1550 = vmax.f32 %v1472, 0.0
    %v1551 = vmax.f32 %v1474, 0.0
    %v1552 = vmax.f32 %v1476, 0.0
    %v1553 = vmax.f32 %v1478, 0.0
    %v1554 = vmax.f32 %v1482, 0.0
    %v1555 = vmax.f32 %v1484, 0.0
    %v1556 = vmax.f32 %v1486, 0.0
    %v1557 = vmax.f32 %v1488, 0.0
    %v1558 = vmax.f32 %v1492, 0.0
    %v1559 = vmax.f32 %v1494, 0.0
    %v1560 = vmax.f32 %v1496, 0.0
    %v1561 = vmax.f32 %v1498, 0.0
    %v1562 = vmax.f32 %v1502, 0.0
    %v1563 = vmax.f32 %v1504, 0.0
    %v1564 = vmax.f32 %v1506, 0.0
    %v1565 = vmax.f32 %v1508, 0.0
    %v1566 = vmax.f32 %v1512, 0.0
    %v1567 = vmax.f32 %v1514, 0.0
    %v1568 = vpack.c.bf16 %v1520, %v1518
    %v1569 = vpack.c.bf16 %v1521, %v1519
    %v1570 = vpack.c.bf16 %v1524, %v1522
    %v1571 = vpack.c.bf16 %v1525, %v1523
    %v1572 = vpack.c.bf16 %v1528, %v1526
    %v1573 = vpack.c.bf16 %v1529, %v1527
    %v1574 = vpack.c.bf16 %v1532, %v1530
    %v1575 = vpack.c.bf16 %v1533, %v1531
    %v1576 = vpack.c.bf16 %v1536, %v1534
    %v1577 = vpack.c.bf16 %v1537, %v1535
    %v1578 = vpack.c.bf16 %v1540, %v1538
    %v1579 = vpack.c.bf16 %v1541, %v1539
    %v1580 = vpack.c.bf16 %v1544, %v1542
    %v1581 = vpack.c.bf16 %v1545, %v1543
    %v1582 = vpack.c.bf16 %v1548, %v1546
    %v1583 = vpack.c.bf16 %v1549, %v1547
    %v1584 = vpack.c.bf16 %v1552, %v1550
    %v1585 = vpack.c.bf16 %v1553, %v1551
    %v1586 = vpack.c.bf16 %v1556, %v1554
    %v1587 = vpack.c.bf16 %v1557, %v1555
    %v1588 = vpack.c.bf16 %v1560, %v1558
    %v1589 = vpack.c.bf16 %v1561, %v1559
    %v1590 = vpack.c.bf16 %v1564, %v1562
    %v1591 = vpack.c.bf16 %v1565, %v1563
    %v1592 = vpack.c.bf16 %v1566, %v1566
    %v1593 = vpack.c.bf16 %v1567, %v1567
    %v1594 = vld [vmem:[%s7] sm:$0xff]
    %v1595 = vld [vmem:[%s7 + $0x8] sm:$0xff]
    %v1596 = vld [vmem:[%s7 + $0x10] sm:$0xff]
    %v1597 = vld [vmem:[%s7 + $0x18] sm:$0xff]
    %v1598 = vld [vmem:[%s7 + $0x20] sm:$0xff]
    %v1599 = vld [vmem:[%s7 + $0x28] sm:$0xff]
    %v1600 = vld [vmem:[%s7 + $0x30] sm:$0xff]
    %v1601 = vld [vmem:[%s7 + $0x38] sm:$0xff]
    %v1602 = vld [vmem:[%s7 + $0x40] sm:$0xff]
    %v1603 = vld [vmem:[%s7 + $0x48] sm:$0xff]
    %v1604 = vld [vmem:[%s7 + $0x50] sm:$0xff]
    %v1605 = vld [vmem:[%s7 + $0x58] sm:$0xff]
    %v1606 = vld [vmem:[%s7 + $0x60] sm:$0xff]
    %v1607 = vld [vmem:[%s7 + $0x68] sm:$0xff]
    %v1608 = vld [vmem:[%s7 + $0x70] sm:$0xff]
    %v1609 = vld [vmem:[%s7 + $0x78] sm:$0xff]
    %v1610 = vld [vmem:[%s7 + $0x80] sm:$0xff]
    %v1611 = vld [vmem:[%s7 + $0x88] sm:$0xff]
    %v1612 = vld [vmem:[%s7 + $0x90] sm:$0xff]
    %v1613 = vld [vmem:[%s7 + $0x98] sm:$0xff]
    %v1614 = vld [vmem:[%s7 + $0xa0] sm:$0xff]
    %v1615 = vld [vmem:[%s7 + $0xa8] sm:$0xff]
    %v1616 = vld [vmem:[%s7 + $0xb0] sm:$0xff]
    %v1617 = vld [vmem:[%s7 + $0xb8] sm:$0xff]
    %v1618 = vld [vmem:[%s7 + $0xc0] sm:$0xff]
    %v1619 = vld [vmem:[%s7 + $0xc8] sm:$0xff]
    %v1620 = vld [vmem:[%s7 + $0xd0] sm:$0xff]
    %v1621 = vld [vmem:[%s7 + $0xd8] sm:$0xff]
    %v1622 = vld [vmem:[%s7 + $0xe0] sm:$0xff]
    %v1623 = vld [vmem:[%s7 + $0xe8] sm:$0xff]
    %v1624 = vld [vmem:[%s7 + $0xf0] sm:$0xff]
    %v1625 = vld [vmem:[%s7 + $0xf8] sm:$0xff]
    %v1626 = vld [vmem:[%s7 + $0x100] sm:$0xff]
    %v1627 = vld [vmem:[%s7 + $0x108] sm:$0xff]
    %v1628 = vld [vmem:[%s7 + $0x110] sm:$0xff]
    %v1629 = vld [vmem:[%s7 + $0x118] sm:$0xff]
    %v1630 = vld [vmem:[%s7 + $0x120] sm:$0xff]
    %v1631 = vld [vmem:[%s7 + $0x128] sm:$0xff]
    %v1632 = vld [vmem:[%s7 + $0x130] sm:$0xff]
    %v1633 = vld [vmem:[%s7 + $0x138] sm:$0xff]
    %v1634 = vld [vmem:[%s7 + $0x140] sm:$0xff]
    %v1635 = vld [vmem:[%s7 + $0x148] sm:$0xff]
    %v1636 = vld [vmem:[%s7 + $0x150] sm:$0xff]
    %v1637 = vld [vmem:[%s7 + $0x158] sm:$0xff]
    %v1638 = vld [vmem:[%s7 + $0x160] sm:$0xff]
    %v1639 = vld [vmem:[%s7 + $0x168] sm:$0xff]
    %v1640 = vld [vmem:[%s7 + $0x170] sm:$0xff]
    %v1641 = vld [vmem:[%s7 + $0x178] sm:$0xff]
    %v1642 = vld [vmem:[%s7 + $0x180] sm:$0xff]
    %v1643 = vld [vmem:[%s7 + $0x188] sm:$0xff]
    %v1644 = vld [vmem:[%s8] sm:$0xff]
    %v1645 = vld [vmem:[%s8 + $0x8] sm:$0xff]
    %v1646 = vld [vmem:[%s8 + $0x10] sm:$0xff]
    %v1647 = vld [vmem:[%s8 + $0x18] sm:$0xff]
    %v1648 = vld [vmem:[%s8 + $0x20] sm:$0xff]
    %v1649 = vld [vmem:[%s8 + $0x28] sm:$0xff]
    %v1650 = vld [vmem:[%s8 + $0x30] sm:$0xff]
    %v1651 = vld [vmem:[%s8 + $0x38] sm:$0xff]
    %v1652 = vld [vmem:[%s8 + $0x40] sm:$0xff]
    %v1653 = vld [vmem:[%s8 + $0x48] sm:$0xff]
    %v1654 = vld [vmem:[%s8 + $0x50] sm:$0xff]
    %v1655 = vld [vmem:[%s8 + $0x58] sm:$0xff]
    %v1656 = vld [vmem:[%s8 + $0x60] sm:$0xff]
    %v1657 = vld [vmem:[%s8 + $0x68] sm:$0xff]
    %v1658 = vld [vmem:[%s8 + $0x70] sm:$0xff]
    %v1659 = vld [vmem:[%s8 + $0x78] sm:$0xff]
    %v1660 = vld [vmem:[%s8 + $0x80] sm:$0xff]
    %v1661 = vld [vmem:[%s8 + $0x88] sm:$0xff]
    %v1662 = vld [vmem:[%s8 + $0x90] sm:$0xff]
    %v1663 = vld [vmem:[%s8 + $0x98] sm:$0xff]
    %v1664 = vld [vmem:[%s8 + $0xa0] sm:$0xff]
    %v1665 = vld [vmem:[%s8 + $0xa8] sm:$0xff]
    %v1666 = vld [vmem:[%s8 + $0xb0] sm:$0xff]
    %v1667 = vld [vmem:[%s8 + $0xb8] sm:$0xff]
    %v1668 = vld [vmem:[%s8 + $0xc0] sm:$0xff]
    %v1669 = vld [vmem:[%s8 + $0xc8] sm:$0xff]
    %v1670 = vld [vmem:[%s8 + $0xd0] sm:$0xff]
    %v1671 = vld [vmem:[%s8 + $0xd8] sm:$0xff]
    %v1672 = vld [vmem:[%s8 + $0xe0] sm:$0xff]
    %v1673 = vld [vmem:[%s8 + $0xe8] sm:$0xff]
    %v1674 = vld [vmem:[%s8 + $0xf0] sm:$0xff]
    %v1675 = vld [vmem:[%s8 + $0xf8] sm:$0xff]
    %v1676 = vld [vmem:[%s8 + $0x100] sm:$0xff]
    %v1677 = vld [vmem:[%s8 + $0x108] sm:$0xff]
    %v1678 = vld [vmem:[%s8 + $0x110] sm:$0xff]
    %v1679 = vld [vmem:[%s8 + $0x118] sm:$0xff]
    %v1680 = vld [vmem:[%s8 + $0x120] sm:$0xff]
    %v1681 = vld [vmem:[%s8 + $0x128] sm:$0xff]
    %v1682 = vld [vmem:[%s8 + $0x130] sm:$0xff]
    %v1683 = vld [vmem:[%s8 + $0x138] sm:$0xff]
    %v1684 = vld [vmem:[%s8 + $0x140] sm:$0xff]
    %v1685 = vld [vmem:[%s8 + $0x148] sm:$0xff]
    %v1686 = vld [vmem:[%s8 + $0x150] sm:$0xff]
    %v1687 = vld [vmem:[%s8 + $0x158] sm:$0xff]
    %v1688 = vld [vmem:[%s8 + $0x160] sm:$0xff]
    %v1689 = vld [vmem:[%s8 + $0x168] sm:$0xff]
    %v1690 = vld [vmem:[%s8 + $0x170] sm:$0xff]
    %v1691 = vld [vmem:[%s8 + $0x178] sm:$0xff]
    %v1692 = vld [vmem:[%s8 + $0x180] sm:$0xff]
    %v1693 = vld [vmem:[%s8 + $0x188] sm:$0xff]
    %1695 = vset.pattern.permute.xlu0 0
    %1696 = vperm.xlu0 %1695, %v1644
    %v1697 = vpop.permute.xlu0 %1696
    %1700 = vset.pattern.permute.xlu0 0
    %1701 = vperm.xlu0 %1700, %v1645
    %v1702 = vpop.permute.xlu0 %1701
    %1705 = vset.pattern.permute.xlu0 0
    %1706 = vperm.xlu0 %1705, %v1646
    %v1707 = vpop.permute.xlu0 %1706
    %1710 = vset.pattern.permute.xlu0 0
    %1711 = vperm.xlu0 %1710, %v1647
    %v1712 = vpop.permute.xlu0 %1711
    %1715 = vset.pattern.permute.xlu0 0
    %1716 = vperm.xlu0 %1715, %v1648
    %v1717 = vpop.permute.xlu0 %1716
    %1720 = vset.pattern.permute.xlu0 0
    %1721 = vperm.xlu0 %1720, %v1649
    %v1722 = vpop.permute.xlu0 %1721
    %1725 = vset.pattern.permute.xlu0 0
    %1726 = vperm.xlu0 %1725, %v1650
    %v1727 = vpop.permute.xlu0 %1726
    %1730 = vset.pattern.permute.xlu0 0
    %1731 = vperm.xlu0 %1730, %v1651
    %v1732 = vpop.permute.xlu0 %1731
    %1735 = vset.pattern.permute.xlu0 0
    %1736 = vperm.xlu0 %1735, %v1652
    %v1737 = vpop.permute.xlu0 %1736
    %1740 = vset.pattern.permute.xlu0 0
    %1741 = vperm.xlu0 %1740, %v1653
    %v1742 = vpop.permute.xlu0 %1741
    %1745 = vset.pattern.permute.xlu0 0
    %1746 = vperm.xlu0 %1745, %v1654
    %v1747 = vpop.permute.xlu0 %1746
    %1750 = vset.pattern.permute.xlu0 0
    %1751 = vperm.xlu0 %1750, %v1655
    %v1752 = vpop.permute.xlu0 %1751
    %1755 = vset.pattern.permute.xlu0 0
    %1756 = vperm.xlu0 %1755, %v1656
    %v1757 = vpop.permute.xlu0 %1756
    %1760 = vset.pattern.permute.xlu0 0
    %1761 = vperm.xlu0 %1760, %v1657
    %v1762 = vpop.permute.xlu0 %1761
    %1765 = vset.pattern.permute.xlu0 0
    %1766 = vperm.xlu0 %1765, %v1658
    %v1767 = vpop.permute.xlu0 %1766
    %1770 = vset.pattern.permute.xlu0 0
    %1771 = vperm.xlu0 %1770, %v1659
    %v1772 = vpop.permute.xlu0 %1771
    %1775 = vset.pattern.permute.xlu0 0
    %1776 = vperm.xlu0 %1775, %v1660
    %v1777 = vpop.permute.xlu0 %1776
    %1780 = vset.pattern.permute.xlu0 0
    %1781 = vperm.xlu0 %1780, %v1661
    %v1782 = vpop.permute.xlu0 %1781
    %1785 = vset.pattern.permute.xlu0 0
    %1786 = vperm.xlu0 %1785, %v1662
    %v1787 = vpop.permute.xlu0 %1786
    %1790 = vset.pattern.permute.xlu0 0
    %1791 = vperm.xlu0 %1790, %v1663
    %v1792 = vpop.permute.xlu0 %1791
    %1795 = vset.pattern.permute.xlu0 0
    %1796 = vperm.xlu0 %1795, %v1664
    %v1797 = vpop.permute.xlu0 %1796
    %1800 = vset.pattern.permute.xlu0 0
    %1801 = vperm.xlu0 %1800, %v1665
    %v1802 = vpop.permute.xlu0 %1801
    %1805 = vset.pattern.permute.xlu0 0
    %1806 = vperm.xlu0 %1805, %v1666
    %v1807 = vpop.permute.xlu0 %1806
    %1810 = vset.pattern.permute.xlu0 0
    %1811 = vperm.xlu0 %1810, %v1667
    %v1812 = vpop.permute.xlu0 %1811
    %1815 = vset.pattern.permute.xlu0 0
    %1816 = vperm.xlu0 %1815, %v1668
    %v1817 = vpop.permute.xlu0 %1816
    %1820 = vset.pattern.permute.xlu0 0
    %1821 = vperm.xlu0 %1820, %v1669
    %v1822 = vpop.permute.xlu0 %1821
    %1825 = vset.pattern.permute.xlu0 0
    %1826 = vperm.xlu0 %1825, %v1670
    %v1827 = vpop.permute.xlu0 %1826
    %1830 = vset.pattern.permute.xlu0 0
    %1831 = vperm.xlu0 %1830, %v1671
    %v1832 = vpop.permute.xlu0 %1831
    %1835 = vset.pattern.permute.xlu0 0
    %1836 = vperm.xlu0 %1835, %v1672
    %v1837 = vpop.permute.xlu0 %1836
    %1840 = vset.pattern.permute.xlu0 0
    %1841 = vperm.xlu0 %1840, %v1673
    %v1842 = vpop.permute.xlu0 %1841
    %1845 = vset.pattern.permute.xlu0 0
    %1846 = vperm.xlu0 %1845, %v1674
    %v1847 = vpop.permute.xlu0 %1846
    %1850 = vset.pattern.permute.xlu0 0
    %1851 = vperm.xlu0 %1850, %v1675
    %v1852 = vpop.permute.xlu0 %1851
    %1855 = vset.pattern.permute.xlu0 0
    %1856 = vperm.xlu0 %1855, %v1676
    %v1857 = vpop.permute.xlu0 %1856
    %1860 = vset.pattern.permute.xlu0 0
    %1861 = vperm.xlu0 %1860, %v1677
    %v1862 = vpop.permute.xlu0 %1861
    %1865 = vset.pattern.permute.xlu0 0
    %1866 = vperm.xlu0 %1865, %v1678
    %v1867 = vpop.permute.xlu0 %1866
    %1870 = vset.pattern.permute.xlu0 0
    %1871 = vperm.xlu0 %1870, %v1679
    %v1872 = vpop.permute.xlu0 %1871
    %1875 = vset.pattern.permute.xlu0 0
    %1876 = vperm.xlu0 %1875, %v1680
    %v1877 = vpop.permute.xlu0 %1876
    %1880 = vset.pattern.permute.xlu0 0
    %1881 = vperm.xlu0 %1880, %v1681
    %v1882 = vpop.permute.xlu0 %1881
    %1885 = vset.pattern.permute.xlu0 0
    %1886 = vperm.xlu0 %1885, %v1682
    %v1887 = vpop.permute.xlu0 %1886
    %1890 = vset.pattern.permute.xlu0 0
    %1891 = vperm.xlu0 %1890, %v1683
    %v1892 = vpop.permute.xlu0 %1891
    %1895 = vset.pattern.permute.xlu0 0
    %1896 = vperm.xlu0 %1895, %v1684
    %v1897 = vpop.permute.xlu0 %1896
    %1900 = vset.pattern.permute.xlu0 0
    %1901 = vperm.xlu0 %1900, %v1685
    %v1902 = vpop.permute.xlu0 %1901
    %1905 = vset.pattern.permute.xlu0 0
    %1906 = vperm.xlu0 %1905, %v1686
    %v1907 = vpop.permute.xlu0 %1906
    %1910 = vset.pattern.permute.xlu0 0
    %1911 = vperm.xlu0 %1910, %v1687
    %v1912 = vpop.permute.xlu0 %1911
    %1915 = vset.pattern.permute.xlu0 0
    %1916 = vperm.xlu0 %1915, %v1688
    %v1917 = vpop.permute.xlu0 %1916
    %1920 = vset.pattern.permute.xlu0 0
    %1921 = vperm.xlu0 %1920, %v1689
    %v1922 = vpop.permute.xlu0 %1921
    %1925 = vset.pattern.permute.xlu0 0
    %1926 = vperm.xlu0 %1925, %v1690
    %v1927 = vpop.permute.xlu0 %1926
    %1930 = vset.pattern.permute.xlu0 0
    %1931 = vperm.xlu0 %1930, %v1691
    %v1932 = vpop.permute.xlu0 %1931
    %1935 = vset.pattern.permute.xlu0 0
    %1936 = vperm.xlu0 %1935, %v1692
    %v1937 = vpop.permute.xlu0 %1936
    %1940 = vset.pattern.permute.xlu0 0
    %1941 = vperm.xlu0 %1940, %v1693
    %v1942 = vpop.permute.xlu0 %1941
    %v1994 = vunpack.c.l.b16 %v1594
    %v1995 = vunpack.c.h.b16 %v1594
    %v1996 = vunpack.c.l.b16 %v1595
    %v1997 = vunpack.c.h.b16 %v1595
    %v1998 = vunpack.c.l.b16 %v1596
    %v1999 = vunpack.c.h.b16 %v1596
    %v2000 = vunpack.c.l.b16 %v1597
    %v2001 = vunpack.c.h.b16 %v1597
    %v2002 = vunpack.c.l.b16 %v1598
    %v2003 = vunpack.c.h.b16 %v1598
    %v2004 = vunpack.c.l.b16 %v1599
    %v2005 = vunpack.c.h.b16 %v1599
    %v2006 = vunpack.c.l.b16 %v1600
    %v2007 = vunpack.c.h.b16 %v1600
    %v2008 = vunpack.c.l.b16 %v1601
    %v2009 = vunpack.c.h.b16 %v1601
    %v2010 = vunpack.c.l.b16 %v1602
    %v2011 = vunpack.c.h.b16 %v1602
    %v2012 = vunpack.c.l.b16 %v1603
    %v2013 = vunpack.c.h.b16 %v1603
    %v2014 = vunpack.c.l.b16 %v1604
    %v2015 = vunpack.c.h.b16 %v1604
    %v2016 = vunpack.c.l.b16 %v1605
    %v2017 = vunpack.c.h.b16 %v1605
    %v2018 = vunpack.c.l.b16 %v1606
    %v2019 = vunpack.c.h.b16 %v1606
    %v2020 = vunpack.c.l.b16 %v1607
    %v2021 = vunpack.c.h.b16 %v1607
    %v2022 = vunpack.c.l.b16 %v1608
    %v2023 = vunpack.c.h.b16 %v1608
    %v2024 = vunpack.c.l.b16 %v1609
    %v2025 = vunpack.c.h.b16 %v1609
    %v2026 = vunpack.c.l.b16 %v1610
    %v2027 = vunpack.c.h.b16 %v1610
    %v2028 = vunpack.c.l.b16 %v1611
    %v2029 = vunpack.c.h.b16 %v1611
    %v2030 = vunpack.c.l.b16 %v1612
    %v2031 = vunpack.c.h.b16 %v1612
    %v2032 = vunpack.c.l.b16 %v1613
    %v2033 = vunpack.c.h.b16 %v1613
    %v2034 = vunpack.c.l.b16 %v1614
    %v2035 = vunpack.c.h.b16 %v1614
    %v2036 = vunpack.c.l.b16 %v1615
    %v2037 = vunpack.c.h.b16 %v1615
    %v2038 = vunpack.c.l.b16 %v1616
    %v2039 = vunpack.c.h.b16 %v1616
    %v2040 = vunpack.c.l.b16 %v1617
    %v2041 = vunpack.c.h.b16 %v1617
    %v2042 = vunpack.c.l.b16 %v1618
    %v2043 = vunpack.c.h.b16 %v1618
    %v2044 = vunpack.c.l.b16 %v1619
    %v2045 = vunpack.c.h.b16 %v1619
    %v2046 = vunpack.c.l.b16 %v1620
    %v2047 = vunpack.c.h.b16 %v1620
    %v2048 = vunpack.c.l.b16 %v1621
    %v2049 = vunpack.c.h.b16 %v1621
    %v2050 = vunpack.c.l.b16 %v1622
    %v2051 = vunpack.c.h.b16 %v1622
    %v2052 = vunpack.c.l.b16 %v1623
    %v2053 = vunpack.c.h.b16 %v1623
    %v2054 = vunpack.c.l.b16 %v1624
    %v2055 = vunpack.c.h.b16 %v1624
    %v2056 = vunpack.c.l.b16 %v1625
    %v2057 = vunpack.c.h.b16 %v1625
    %v2058 = vunpack.c.l.b16 %v1626
    %v2059 = vunpack.c.h.b16 %v1626
    %v2060 = vunpack.c.l.b16 %v1627
    %v2061 = vunpack.c.h.b16 %v1627
    %v2062 = vunpack.c.l.b16 %v1628
    %v2063 = vunpack.c.h.b16 %v1628
    %v2064 = vunpack.c.l.b16 %v1629
    %v2065 = vunpack.c.h.b16 %v1629
    %v2066 = vunpack.c.l.b16 %v1630
    %v2067 = vunpack.c.h.b16 %v1630
    %v2068 = vunpack.c.l.b16 %v1631
    %v2069 = vunpack.c.h.b16 %v1631
    %v2070 = vunpack.c.l.b16 %v1632
    %v2071 = vunpack.c.h.b16 %v1632
    %v2072 = vunpack.c.l.b16 %v1633
    %v2073 = vunpack.c.h.b16 %v1633
    %v2074 = vunpack.c.l.b16 %v1634
    %v2075 = vunpack.c.h.b16 %v1634
    %v2076 = vunpack.c.l.b16 %v1635
    %v2077 = vunpack.c.h.b16 %v1635
    %v2078 = vunpack.c.l.b16 %v1636
    %v2079 = vunpack.c.h.b16 %v1636
    %v2080 = vunpack.c.l.b16 %v1637
    %v2081 = vunpack.c.h.b16 %v1637
    %v2082 = vunpack.c.l.b16 %v1638
    %v2083 = vunpack.c.h.b16 %v1638
    %v2084 = vunpack.c.l.b16 %v1639
    %v2085 = vunpack.c.h.b16 %v1639
    %v2086 = vunpack.c.l.b16 %v1640
    %v2087 = vunpack.c.h.b16 %v1640
    %v2088 = vunpack.c.l.b16 %v1641
    %v2089 = vunpack.c.h.b16 %v1641
    %v2090 = vunpack.c.l.b16 %v1642
    %v2091 = vunpack.c.h.b16 %v1642
    %v2092 = vunpack.c.l.b16 %v1643
    %v2093 = vunpack.c.h.b16 %v1643
    %v2094 = vpack.c.b16 %v1996, %v1994
    %v2095 = vpack.c.b16 %v1997, %v1995
    %v2096 = vpack.c.b16 %v2000, %v1998
    %v2097 = vpack.c.b16 %v2001, %v1999
    %v2098 = vpack.c.b16 %v2004, %v2002
    %v2099 = vpack.c.b16 %v2005, %v2003
    %v2100 = vpack.c.b16 %v2008, %v2006
    %v2101 = vpack.c.b16 %v2009, %v2007
    %v2102 = vpack.c.b16 %v2012, %v2010
    %v2103 = vpack.c.b16 %v2013, %v2011
    %v2104 = vpack.c.b16 %v2016, %v2014
    %v2105 = vpack.c.b16 %v2017, %v2015
    %v2106 = vpack.c.b16 %v2020, %v2018
    %v2107 = vpack.c.b16 %v2021, %v2019
    %v2108 = vpack.c.b16 %v2024, %v2022
    %v2109 = vpack.c.b16 %v2025, %v2023
    %v2110 = vpack.c.b16 %v2028, %v2026
    %v2111 = vpack.c.b16 %v2029, %v2027
    %v2112 = vpack.c.b16 %v2032, %v2030
    %v2113 = vpack.c.b16 %v2033, %v2031
    %v2114 = vpack.c.b16 %v2036, %v2034
    %v2115 = vpack.c.b16 %v2037, %v2035
    %v2116 = vpack.c.b16 %v2040, %v2038
    %v2117 = vpack.c.b16 %v2041, %v2039
    %v2118 = vpack.c.b16 %v2044, %v2042
    %v2119 = vpack.c.b16 %v2045, %v2043
    %v2120 = vpack.c.b16 %v2048, %v2046
    %v2121 = vpack.c.b16 %v2049, %v2047
    %v2122 = vpack.c.b16 %v2052, %v2050
    %v2123 = vpack.c.b16 %v2053, %v2051
    %v2124 = vpack.c.b16 %v2056, %v2054
    %v2125 = vpack.c.b16 %v2057, %v2055
    %v2126 = vpack.c.b16 %v2060, %v2058
    %v2127 = vpack.c.b16 %v2061, %v2059
    %v2128 = vpack.c.b16 %v2064, %v2062
    %v2129 = vpack.c.b16 %v2065, %v2063
    %v2130 = vpack.c.b16 %v2068, %v2066
    %v2131 = vpack.c.b16 %v2069, %v2067
    %v2132 = vpack.c.b16 %v2072, %v2070
    %v2133 = vpack.c.b16 %v2073, %v2071
    %v2134 = vpack.c.b16 %v2076, %v2074
    %v2135 = vpack.c.b16 %v2077, %v2075
    %v2136 = vpack.c.b16 %v2080, %v2078
    %v2137 = vpack.c.b16 %v2081, %v2079
    %v2138 = vpack.c.b16 %v2084, %v2082
    %v2139 = vpack.c.b16 %v2085, %v2083
    %v2140 = vpack.c.b16 %v2088, %v2086
    %v2141 = vpack.c.b16 %v2089, %v2087
    %v2142 = vpack.c.b16 %v2092, %v2090
    %v2143 = vpack.c.b16 %v2093, %v2091
    %vm2169 = vcmask 588800
    %v2171 = vsel %vm2169, %v2095, 0
    %v2174 = vsel %vm2169, %v2097, 0
    %v2177 = vsel %vm2169, %v2099, 0
    %v2180 = vsel %vm2169, %v2101, 0
    %v2183 = vsel %vm2169, %v2103, 0
    %v2186 = vsel %vm2169, %v2105, 0
    %v2189 = vsel %vm2169, %v2107, 0
    %v2192 = vsel %vm2169, %v2109, 0
    %v2195 = vsel %vm2169, %v2111, 0
    %v2198 = vsel %vm2169, %v2113, 0
    %v2201 = vsel %vm2169, %v2115, 0
    %v2204 = vsel %vm2169, %v2117, 0
    %v2207 = vsel %vm2169, %v2119, 0
    %v2210 = vsel %vm2169, %v2121, 0
    %v2213 = vsel %vm2169, %v2123, 0
    %v2216 = vsel %vm2169, %v2125, 0
    %v2219 = vsel %vm2169, %v2127, 0
    %v2222 = vsel %vm2169, %v2129, 0
    %v2225 = vsel %vm2169, %v2131, 0
    %v2228 = vsel %vm2169, %v2133, 0
    %v2231 = vsel %vm2169, %v2135, 0
    %v2234 = vsel %vm2169, %v2137, 0
    %v2237 = vsel %vm2169, %v2139, 0
    %v2240 = vsel %vm2169, %v2141, 0
    %v2243 = vsel %vm2169, %v2143, 0
    %vm2245 = vcmask 1043456
    %v2247 = vsel %vm2245, %v1592, 0
    %v2250 = vsel %vm2245, %v1593, 0
    %2252 = vmatprep.subr.bf16.mxu0 %v1583
    %2253 = vmatpush1.bf16.msra.mxu0 %v1582
    %2254 = vmatprep.subr.bf16.mxu0 %v1581
    %2255 = vmatpush1.bf16.msra.mxu0 %v1580
    %2256 = vmatprep.subr.bf16.mxu0 %v1579
    %2257 = vmatpush1.bf16.msra.mxu0 %v1578
    %2258 = vmatprep.subr.bf16.mxu0 %v1577
    %2259 = vmatpush1.bf16.msra.mxu0 %v1576
    %2260 = vmatprep.subr.bf16.mxu0 %v1575
    %2261 = vmatpush1.bf16.msra.mxu0 %v1574
    %2262 = vmatprep.subr.bf16.mxu0 %v1573
    %2263 = vmatpush1.bf16.msra.mxu0 %v1572
    %2264 = vmatprep.subr.bf16.mxu0 %v1571
    %2265 = vmatpush1.bf16.msra.mxu0 %v1570
    %2266 = vmatprep.subr.bf16.mxu0 %v1569
    %2267 = vmatpush1.bf16.msra.mxu0 %v1568
    %2268 = vmatprep.subr.bf16.mxu0 0
    %2269 = vmatpush2.bf16.msra.mxu0 0
    %2270 = vmatprep.subr.bf16.mxu0 0
    %2271 = vmatpush2.bf16.msra.mxu0 0
    %2272 = vmatprep.subr.bf16.mxu0 0
    %2273 = vmatpush2.bf16.msra.mxu0 0
    %2274 = vmatprep.subr.bf16.mxu0 %v2250
    %2275 = vmatpush2.bf16.msra.mxu0 %v2247
    %2276 = vmatprep.subr.bf16.mxu0 %v1591
    %2277 = vmatpush2.bf16.msra.mxu0 %v1590
    %2278 = vmatprep.subr.bf16.mxu0 %v1589
    %2279 = vmatpush2.bf16.msra.mxu0 %v1588
    %2280 = vmatprep.subr.bf16.mxu0 %v1587
    %2281 = vmatpush2.bf16.msra.mxu0 %v1586
    %2282 = vmatprep.subr.bf16.mxu0 %v1585
    %2283 = vmatpush2.bf16.msra.mxu0 %v1584
    %2284 = vmatprep.mubr.bf16.mxu0 %v2171
    %2285 = vmatmul.mubr.bf16.gmra.mxu0 %v2094
    %v2286 = vpop.f32.mrf.mxu0
    %v2287 = vadd.f32 %v1697, %v2286
    %v2288 = vpop.f32.mrf.mxu0
    %v2289 = vadd.f32 %v1697, %v2288
    %v2290 = vpop.f32.mrf.mxu0
    %v2291 = vadd.f32 %v1702, %v2290
    %v2292 = vpop.f32.mrf.mxu0
    %v2293 = vadd.f32 %v1702, %v2292
    %2294 = vmatprep.mubr.bf16.mxu0 %v2174
    %2295 = vmatmul.mubr.bf16.gmra.mxu0 %v2096
    %v2296 = vpop.f32.mrf.mxu0
    %v2297 = vadd.f32 %v1707, %v2296
    %v2298 = vpop.f32.mrf.mxu0
    %v2299 = vadd.f32 %v1707, %v2298
    %v2300 = vpop.f32.mrf.mxu0
    %v2301 = vadd.f32 %v1712, %v2300
    %v2302 = vpop.f32.mrf.mxu0
    %v2303 = vadd.f32 %v1712, %v2302
    %2304 = vmatprep.mubr.bf16.mxu0 %v2177
    %2305 = vmatmul.mubr.bf16.gmra.mxu0 %v2098
    %v2306 = vpop.f32.mrf.mxu0
    %v2307 = vadd.f32 %v1717, %v2306
    %v2308 = vpop.f32.mrf.mxu0
    %v2309 = vadd.f32 %v1717, %v2308
    %v2310 = vpop.f32.mrf.mxu0
    %v2311 = vadd.f32 %v1722, %v2310
    %v2312 = vpop.f32.mrf.mxu0
    %v2313 = vadd.f32 %v1722, %v2312
    %2314 = vmatprep.mubr.bf16.mxu0 %v2180
    %2315 = vmatmul.mubr.bf16.gmra.mxu0 %v2100
    %v2316 = vpop.f32.mrf.mxu0
    %v2317 = vadd.f32 %v1727, %v2316
    %v2318 = vpop.f32.mrf.mxu0
    %v2319 = vadd.f32 %v1727, %v2318
    %v2320 = vpop.f32.mrf.mxu0
    %v2321 = vadd.f32 %v1732, %v2320
    %v2322 = vpop.f32.mrf.mxu0
    %v2323 = vadd.f32 %v1732, %v2322
    %2324 = vmatprep.mubr.bf16.mxu0 %v2183
    %2325 = vmatmul.mubr.bf16.gmra.mxu0 %v2102
    %v2326 = vpop.f32.mrf.mxu0
    %v2327 = vadd.f32 %v1737, %v2326
    %v2328 = vpop.f32.mrf.mxu0
    %v2329 = vadd.f32 %v1737, %v2328
    %v2330 = vpop.f32.mrf.mxu0
    %v2331 = vadd.f32 %v1742, %v2330
    %v2332 = vpop.f32.mrf.mxu0
    %v2333 = vadd.f32 %v1742, %v2332
    %2334 = vmatprep.mubr.bf16.mxu0 %v2186
    %2335 = vmatmul.mubr.bf16.gmra.mxu0 %v2104
    %v2336 = vpop.f32.mrf.mxu0
    %v2337 = vadd.f32 %v1747, %v2336
    %v2338 = vpop.f32.mrf.mxu0
    %v2339 = vadd.f32 %v1747, %v2338
    %v2340 = vpop.f32.mrf.mxu0
    %v2341 = vadd.f32 %v1752, %v2340
    %v2342 = vpop.f32.mrf.mxu0
    %v2343 = vadd.f32 %v1752, %v2342
    %2344 = vmatprep.mubr.bf16.mxu0 %v2189
    %2345 = vmatmul.mubr.bf16.gmra.mxu0 %v2106
    %v2346 = vpop.f32.mrf.mxu0
    %v2347 = vadd.f32 %v1757, %v2346
    %v2348 = vpop.f32.mrf.mxu0
    %v2349 = vadd.f32 %v1757, %v2348
    %v2350 = vpop.f32.mrf.mxu0
    %v2351 = vadd.f32 %v1762, %v2350
    %v2352 = vpop.f32.mrf.mxu0
    %v2353 = vadd.f32 %v1762, %v2352
    %2354 = vmatprep.mubr.bf16.mxu0 %v2192
    %2355 = vmatmul.mubr.bf16.gmra.mxu0 %v2108
    %v2356 = vpop.f32.mrf.mxu0
    %v2357 = vadd.f32 %v1767, %v2356
    %v2358 = vpop.f32.mrf.mxu0
    %v2359 = vadd.f32 %v1767, %v2358
    %v2360 = vpop.f32.mrf.mxu0
    %v2361 = vadd.f32 %v1772, %v2360
    %v2362 = vpop.f32.mrf.mxu0
    %v2363 = vadd.f32 %v1772, %v2362
    %2364 = vmatprep.mubr.bf16.mxu0 %v2195
    %2365 = vmatmul.mubr.bf16.gmra.mxu0 %v2110
    %v2366 = vpop.f32.mrf.mxu0
    %v2367 = vadd.f32 %v1777, %v2366
    %v2368 = vpop.f32.mrf.mxu0
    %v2369 = vadd.f32 %v1777, %v2368
    %v2370 = vpop.f32.mrf.mxu0
    %v2371 = vadd.f32 %v1782, %v2370
    %v2372 = vpop.f32.mrf.mxu0
    %v2373 = vadd.f32 %v1782, %v2372
    %2374 = vmatprep.mubr.bf16.mxu0 %v2198
    %2375 = vmatmul.mubr.bf16.gmra.mxu0 %v2112
    %v2376 = vpop.f32.mrf.mxu0
    %v2377 = vadd.f32 %v1787, %v2376
    %v2378 = vpop.f32.mrf.mxu0
    %v2379 = vadd.f32 %v1787, %v2378
    %v2380 = vpop.f32.mrf.mxu0
    %v2381 = vadd.f32 %v1792, %v2380
    %v2382 = vpop.f32.mrf.mxu0
    %v2383 = vadd.f32 %v1792, %v2382
    %2384 = vmatprep.mubr.bf16.mxu0 %v2201
    %2385 = vmatmul.mubr.bf16.gmra.mxu0 %v2114
    %v2386 = vpop.f32.mrf.mxu0
    %v2387 = vadd.f32 %v1797, %v2386
    %v2388 = vpop.f32.mrf.mxu0
    %v2389 = vadd.f32 %v1797, %v2388
    %v2390 = vpop.f32.mrf.mxu0
    %v2391 = vadd.f32 %v1802, %v2390
    %v2392 = vpop.f32.mrf.mxu0
    %v2393 = vadd.f32 %v1802, %v2392
    %2394 = vmatprep.mubr.bf16.mxu0 %v2204
    %2395 = vmatmul.mubr.bf16.gmra.mxu0 %v2116
    %v2396 = vpop.f32.mrf.mxu0
    %v2397 = vadd.f32 %v1807, %v2396
    %v2398 = vpop.f32.mrf.mxu0
    %v2399 = vadd.f32 %v1807, %v2398
    %v2400 = vpop.f32.mrf.mxu0
    %v2401 = vadd.f32 %v1812, %v2400
    %v2402 = vpop.f32.mrf.mxu0
    %v2403 = vadd.f32 %v1812, %v2402
    %2404 = vmatprep.mubr.bf16.mxu0 %v2207
    %2405 = vmatmul.mubr.bf16.gmra.mxu0 %v2118
    %v2406 = vpop.f32.mrf.mxu0
    %v2407 = vadd.f32 %v1817, %v2406
    %v2408 = vpop.f32.mrf.mxu0
    %v2409 = vadd.f32 %v1817, %v2408
    %v2410 = vpop.f32.mrf.mxu0
    %v2411 = vadd.f32 %v1822, %v2410
    %v2412 = vpop.f32.mrf.mxu0
    %v2413 = vadd.f32 %v1822, %v2412
    %2414 = vmatprep.mubr.bf16.mxu0 %v2210
    %2415 = vmatmul.mubr.bf16.gmra.mxu0 %v2120
    %v2416 = vpop.f32.mrf.mxu0
    %v2417 = vadd.f32 %v1827, %v2416
    %v2418 = vpop.f32.mrf.mxu0
    %v2419 = vadd.f32 %v1827, %v2418
    %v2420 = vpop.f32.mrf.mxu0
    %v2421 = vadd.f32 %v1832, %v2420
    %v2422 = vpop.f32.mrf.mxu0
    %v2423 = vadd.f32 %v1832, %v2422
    %2424 = vmatprep.mubr.bf16.mxu0 %v2213
    %2425 = vmatmul.mubr.bf16.gmra.mxu0 %v2122
    %v2426 = vpop.f32.mrf.mxu0
    %v2427 = vadd.f32 %v1837, %v2426
    %v2428 = vpop.f32.mrf.mxu0
    %v2429 = vadd.f32 %v1837, %v2428
    %v2430 = vpop.f32.mrf.mxu0
    %v2431 = vadd.f32 %v1842, %v2430
    %v2432 = vpop.f32.mrf.mxu0
    %v2433 = vadd.f32 %v1842, %v2432
    %2434 = vmatprep.mubr.bf16.mxu0 %v2216
    %2435 = vmatmul.mubr.bf16.gmra.mxu0 %v2124
    %v2436 = vpop.f32.mrf.mxu0
    %v2437 = vadd.f32 %v1847, %v2436
    %v2438 = vpop.f32.mrf.mxu0
    %v2439 = vadd.f32 %v1847, %v2438
    %v2440 = vpop.f32.mrf.mxu0
    %v2441 = vadd.f32 %v1852, %v2440
    %v2442 = vpop.f32.mrf.mxu0
    %v2443 = vadd.f32 %v1852, %v2442
    %2444 = vmatprep.mubr.bf16.mxu0 %v2219
    %2445 = vmatmul.mubr.bf16.gmra.mxu0 %v2126
    %v2446 = vpop.f32.mrf.mxu0
    %v2447 = vadd.f32 %v1857, %v2446
    %v2448 = vpop.f32.mrf.mxu0
    %v2449 = vadd.f32 %v1857, %v2448
    %v2450 = vpop.f32.mrf.mxu0
    %v2451 = vadd.f32 %v1862, %v2450
    %v2452 = vpop.f32.mrf.mxu0
    %v2453 = vadd.f32 %v1862, %v2452
    %2454 = vmatprep.mubr.bf16.mxu0 %v2222
    %2455 = vmatmul.mubr.bf16.gmra.mxu0 %v2128
    %v2456 = vpop.f32.mrf.mxu0
    %v2457 = vadd.f32 %v1867, %v2456
    %v2458 = vpop.f32.mrf.mxu0
    %v2459 = vadd.f32 %v1867, %v2458
    %v2460 = vpop.f32.mrf.mxu0
    %v2461 = vadd.f32 %v1872, %v2460
    %v2462 = vpop.f32.mrf.mxu0
    %v2463 = vadd.f32 %v1872, %v2462
    %2464 = vmatprep.mubr.bf16.mxu0 %v2225
    %2465 = vmatmul.mubr.bf16.gmra.mxu0 %v2130
    %v2466 = vpop.f32.mrf.mxu0
    %v2467 = vadd.f32 %v1877, %v2466
    %v2468 = vpop.f32.mrf.mxu0
    %v2469 = vadd.f32 %v1877, %v2468
    %v2470 = vpop.f32.mrf.mxu0
    %v2471 = vadd.f32 %v1882, %v2470
    %v2472 = vpop.f32.mrf.mxu0
    %v2473 = vadd.f32 %v1882, %v2472
    %2474 = vmatprep.mubr.bf16.mxu0 %v2228
    %2475 = vmatmul.mubr.bf16.gmra.mxu0 %v2132
    %v2476 = vpop.f32.mrf.mxu0
    %v2477 = vadd.f32 %v1887, %v2476
    %v2478 = vpop.f32.mrf.mxu0
    %v2479 = vadd.f32 %v1887, %v2478
    %v2480 = vpop.f32.mrf.mxu0
    %v2481 = vadd.f32 %v1892, %v2480
    %v2482 = vpop.f32.mrf.mxu0
    %v2483 = vadd.f32 %v1892, %v2482
    %2484 = vmatprep.mubr.bf16.mxu0 %v2231
    %2485 = vmatmul.mubr.bf16.gmra.mxu0 %v2134
    %v2486 = vpop.f32.mrf.mxu0
    %v2487 = vadd.f32 %v1897, %v2486
    %v2488 = vpop.f32.mrf.mxu0
    %v2489 = vadd.f32 %v1897, %v2488
    %v2490 = vpop.f32.mrf.mxu0
    %v2491 = vadd.f32 %v1902, %v2490
    %v2492 = vpop.f32.mrf.mxu0
    %v2493 = vadd.f32 %v1902, %v2492
    %2494 = vmatprep.mubr.bf16.mxu0 %v2234
    %2495 = vmatmul.mubr.bf16.gmra.mxu0 %v2136
    %v2496 = vpop.f32.mrf.mxu0
    %v2497 = vadd.f32 %v1907, %v2496
    %v2498 = vpop.f32.mrf.mxu0
    %v2499 = vadd.f32 %v1907, %v2498
    %v2500 = vpop.f32.mrf.mxu0
    %v2501 = vadd.f32 %v1912, %v2500
    %v2502 = vpop.f32.mrf.mxu0
    %v2503 = vadd.f32 %v1912, %v2502
    %2504 = vmatprep.mubr.bf16.mxu0 %v2237
    %2505 = vmatmul.mubr.bf16.gmra.mxu0 %v2138
    %v2506 = vpop.f32.mrf.mxu0
    %v2507 = vadd.f32 %v1917, %v2506
    %v2508 = vpop.f32.mrf.mxu0
    %v2509 = vadd.f32 %v1917, %v2508
    %v2510 = vpop.f32.mrf.mxu0
    %v2511 = vadd.f32 %v1922, %v2510
    %v2512 = vpop.f32.mrf.mxu0
    %v2513 = vadd.f32 %v1922, %v2512
    %2514 = vmatprep.mubr.bf16.mxu0 %v2240
    %2515 = vmatmul.mubr.bf16.gmra.mxu0 %v2140
    %v2516 = vpop.f32.mrf.mxu0
    %v2517 = vadd.f32 %v1927, %v2516
    %v2518 = vpop.f32.mrf.mxu0
    %v2519 = vadd.f32 %v1927, %v2518
    %v2520 = vpop.f32.mrf.mxu0
    %v2521 = vadd.f32 %v1932, %v2520
    %v2522 = vpop.f32.mrf.mxu0
    %v2523 = vadd.f32 %v1932, %v2522
    %2524 = vmatprep.mubr.bf16.mxu0 %v2243
    %2525 = vmatmul.mubr.bf16.gmra.mxu0 %v2142
    %v2526 = vpop.f32.mrf.mxu0
    %v2527 = vadd.f32 %v1937, %v2526
    %v2528 = vpop.f32.mrf.mxu0
    %v2529 = vadd.f32 %v1937, %v2528
    %v2530 = vpop.f32.mrf.mxu0
    %v2531 = vadd.f32 %v1942, %v2530
    %v2532 = vpop.f32.mrf.mxu0
    %v2533 = vadd.f32 %v1942, %v2532
    %2534 = vdwg.mxu0
    %v2535 = vmax.f32 %v2287, 0.0
    %v2536 = vmax.f32 %v2289, 0.0
    %v2537 = vmax.f32 %v2291, 0.0
    %v2538 = vmax.f32 %v2293, 0.0
    %v2539 = vmax.f32 %v2297, 0.0
    %v2540 = vmax.f32 %v2299, 0.0
    %v2541 = vmax.f32 %v2301, 0.0
    %v2542 = vmax.f32 %v2303, 0.0
    %v2543 = vmax.f32 %v2307, 0.0
    %v2544 = vmax.f32 %v2309, 0.0
    %v2545 = vmax.f32 %v2311, 0.0
    %v2546 = vmax.f32 %v2313, 0.0
    %v2547 = vmax.f32 %v2317, 0.0
    %v2548 = vmax.f32 %v2319, 0.0
    %v2549 = vmax.f32 %v2321, 0.0
    %v2550 = vmax.f32 %v2323, 0.0
    %v2551 = vmax.f32 %v2327, 0.0
    %v2552 = vmax.f32 %v2329, 0.0
    %v2553 = vmax.f32 %v2331, 0.0
    %v2554 = vmax.f32 %v2333, 0.0
    %v2555 = vmax.f32 %v2337, 0.0
    %v2556 = vmax.f32 %v2339, 0.0
    %v2557 = vmax.f32 %v2341, 0.0
    %v2558 = vmax.f32 %v2343, 0.0
    %v2559 = vmax.f32 %v2347, 0.0
    %v2560 = vmax.f32 %v2349, 0.0
    %v2561 = vmax.f32 %v2351, 0.0
    %v2562 = vmax.f32 %v2353, 0.0
    %v2563 = vmax.f32 %v2357, 0.0
    %v2564 = vmax.f32 %v2359, 0.0
    %v2565 = vmax.f32 %v2361, 0.0
    %v2566 = vmax.f32 %v2363, 0.0
    %v2567 = vmax.f32 %v2367, 0.0
    %v2568 = vmax.f32 %v2369, 0.0
    %v2569 = vmax.f32 %v2371, 0.0
    %v2570 = vmax.f32 %v2373, 0.0
    %v2571 = vmax.f32 %v2377, 0.0
    %v2572 = vmax.f32 %v2379, 0.0
    %v2573 = vmax.f32 %v2381, 0.0
    %v2574 = vmax.f32 %v2383, 0.0
    %v2575 = vmax.f32 %v2387, 0.0
    %v2576 = vmax.f32 %v2389, 0.0
    %v2577 = vmax.f32 %v2391, 0.0
    %v2578 = vmax.f32 %v2393, 0.0
    %v2579 = vmax.f32 %v2397, 0.0
    %v2580 = vmax.f32 %v2399, 0.0
    %v2581 = vmax.f32 %v2401, 0.0
    %v2582 = vmax.f32 %v2403, 0.0
    %v2583 = vmax.f32 %v2407, 0.0
    %v2584 = vmax.f32 %v2409, 0.0
    %v2585 = vmax.f32 %v2411, 0.0
    %v2586 = vmax.f32 %v2413, 0.0
    %v2587 = vmax.f32 %v2417, 0.0
    %v2588 = vmax.f32 %v2419, 0.0
    %v2589 = vmax.f32 %v2421, 0.0
    %v2590 = vmax.f32 %v2423, 0.0
    %v2591 = vmax.f32 %v2427, 0.0
    %v2592 = vmax.f32 %v2429, 0.0
    %v2593 = vmax.f32 %v2431, 0.0
    %v2594 = vmax.f32 %v2433, 0.0
    %v2595 = vmax.f32 %v2437, 0.0
    %v2596 = vmax.f32 %v2439, 0.0
    %v2597 = vmax.f32 %v2441, 0.0
    %v2598 = vmax.f32 %v2443, 0.0
    %v2599 = vmax.f32 %v2447, 0.0
    %v2600 = vmax.f32 %v2449, 0.0
    %v2601 = vmax.f32 %v2451, 0.0
    %v2602 = vmax.f32 %v2453, 0.0
    %v2603 = vmax.f32 %v2457, 0.0
    %v2604 = vmax.f32 %v2459, 0.0
    %v2605 = vmax.f32 %v2461, 0.0
    %v2606 = vmax.f32 %v2463, 0.0
    %v2607 = vmax.f32 %v2467, 0.0
    %v2608 = vmax.f32 %v2469, 0.0
    %v2609 = vmax.f32 %v2471, 0.0
    %v2610 = vmax.f32 %v2473, 0.0
    %v2611 = vmax.f32 %v2477, 0.0
    %v2612 = vmax.f32 %v2479, 0.0
    %v2613 = vmax.f32 %v2481, 0.0
    %v2614 = vmax.f32 %v2483, 0.0
    %v2615 = vmax.f32 %v2487, 0.0
    %v2616 = vmax.f32 %v2489, 0.0
    %v2617 = vmax.f32 %v2491, 0.0
    %v2618 = vmax.f32 %v2493, 0.0
    %v2619 = vmax.f32 %v2497, 0.0
    %v2620 = vmax.f32 %v2499, 0.0
    %v2621 = vmax.f32 %v2501, 0.0
    %v2622 = vmax.f32 %v2503, 0.0
    %v2623 = vmax.f32 %v2507, 0.0
    %v2624 = vmax.f32 %v2509, 0.0
    %v2625 = vmax.f32 %v2511, 0.0
    %v2626 = vmax.f32 %v2513, 0.0
    %v2627 = vmax.f32 %v2517, 0.0
    %v2628 = vmax.f32 %v2519, 0.0
    %v2629 = vmax.f32 %v2521, 0.0
    %v2630 = vmax.f32 %v2523, 0.0
    %v2631 = vmax.f32 %v2527, 0.0
    %v2632 = vmax.f32 %v2529, 0.0
    %v2633 = vmax.f32 %v2531, 0.0
    %v2634 = vmax.f32 %v2533, 0.0
    %v2635 = vpack.c.bf16 %v2537, %v2535
    %v2636 = vpack.c.bf16 %v2538, %v2536
    %v2637 = vpack.c.bf16 %v2541, %v2539
    %v2638 = vpack.c.bf16 %v2542, %v2540
    %v2639 = vpack.c.bf16 %v2545, %v2543
    %v2640 = vpack.c.bf16 %v2546, %v2544
    %v2641 = vpack.c.bf16 %v2549, %v2547
    %v2642 = vpack.c.bf16 %v2550, %v2548
    %v2643 = vpack.c.bf16 %v2553, %v2551
    %v2644 = vpack.c.bf16 %v2554, %v2552
    %v2645 = vpack.c.bf16 %v2557, %v2555
    %v2646 = vpack.c.bf16 %v2558, %v2556
    %v2647 = vpack.c.bf16 %v2561, %v2559
    %v2648 = vpack.c.bf16 %v2562, %v2560
    %v2649 = vpack.c.bf16 %v2565, %v2563
    %v2650 = vpack.c.bf16 %v2566, %v2564
    %v2651 = vpack.c.bf16 %v2569, %v2567
    %v2652 = vpack.c.bf16 %v2570, %v2568
    %v2653 = vpack.c.bf16 %v2573, %v2571
    %v2654 = vpack.c.bf16 %v2574, %v2572
    %v2655 = vpack.c.bf16 %v2577, %v2575
    %v2656 = vpack.c.bf16 %v2578, %v2576
    %v2657 = vpack.c.bf16 %v2581, %v2579
    %v2658 = vpack.c.bf16 %v2582, %v2580
    %v2659 = vpack.c.bf16 %v2585, %v2583
    %v2660 = vpack.c.bf16 %v2586, %v2584
    %v2661 = vpack.c.bf16 %v2589, %v2587
    %v2662 = vpack.c.bf16 %v2590, %v2588
    %v2663 = vpack.c.bf16 %v2593, %v2591
    %v2664 = vpack.c.bf16 %v2594, %v2592
    %v2665 = vpack.c.bf16 %v2597, %v2595
    %v2666 = vpack.c.bf16 %v2598, %v2596
    %v2667 = vpack.c.bf16 %v2601, %v2599
    %v2668 = vpack.c.bf16 %v2602, %v2600
    %v2669 = vpack.c.bf16 %v2605, %v2603
    %v2670 = vpack.c.bf16 %v2606, %v2604
    %v2671 = vpack.c.bf16 %v2609, %v2607
    %v2672 = vpack.c.bf16 %v2610, %v2608
    %v2673 = vpack.c.bf16 %v2613, %v2611
    %v2674 = vpack.c.bf16 %v2614, %v2612
    %v2675 = vpack.c.bf16 %v2617, %v2615
    %v2676 = vpack.c.bf16 %v2618, %v2616
    %v2677 = vpack.c.bf16 %v2621, %v2619
    %v2678 = vpack.c.bf16 %v2622, %v2620
    %v2679 = vpack.c.bf16 %v2625, %v2623
    %v2680 = vpack.c.bf16 %v2626, %v2624
    %v2681 = vpack.c.bf16 %v2629, %v2627
    %v2682 = vpack.c.bf16 %v2630, %v2628
    %v2683 = vpack.c.bf16 %v2633, %v2631
    %v2684 = vpack.c.bf16 %v2634, %v2632
    %v2685 = vld [vmem:[%s9] sm:$0xff]
    %v2686 = vld [vmem:[%s9 + $0x8] sm:$0xff]
    %v2687 = vld [vmem:[%s9 + $0x10] sm:$0xff]
    %v2688 = vld [vmem:[%s9 + $0x18] sm:$0xff]
    %v2689 = vld [vmem:[%s9 + $0x20] sm:$0xff]
    %v2690 = vld [vmem:[%s9 + $0x28] sm:$0xff]
    %v2691 = vld [vmem:[%s9 + $0x30] sm:$0xff]
    %v2692 = vld [vmem:[%s9 + $0x38] sm:$0xff]
    %v2693 = vld [vmem:[%s9 + $0x40] sm:$0xff]
    %v2694 = vld [vmem:[%s9 + $0x48] sm:$0xff]
    %v2695 = vld [vmem:[%s9 + $0x50] sm:$0xff]
    %v2696 = vld [vmem:[%s9 + $0x58] sm:$0xff]
    %v2697 = vld [vmem:[%s9 + $0x60] sm:$0xff]
    %v2698 = vld [vmem:[%s9 + $0x68] sm:$0xff]
    %v2699 = vld [vmem:[%s9 + $0x70] sm:$0xff]
    %v2700 = vld [vmem:[%s9 + $0x78] sm:$0xff]
    %v2701 = vld [vmem:[%s9 + $0x80] sm:$0xff]
    %v2702 = vld [vmem:[%s9 + $0x88] sm:$0xff]
    %v2703 = vld [vmem:[%s9 + $0x90] sm:$0xff]
    %v2704 = vld [vmem:[%s9 + $0x98] sm:$0xff]
    %v2705 = vld [vmem:[%s9 + $0xa0] sm:$0xff]
    %v2706 = vld [vmem:[%s9 + $0xa8] sm:$0xff]
    %v2707 = vld [vmem:[%s9 + $0xb0] sm:$0xff]
    %v2708 = vld [vmem:[%s9 + $0xb8] sm:$0xff]
    %v2709 = vld [vmem:[%s9 + $0xc0] sm:$0xff]
    %v2710 = vld [vmem:[%s9 + $0xc8] sm:$0xff]
    %v2711 = vld [vmem:[%s9 + $0xd0] sm:$0xff]
    %v2712 = vld [vmem:[%s9 + $0xd8] sm:$0xff]
    %v2713 = vld [vmem:[%s9 + $0xe0] sm:$0xff]
    %v2714 = vld [vmem:[%s9 + $0xe8] sm:$0xff]
    %v2715 = vld [vmem:[%s9 + $0xf0] sm:$0xff]
    %v2716 = vld [vmem:[%s9 + $0xf8] sm:$0xff]
    %v2717 = vld [vmem:[%s9 + $0x100] sm:$0xff]
    %v2718 = vld [vmem:[%s9 + $0x108] sm:$0xff]
    %v2719 = vld [vmem:[%s9 + $0x110] sm:$0xff]
    %v2720 = vld [vmem:[%s9 + $0x118] sm:$0xff]
    %v2721 = vld [vmem:[%s9 + $0x120] sm:$0xff]
    %v2722 = vld [vmem:[%s9 + $0x128] sm:$0xff]
    %v2723 = vld [vmem:[%s9 + $0x130] sm:$0xff]
    %v2724 = vld [vmem:[%s9 + $0x138] sm:$0xff]
    %v2725 = vld [vmem:[%s9 + $0x140] sm:$0xff]
    %v2726 = vld [vmem:[%s9 + $0x148] sm:$0xff]
    %v2727 = vld [vmem:[%s9 + $0x150] sm:$0xff]
    %v2728 = vld [vmem:[%s9 + $0x158] sm:$0xff]
    %v2729 = vld [vmem:[%s9 + $0x160] sm:$0xff]
    %v2730 = vld [vmem:[%s9 + $0x168] sm:$0xff]
    %v2731 = vld [vmem:[%s9 + $0x170] sm:$0xff]
    %v2732 = vld [vmem:[%s9 + $0x178] sm:$0xff]
    %v2733 = vld [vmem:[%s9 + $0x180] sm:$0xff]
    %v2734 = vld [vmem:[%s9 + $0x188] sm:$0xff]
    %v2735 = vld [vmem:[%s10] sm:$0xff]
    %v2736 = vld [vmem:[%s10 + $0x8] sm:$0xff]
    %v2737 = vld [vmem:[%s10 + $0x10] sm:$0xff]
    %v2738 = vld [vmem:[%s10 + $0x18] sm:$0xff]
    %v2739 = vld [vmem:[%s10 + $0x20] sm:$0xff]
    %v2740 = vld [vmem:[%s10 + $0x28] sm:$0xff]
    %v2741 = vld [vmem:[%s10 + $0x30] sm:$0xff]
    %v2742 = vld [vmem:[%s10 + $0x38] sm:$0xff]
    %v2743 = vld [vmem:[%s10 + $0x40] sm:$0xff]
    %v2744 = vld [vmem:[%s10 + $0x48] sm:$0xff]
    %v2745 = vld [vmem:[%s10 + $0x50] sm:$0xff]
    %v2746 = vld [vmem:[%s10 + $0x58] sm:$0xff]
    %v2747 = vld [vmem:[%s10 + $0x60] sm:$0xff]
    %v2748 = vld [vmem:[%s10 + $0x68] sm:$0xff]
    %v2749 = vld [vmem:[%s10 + $0x70] sm:$0xff]
    %v2750 = vld [vmem:[%s10 + $0x78] sm:$0xff]
    %v2751 = vld [vmem:[%s10 + $0x80] sm:$0xff]
    %v2752 = vld [vmem:[%s10 + $0x88] sm:$0xff]
    %v2753 = vld [vmem:[%s10 + $0x90] sm:$0xff]
    %v2754 = vld [vmem:[%s10 + $0x98] sm:$0xff]
    %v2755 = vld [vmem:[%s10 + $0xa0] sm:$0xff]
    %v2756 = vld [vmem:[%s10 + $0xa8] sm:$0xff]
    %v2757 = vld [vmem:[%s10 + $0xb0] sm:$0xff]
    %v2758 = vld [vmem:[%s10 + $0xb8] sm:$0xff]
    %v2759 = vld [vmem:[%s10 + $0xc0] sm:$0xff]
    %2761 = vset.pattern.permute.xlu0 0
    %2762 = vperm.xlu0 %2761, %v2735
    %v2763 = vpop.permute.xlu0 %2762
    %2766 = vset.pattern.permute.xlu0 0
    %2767 = vperm.xlu0 %2766, %v2736
    %v2768 = vpop.permute.xlu0 %2767
    %2771 = vset.pattern.permute.xlu0 0
    %2772 = vperm.xlu0 %2771, %v2737
    %v2773 = vpop.permute.xlu0 %2772
    %2776 = vset.pattern.permute.xlu0 0
    %2777 = vperm.xlu0 %2776, %v2738
    %v2778 = vpop.permute.xlu0 %2777
    %2781 = vset.pattern.permute.xlu0 0
    %2782 = vperm.xlu0 %2781, %v2739
    %v2783 = vpop.permute.xlu0 %2782
    %2786 = vset.pattern.permute.xlu0 0
    %2787 = vperm.xlu0 %2786, %v2740
    %v2788 = vpop.permute.xlu0 %2787
    %2791 = vset.pattern.permute.xlu0 0
    %2792 = vperm.xlu0 %2791, %v2741
    %v2793 = vpop.permute.xlu0 %2792
    %2796 = vset.pattern.permute.xlu0 0
    %2797 = vperm.xlu0 %2796, %v2742
    %v2798 = vpop.permute.xlu0 %2797
    %2801 = vset.pattern.permute.xlu0 0
    %2802 = vperm.xlu0 %2801, %v2743
    %v2803 = vpop.permute.xlu0 %2802
    %2806 = vset.pattern.permute.xlu0 0
    %2807 = vperm.xlu0 %2806, %v2744
    %v2808 = vpop.permute.xlu0 %2807
    %2811 = vset.pattern.permute.xlu0 0
    %2812 = vperm.xlu0 %2811, %v2745
    %v2813 = vpop.permute.xlu0 %2812
    %2816 = vset.pattern.permute.xlu0 0
    %2817 = vperm.xlu0 %2816, %v2746
    %v2818 = vpop.permute.xlu0 %2817
    %2821 = vset.pattern.permute.xlu0 0
    %2822 = vperm.xlu0 %2821, %v2747
    %v2823 = vpop.permute.xlu0 %2822
    %2826 = vset.pattern.permute.xlu0 0
    %2827 = vperm.xlu0 %2826, %v2748
    %v2828 = vpop.permute.xlu0 %2827
    %2831 = vset.pattern.permute.xlu0 0
    %2832 = vperm.xlu0 %2831, %v2749
    %v2833 = vpop.permute.xlu0 %2832
    %2836 = vset.pattern.permute.xlu0 0
    %2837 = vperm.xlu0 %2836, %v2750
    %v2838 = vpop.permute.xlu0 %2837
    %2841 = vset.pattern.permute.xlu0 0
    %2842 = vperm.xlu0 %2841, %v2751
    %v2843 = vpop.permute.xlu0 %2842
    %2846 = vset.pattern.permute.xlu0 0
    %2847 = vperm.xlu0 %2846, %v2752
    %v2848 = vpop.permute.xlu0 %2847
    %2851 = vset.pattern.permute.xlu0 0
    %2852 = vperm.xlu0 %2851, %v2753
    %v2853 = vpop.permute.xlu0 %2852
    %2856 = vset.pattern.permute.xlu0 0
    %2857 = vperm.xlu0 %2856, %v2754
    %v2858 = vpop.permute.xlu0 %2857
    %2861 = vset.pattern.permute.xlu0 0
    %2862 = vperm.xlu0 %2861, %v2755
    %v2863 = vpop.permute.xlu0 %2862
    %2866 = vset.pattern.permute.xlu0 0
    %2867 = vperm.xlu0 %2866, %v2756
    %v2868 = vpop.permute.xlu0 %2867
    %2871 = vset.pattern.permute.xlu0 0
    %2872 = vperm.xlu0 %2871, %v2757
    %v2873 = vpop.permute.xlu0 %2872
    %2876 = vset.pattern.permute.xlu0 0
    %2877 = vperm.xlu0 %2876, %v2758
    %v2878 = vpop.permute.xlu0 %2877
    %2881 = vset.pattern.permute.xlu0 0
    %2882 = vperm.xlu0 %2881, %v2759
    %v2883 = vpop.permute.xlu0 %2882
    %v2935 = vunpack.c.l.b16 %v2685
    %v2936 = vunpack.c.h.b16 %v2685
    %v2937 = vunpack.c.l.b16 %v2686
    %v2938 = vunpack.c.h.b16 %v2686
    %v2939 = vunpack.c.l.b16 %v2687
    %v2940 = vunpack.c.h.b16 %v2687
    %v2941 = vunpack.c.l.b16 %v2688
    %v2942 = vunpack.c.h.b16 %v2688
    %v2943 = vunpack.c.l.b16 %v2689
    %v2944 = vunpack.c.h.b16 %v2689
    %v2945 = vunpack.c.l.b16 %v2690
    %v2946 = vunpack.c.h.b16 %v2690
    %v2947 = vunpack.c.l.b16 %v2691
    %v2948 = vunpack.c.h.b16 %v2691
    %v2949 = vunpack.c.l.b16 %v2692
    %v2950 = vunpack.c.h.b16 %v2692
    %v2951 = vunpack.c.l.b16 %v2693
    %v2952 = vunpack.c.h.b16 %v2693
    %v2953 = vunpack.c.l.b16 %v2694
    %v2954 = vunpack.c.h.b16 %v2694
    %v2955 = vunpack.c.l.b16 %v2695
    %v2956 = vunpack.c.h.b16 %v2695
    %v2957 = vunpack.c.l.b16 %v2696
    %v2958 = vunpack.c.h.b16 %v2696
    %v2959 = vunpack.c.l.b16 %v2697
    %v2960 = vunpack.c.h.b16 %v2697
    %v2961 = vunpack.c.l.b16 %v2698
    %v2962 = vunpack.c.h.b16 %v2698
    %v2963 = vunpack.c.l.b16 %v2699
    %v2964 = vunpack.c.h.b16 %v2699
    %v2965 = vunpack.c.l.b16 %v2700
    %v2966 = vunpack.c.h.b16 %v2700
    %v2967 = vunpack.c.l.b16 %v2701
    %v2968 = vunpack.c.h.b16 %v2701
    %v2969 = vunpack.c.l.b16 %v2702
    %v2970 = vunpack.c.h.b16 %v2702
    %v2971 = vunpack.c.l.b16 %v2703
    %v2972 = vunpack.c.h.b16 %v2703
    %v2973 = vunpack.c.l.b16 %v2704
    %v2974 = vunpack.c.h.b16 %v2704
    %v2975 = vunpack.c.l.b16 %v2705
    %v2976 = vunpack.c.h.b16 %v2705
    %v2977 = vunpack.c.l.b16 %v2706
    %v2978 = vunpack.c.h.b16 %v2706
    %v2979 = vunpack.c.l.b16 %v2707
    %v2980 = vunpack.c.h.b16 %v2707
    %v2981 = vunpack.c.l.b16 %v2708
    %v2982 = vunpack.c.h.b16 %v2708
    %v2983 = vunpack.c.l.b16 %v2709
    %v2984 = vunpack.c.h.b16 %v2709
    %v2985 = vunpack.c.l.b16 %v2710
    %v2986 = vunpack.c.h.b16 %v2710
    %v2987 = vunpack.c.l.b16 %v2711
    %v2988 = vunpack.c.h.b16 %v2711
    %v2989 = vunpack.c.l.b16 %v2712
    %v2990 = vunpack.c.h.b16 %v2712
    %v2991 = vunpack.c.l.b16 %v2713
    %v2992 = vunpack.c.h.b16 %v2713
    %v2993 = vunpack.c.l.b16 %v2714
    %v2994 = vunpack.c.h.b16 %v2714
    %v2995 = vunpack.c.l.b16 %v2715
    %v2996 = vunpack.c.h.b16 %v2715
    %v2997 = vunpack.c.l.b16 %v2716
    %v2998 = vunpack.c.h.b16 %v2716
    %v2999 = vunpack.c.l.b16 %v2717
    %v3000 = vunpack.c.h.b16 %v2717
    %v3001 = vunpack.c.l.b16 %v2718
    %v3002 = vunpack.c.h.b16 %v2718
    %v3003 = vunpack.c.l.b16 %v2719
    %v3004 = vunpack.c.h.b16 %v2719
    %v3005 = vunpack.c.l.b16 %v2720
    %v3006 = vunpack.c.h.b16 %v2720
    %v3007 = vunpack.c.l.b16 %v2721
    %v3008 = vunpack.c.h.b16 %v2721
    %v3009 = vunpack.c.l.b16 %v2722
    %v3010 = vunpack.c.h.b16 %v2722
    %v3011 = vunpack.c.l.b16 %v2723
    %v3012 = vunpack.c.h.b16 %v2723
    %v3013 = vunpack.c.l.b16 %v2724
    %v3014 = vunpack.c.h.b16 %v2724
    %v3015 = vunpack.c.l.b16 %v2725
    %v3016 = vunpack.c.h.b16 %v2725
    %v3017 = vunpack.c.l.b16 %v2726
    %v3018 = vunpack.c.h.b16 %v2726
    %v3019 = vunpack.c.l.b16 %v2727
    %v3020 = vunpack.c.h.b16 %v2727
    %v3021 = vunpack.c.l.b16 %v2728
    %v3022 = vunpack.c.h.b16 %v2728
    %v3023 = vunpack.c.l.b16 %v2729
    %v3024 = vunpack.c.h.b16 %v2729
    %v3025 = vunpack.c.l.b16 %v2730
    %v3026 = vunpack.c.h.b16 %v2730
    %v3027 = vunpack.c.l.b16 %v2731
    %v3028 = vunpack.c.h.b16 %v2731
    %v3029 = vunpack.c.l.b16 %v2732
    %v3030 = vunpack.c.h.b16 %v2732
    %v3031 = vunpack.c.l.b16 %v2733
    %v3032 = vunpack.c.h.b16 %v2733
    %v3033 = vunpack.c.l.b16 %v2734
    %v3034 = vunpack.c.h.b16 %v2734
    %v3035 = vpack.c.b16 %v2939, %v2935
    %v3036 = vpack.c.b16 %v2940, %v2936
    %v3037 = vpack.c.b16 %v2941, %v2937
    %v3038 = vpack.c.b16 %v2942, %v2938
    %v3039 = vpack.c.b16 %v2947, %v2943
    %v3040 = vpack.c.b16 %v2948, %v2944
    %v3041 = vpack.c.b16 %v2949, %v2945
    %v3042 = vpack.c.b16 %v2950, %v2946
    %v3043 = vpack.c.b16 %v2955, %v2951
    %v3044 = vpack.c.b16 %v2956, %v2952
    %v3045 = vpack.c.b16 %v2957, %v2953
    %v3046 = vpack.c.b16 %v2958, %v2954
    %v3047 = vpack.c.b16 %v2963, %v2959
    %v3048 = vpack.c.b16 %v2964, %v2960
    %v3049 = vpack.c.b16 %v2965, %v2961
    %v3050 = vpack.c.b16 %v2966, %v2962
    %v3051 = vpack.c.b16 %v2971, %v2967
    %v3052 = vpack.c.b16 %v2972, %v2968
    %v3053 = vpack.c.b16 %v2973, %v2969
    %v3054 = vpack.c.b16 %v2974, %v2970
    %v3055 = vpack.c.b16 %v2979, %v2975
    %v3056 = vpack.c.b16 %v2980, %v2976
    %v3057 = vpack.c.b16 %v2981, %v2977
    %v3058 = vpack.c.b16 %v2982, %v2978
    %v3059 = vpack.c.b16 %v2987, %v2983
    %v3060 = vpack.c.b16 %v2988, %v2984
    %v3061 = vpack.c.b16 %v2989, %v2985
    %v3062 = vpack.c.b16 %v2990, %v2986
    %v3063 = vpack.c.b16 %v2995, %v2991
    %v3064 = vpack.c.b16 %v2996, %v2992
    %v3065 = vpack.c.b16 %v2997, %v2993
    %v3066 = vpack.c.b16 %v2998, %v2994
    %v3067 = vpack.c.b16 %v3003, %v2999
    %v3068 = vpack.c.b16 %v3004, %v3000
    %v3069 = vpack.c.b16 %v3005, %v3001
    %v3070 = vpack.c.b16 %v3006, %v3002
    %v3071 = vpack.c.b16 %v3011, %v3007
    %v3072 = vpack.c.b16 %v3012, %v3008
    %v3073 = vpack.c.b16 %v3013, %v3009
    %v3074 = vpack.c.b16 %v3014, %v3010
    %v3075 = vpack.c.b16 %v3019, %v3015
    %v3076 = vpack.c.b16 %v3020, %v3016
    %v3077 = vpack.c.b16 %v3021, %v3017
    %v3078 = vpack.c.b16 %v3022, %v3018
    %v3079 = vpack.c.b16 %v3027, %v3023
    %v3080 = vpack.c.b16 %v3028, %v3024
    %v3081 = vpack.c.b16 %v3029, %v3025
    %v3082 = vpack.c.b16 %v3030, %v3026
    %v3083 = vpack.c.b16 %v3031, %v3031
    %v3084 = vpack.c.b16 %v3032, %v3032
    %v3085 = vpack.c.b16 %v3033, %v3033
    %v3086 = vpack.c.b16 %v3034, %v3034
    %vm3126 = vcmask 130048
    %v3128 = vsel %vm3126, %v3038, 0
    %v3131 = vsel %vm3126, %v3042, 0
    %v3134 = vsel %vm3126, %v3046, 0
    %v3137 = vsel %vm3126, %v3050, 0
    %v3140 = vsel %vm3126, %v3054, 0
    %v3143 = vsel %vm3126, %v3058, 0
    %v3146 = vsel %vm3126, %v3062, 0
    %v3149 = vsel %vm3126, %v3066, 0
    %v3152 = vsel %vm3126, %v3070, 0
    %v3155 = vsel %vm3126, %v3074, 0
    %v3158 = vsel %vm3126, %v3078, 0
    %v3161 = vsel %vm3126, %v3082, 0
    %v3164 = vsel %vm3126, %v3086, 0
    %3166 = vmatprep.subr.bf16.mxu0 %v2650
    %3167 = vmatpush1.bf16.msra.mxu0 %v2649
    %3168 = vmatprep.subr.bf16.mxu0 %v2648
    %3169 = vmatpush1.bf16.msra.mxu0 %v2647
    %3170 = vmatprep.subr.bf16.mxu0 %v2646
    %3171 = vmatpush1.bf16.msra.mxu0 %v2645
    %3172 = vmatprep.subr.bf16.mxu0 %v2644
    %3173 = vmatpush1.bf16.msra.mxu0 %v2643
    %3174 = vmatprep.subr.bf16.mxu0 %v2642
    %3175 = vmatpush1.bf16.msra.mxu0 %v2641
    %3176 = vmatprep.subr.bf16.mxu0 %v2640
    %3177 = vmatpush1.bf16.msra.mxu0 %v2639
    %3178 = vmatprep.subr.bf16.mxu0 %v2638
    %3179 = vmatpush1.bf16.msra.mxu0 %v2637
    %3180 = vmatprep.subr.bf16.mxu0 %v2636
    %3181 = vmatpush1.bf16.msra.mxu0 %v2635
    %3182 = vmatprep.subr.bf16.mxu0 %v2666
    %3183 = vmatpush2.bf16.msra.mxu0 %v2665
    %3184 = vmatprep.subr.bf16.mxu0 %v2664
    %3185 = vmatpush2.bf16.msra.mxu0 %v2663
    %3186 = vmatprep.subr.bf16.mxu0 %v2662
    %3187 = vmatpush2.bf16.msra.mxu0 %v2661
    %3188 = vmatprep.subr.bf16.mxu0 %v2660
    %3189 = vmatpush2.bf16.msra.mxu0 %v2659
    %3190 = vmatprep.subr.bf16.mxu0 %v2658
    %3191 = vmatpush2.bf16.msra.mxu0 %v2657
    %3192 = vmatprep.subr.bf16.mxu0 %v2656
    %3193 = vmatpush2.bf16.msra.mxu0 %v2655
    %3194 = vmatprep.subr.bf16.mxu0 %v2654
    %3195 = vmatpush2.bf16.msra.mxu0 %v2653
    %3196 = vmatprep.subr.bf16.mxu0 %v2652
    %3197 = vmatpush2.bf16.msra.mxu0 %v2651
    %3198 = vmatprep.mubr.bf16.mxu0 %v3036
    %3199 = vmatmul.mubr.bf16.gmra.mxu0 %v3035
    %v3200 = vpop.f32.mrf.mxu0
    %v3201 = vadd.f32 %v2763, %v3200
    %v3202 = vpop.f32.mrf.mxu0
    %v3203 = vadd.f32 %v2763, %v3202
    %v3204 = vpop.f32.mrf.mxu0
    %v3205 = vadd.f32 %v2768, %v3204
    %v3206 = vpop.f32.mrf.mxu0
    %v3207 = vadd.f32 %v2768, %v3206
    %3208 = vmatprep.mubr.bf16.mxu0 %v3040
    %3209 = vmatmul.mubr.bf16.gmra.mxu0 %v3039
    %v3210 = vpop.f32.mrf.mxu0
    %v3211 = vadd.f32 %v2773, %v3210
    %v3212 = vpop.f32.mrf.mxu0
    %v3213 = vadd.f32 %v2773, %v3212
    %v3214 = vpop.f32.mrf.mxu0
    %v3215 = vadd.f32 %v2778, %v3214
    %v3216 = vpop.f32.mrf.mxu0
    %v3217 = vadd.f32 %v2778, %v3216
    %3218 = vmatprep.mubr.bf16.mxu0 %v3044
    %3219 = vmatmul.mubr.bf16.gmra.mxu0 %v3043
    %v3220 = vpop.f32.mrf.mxu0
    %v3221 = vadd.f32 %v2783, %v3220
    %v3222 = vpop.f32.mrf.mxu0
    %v3223 = vadd.f32 %v2783, %v3222
    %v3224 = vpop.f32.mrf.mxu0
    %v3225 = vadd.f32 %v2788, %v3224
    %v3226 = vpop.f32.mrf.mxu0
    %v3227 = vadd.f32 %v2788, %v3226
    %3228 = vmatprep.mubr.bf16.mxu0 %v3048
    %3229 = vmatmul.mubr.bf16.gmra.mxu0 %v3047
    %v3230 = vpop.f32.mrf.mxu0
    %v3231 = vadd.f32 %v2793, %v3230
    %v3232 = vpop.f32.mrf.mxu0
    %v3233 = vadd.f32 %v2793, %v3232
    %v3234 = vpop.f32.mrf.mxu0
    %v3235 = vadd.f32 %v2798, %v3234
    %v3236 = vpop.f32.mrf.mxu0
    %v3237 = vadd.f32 %v2798, %v3236
    %3238 = vmatprep.mubr.bf16.mxu0 %v3052
    %3239 = vmatmul.mubr.bf16.gmra.mxu0 %v3051
    %v3240 = vpop.f32.mrf.mxu0
    %v3241 = vadd.f32 %v2803, %v3240
    %v3242 = vpop.f32.mrf.mxu0
    %v3243 = vadd.f32 %v2803, %v3242
    %v3244 = vpop.f32.mrf.mxu0
    %v3245 = vadd.f32 %v2808, %v3244
    %v3246 = vpop.f32.mrf.mxu0
    %v3247 = vadd.f32 %v2808, %v3246
    %3248 = vmatprep.mubr.bf16.mxu0 %v3056
    %3249 = vmatmul.mubr.bf16.gmra.mxu0 %v3055
    %v3250 = vpop.f32.mrf.mxu0
    %v3251 = vadd.f32 %v2813, %v3250
    %v3252 = vpop.f32.mrf.mxu0
    %v3253 = vadd.f32 %v2813, %v3252
    %v3254 = vpop.f32.mrf.mxu0
    %v3255 = vadd.f32 %v2818, %v3254
    %v3256 = vpop.f32.mrf.mxu0
    %v3257 = vadd.f32 %v2818, %v3256
    %3258 = vmatprep.mubr.bf16.mxu0 %v3060
    %3259 = vmatmul.mubr.bf16.gmra.mxu0 %v3059
    %v3260 = vpop.f32.mrf.mxu0
    %v3261 = vadd.f32 %v2823, %v3260
    %v3262 = vpop.f32.mrf.mxu0
    %v3263 = vadd.f32 %v2823, %v3262
    %v3264 = vpop.f32.mrf.mxu0
    %v3265 = vadd.f32 %v2828, %v3264
    %v3266 = vpop.f32.mrf.mxu0
    %v3267 = vadd.f32 %v2828, %v3266
    %3268 = vmatprep.mubr.bf16.mxu0 %v3064
    %3269 = vmatmul.mubr.bf16.gmra.mxu0 %v3063
    %v3270 = vpop.f32.mrf.mxu0
    %v3271 = vadd.f32 %v2833, %v3270
    %v3272 = vpop.f32.mrf.mxu0
    %v3273 = vadd.f32 %v2833, %v3272
    %v3274 = vpop.f32.mrf.mxu0
    %v3275 = vadd.f32 %v2838, %v3274
    %v3276 = vpop.f32.mrf.mxu0
    %v3277 = vadd.f32 %v2838, %v3276
    %3278 = vmatprep.mubr.bf16.mxu0 %v3068
    %3279 = vmatmul.mubr.bf16.gmra.mxu0 %v3067
    %v3280 = vpop.f32.mrf.mxu0
    %v3281 = vadd.f32 %v2843, %v3280
    %v3282 = vpop.f32.mrf.mxu0
    %v3283 = vadd.f32 %v2843, %v3282
    %v3284 = vpop.f32.mrf.mxu0
    %v3285 = vadd.f32 %v2848, %v3284
    %v3286 = vpop.f32.mrf.mxu0
    %v3287 = vadd.f32 %v2848, %v3286
    %3288 = vmatprep.mubr.bf16.mxu0 %v3072
    %3289 = vmatmul.mubr.bf16.gmra.mxu0 %v3071
    %v3290 = vpop.f32.mrf.mxu0
    %v3291 = vadd.f32 %v2853, %v3290
    %v3292 = vpop.f32.mrf.mxu0
    %v3293 = vadd.f32 %v2853, %v3292
    %v3294 = vpop.f32.mrf.mxu0
    %v3295 = vadd.f32 %v2858, %v3294
    %v3296 = vpop.f32.mrf.mxu0
    %v3297 = vadd.f32 %v2858, %v3296
    %3298 = vmatprep.mubr.bf16.mxu0 %v3076
    %3299 = vmatmul.mubr.bf16.gmra.mxu0 %v3075
    %v3300 = vpop.f32.mrf.mxu0
    %v3301 = vadd.f32 %v2863, %v3300
    %v3302 = vpop.f32.mrf.mxu0
    %v3303 = vadd.f32 %v2863, %v3302
    %v3304 = vpop.f32.mrf.mxu0
    %v3305 = vadd.f32 %v2868, %v3304
    %v3306 = vpop.f32.mrf.mxu0
    %v3307 = vadd.f32 %v2868, %v3306
    %3308 = vmatprep.mubr.bf16.mxu0 %v3080
    %3309 = vmatmul.mubr.bf16.gmra.mxu0 %v3079
    %v3310 = vpop.f32.mrf.mxu0
    %v3311 = vadd.f32 %v2873, %v3310
    %v3312 = vpop.f32.mrf.mxu0
    %v3313 = vadd.f32 %v2873, %v3312
    %v3314 = vpop.f32.mrf.mxu0
    %v3315 = vadd.f32 %v2878, %v3314
    %v3316 = vpop.f32.mrf.mxu0
    %v3317 = vadd.f32 %v2878, %v3316
    %3318 = vmatprep.mubr.bf16.mxu0 %v3084
    %3319 = vmatmul.mubr.bf16.gmra.mxu0 %v3083
    %v3320 = vpop.f32.mrf.mxu0
    %v3321 = vadd.f32 %v2883, %v3320
    %v3322 = vpop.f32.mrf.mxu0
    %v3323 = vadd.f32 %v2883, %v3322
    %v3324 = vpop.f32.mrf.mxu0
    %v3325 = vpop.f32.mrf.mxu0
    %3326 = vdwg.mxu0
    %3327 = vmatprep.subr.bf16.mxu0 %v2682
    %3328 = vmatpush1.bf16.msra.mxu0 %v2681
    %3329 = vmatprep.subr.bf16.mxu0 %v2680
    %3330 = vmatpush1.bf16.msra.mxu0 %v2679
    %3331 = vmatprep.subr.bf16.mxu0 %v2678
    %3332 = vmatpush1.bf16.msra.mxu0 %v2677
    %3333 = vmatprep.subr.bf16.mxu0 %v2676
    %3334 = vmatpush1.bf16.msra.mxu0 %v2675
    %3335 = vmatprep.subr.bf16.mxu0 %v2674
    %3336 = vmatpush1.bf16.msra.mxu0 %v2673
    %3337 = vmatprep.subr.bf16.mxu0 %v2672
    %3338 = vmatpush1.bf16.msra.mxu0 %v2671
    %3339 = vmatprep.subr.bf16.mxu0 %v2670
    %3340 = vmatpush1.bf16.msra.mxu0 %v2669
    %3341 = vmatprep.subr.bf16.mxu0 %v2668
    %3342 = vmatpush1.bf16.msra.mxu0 %v2667
    %3343 = vmatprep.subr.bf16.mxu0 0
    %3344 = vmatpush2.bf16.msra.mxu0 0
    %3345 = vmatprep.subr.bf16.mxu0 0
    %3346 = vmatpush2.bf16.msra.mxu0 0
    %3347 = vmatprep.subr.bf16.mxu0 0
    %3348 = vmatpush2.bf16.msra.mxu0 0
    %3349 = vmatprep.subr.bf16.mxu0 0
    %3350 = vmatpush2.bf16.msra.mxu0 0
    %3351 = vmatprep.subr.bf16.mxu0 0
    %3352 = vmatpush2.bf16.msra.mxu0 0
    %3353 = vmatprep.subr.bf16.mxu0 0
    %3354 = vmatpush2.bf16.msra.mxu0 0
    %3355 = vmatprep.subr.bf16.mxu0 0
    %3356 = vmatpush2.bf16.msra.mxu0 0
    %3357 = vmatprep.subr.bf16.mxu0 %v2684
    %3358 = vmatpush2.bf16.msra.mxu0 %v2683
    %3359 = vmatprep.mubr.bf16.mxu0 %v3128
    %3360 = vmatmul.mubr.bf16.gmra.mxu0 %v3037
    %v3361 = vpop.f32.mrf.mxu0
    %v3362 = vadd.f32 %v3201, %v3361
    %v3363 = vpop.f32.mrf.mxu0
    %v3364 = vadd.f32 %v3203, %v3363
    %v3365 = vpop.f32.mrf.mxu0
    %v3366 = vadd.f32 %v3205, %v3365
    %v3367 = vpop.f32.mrf.mxu0
    %v3368 = vadd.f32 %v3207, %v3367
    %3369 = vmatprep.mubr.bf16.mxu0 %v3131
    %3370 = vmatmul.mubr.bf16.gmra.mxu0 %v3041
    %v3371 = vpop.f32.mrf.mxu0
    %v3372 = vadd.f32 %v3211, %v3371
    %v3373 = vpop.f32.mrf.mxu0
    %v3374 = vadd.f32 %v3213, %v3373
    %v3375 = vpop.f32.mrf.mxu0
    %v3376 = vadd.f32 %v3215, %v3375
    %v3377 = vpop.f32.mrf.mxu0
    %v3378 = vadd.f32 %v3217, %v3377
    %3379 = vmatprep.mubr.bf16.mxu0 %v3134
    %3380 = vmatmul.mubr.bf16.gmra.mxu0 %v3045
    %v3381 = vpop.f32.mrf.mxu0
    %v3382 = vadd.f32 %v3221, %v3381
    %v3383 = vpop.f32.mrf.mxu0
    %v3384 = vadd.f32 %v3223, %v3383
    %v3385 = vpop.f32.mrf.mxu0
    %v3386 = vadd.f32 %v3225, %v3385
    %v3387 = vpop.f32.mrf.mxu0
    %v3388 = vadd.f32 %v3227, %v3387
    %3389 = vmatprep.mubr.bf16.mxu0 %v3137
    %3390 = vmatmul.mubr.bf16.gmra.mxu0 %v3049
    %v3391 = vpop.f32.mrf.mxu0
    %v3392 = vadd.f32 %v3231, %v3391
    %v3393 = vpop.f32.mrf.mxu0
    %v3394 = vadd.f32 %v3233, %v3393
    %v3395 = vpop.f32.mrf.mxu0
    %v3396 = vadd.f32 %v3235, %v3395
    %v3397 = vpop.f32.mrf.mxu0
    %v3398 = vadd.f32 %v3237, %v3397
    %3399 = vmatprep.mubr.bf16.mxu0 %v3140
    %3400 = vmatmul.mubr.bf16.gmra.mxu0 %v3053
    %v3401 = vpop.f32.mrf.mxu0
    %v3402 = vadd.f32 %v3241, %v3401
    %v3403 = vpop.f32.mrf.mxu0
    %v3404 = vadd.f32 %v3243, %v3403
    %v3405 = vpop.f32.mrf.mxu0
    %v3406 = vadd.f32 %v3245, %v3405
    %v3407 = vpop.f32.mrf.mxu0
    %v3408 = vadd.f32 %v3247, %v3407
    %3409 = vmatprep.mubr.bf16.mxu0 %v3143
    %3410 = vmatmul.mubr.bf16.gmra.mxu0 %v3057
    %v3411 = vpop.f32.mrf.mxu0
    %v3412 = vadd.f32 %v3251, %v3411
    %v3413 = vpop.f32.mrf.mxu0
    %v3414 = vadd.f32 %v3253, %v3413
    %v3415 = vpop.f32.mrf.mxu0
    %v3416 = vadd.f32 %v3255, %v3415
    %v3417 = vpop.f32.mrf.mxu0
    %v3418 = vadd.f32 %v3257, %v3417
    %3419 = vmatprep.mubr.bf16.mxu0 %v3146
    %3420 = vmatmul.mubr.bf16.gmra.mxu0 %v3061
    %v3421 = vpop.f32.mrf.mxu0
    %v3422 = vadd.f32 %v3261, %v3421
    %v3423 = vpop.f32.mrf.mxu0
    %v3424 = vadd.f32 %v3263, %v3423
    %v3425 = vpop.f32.mrf.mxu0
    %v3426 = vadd.f32 %v3265, %v3425
    %v3427 = vpop.f32.mrf.mxu0
    %v3428 = vadd.f32 %v3267, %v3427
    %3429 = vmatprep.mubr.bf16.mxu0 %v3149
    %3430 = vmatmul.mubr.bf16.gmra.mxu0 %v3065
    %v3431 = vpop.f32.mrf.mxu0
    %v3432 = vadd.f32 %v3271, %v3431
    %v3433 = vpop.f32.mrf.mxu0
    %v3434 = vadd.f32 %v3273, %v3433
    %v3435 = vpop.f32.mrf.mxu0
    %v3436 = vadd.f32 %v3275, %v3435
    %v3437 = vpop.f32.mrf.mxu0
    %v3438 = vadd.f32 %v3277, %v3437
    %3439 = vmatprep.mubr.bf16.mxu0 %v3152
    %3440 = vmatmul.mubr.bf16.gmra.mxu0 %v3069
    %v3441 = vpop.f32.mrf.mxu0
    %v3442 = vadd.f32 %v3281, %v3441
    %v3443 = vpop.f32.mrf.mxu0
    %v3444 = vadd.f32 %v3283, %v3443
    %v3445 = vpop.f32.mrf.mxu0
    %v3446 = vadd.f32 %v3285, %v3445
    %v3447 = vpop.f32.mrf.mxu0
    %v3448 = vadd.f32 %v3287, %v3447
    %3449 = vmatprep.mubr.bf16.mxu0 %v3155
    %3450 = vmatmul.mubr.bf16.gmra.mxu0 %v3073
    %v3451 = vpop.f32.mrf.mxu0
    %v3452 = vadd.f32 %v3291, %v3451
    %v3453 = vpop.f32.mrf.mxu0
    %v3454 = vadd.f32 %v3293, %v3453
    %v3455 = vpop.f32.mrf.mxu0
    %v3456 = vadd.f32 %v3295, %v3455
    %v3457 = vpop.f32.mrf.mxu0
    %v3458 = vadd.f32 %v3297, %v3457
    %3459 = vmatprep.mubr.bf16.mxu0 %v3158
    %3460 = vmatmul.mubr.bf16.gmra.mxu0 %v3077
    %v3461 = vpop.f32.mrf.mxu0
    %v3462 = vadd.f32 %v3301, %v3461
    %v3463 = vpop.f32.mrf.mxu0
    %v3464 = vadd.f32 %v3303, %v3463
    %v3465 = vpop.f32.mrf.mxu0
    %v3466 = vadd.f32 %v3305, %v3465
    %v3467 = vpop.f32.mrf.mxu0
    %v3468 = vadd.f32 %v3307, %v3467
    %3469 = vmatprep.mubr.bf16.mxu0 %v3161
    %3470 = vmatmul.mubr.bf16.gmra.mxu0 %v3081
    %v3471 = vpop.f32.mrf.mxu0
    %v3472 = vadd.f32 %v3311, %v3471
    %v3473 = vpop.f32.mrf.mxu0
    %v3474 = vadd.f32 %v3313, %v3473
    %v3475 = vpop.f32.mrf.mxu0
    %v3476 = vadd.f32 %v3315, %v3475
    %v3477 = vpop.f32.mrf.mxu0
    %v3478 = vadd.f32 %v3317, %v3477
    %3479 = vmatprep.mubr.bf16.mxu0 %v3164
    %3480 = vmatmul.mubr.bf16.gmra.mxu0 %v3085
    %v3481 = vpop.f32.mrf.mxu0
    %v3482 = vadd.f32 %v3321, %v3481
    %v3483 = vpop.f32.mrf.mxu0
    %v3484 = vadd.f32 %v3323, %v3483
    %v3485 = vpop.f32.mrf.mxu0
    %v3486 = vpop.f32.mrf.mxu0
    %3487 = vdwg.mxu0
    %v3488 = vmax.f32 %v3362, 0.0
    %v3489 = vmax.f32 %v3364, 0.0
    %v3490 = vmax.f32 %v3366, 0.0
    %v3491 = vmax.f32 %v3368, 0.0
    %v3492 = vmax.f32 %v3372, 0.0
    %v3493 = vmax.f32 %v3374, 0.0
    %v3494 = vmax.f32 %v3376, 0.0
    %v3495 = vmax.f32 %v3378, 0.0
    %v3496 = vmax.f32 %v3382, 0.0
    %v3497 = vmax.f32 %v3384, 0.0
    %v3498 = vmax.f32 %v3386, 0.0
    %v3499 = vmax.f32 %v3388, 0.0
    %v3500 = vmax.f32 %v3392, 0.0
    %v3501 = vmax.f32 %v3394, 0.0
    %v3502 = vmax.f32 %v3396, 0.0
    %v3503 = vmax.f32 %v3398, 0.0
    %v3504 = vmax.f32 %v3402, 0.0
    %v3505 = vmax.f32 %v3404, 0.0
    %v3506 = vmax.f32 %v3406, 0.0
    %v3507 = vmax.f32 %v3408, 0.0
    %v3508 = vmax.f32 %v3412, 0.0
    %v3509 = vmax.f32 %v3414, 0.0
    %v3510 = vmax.f32 %v3416, 0.0
    %v3511 = vmax.f32 %v3418, 0.0
    %v3512 = vmax.f32 %v3422, 0.0
    %v3513 = vmax.f32 %v3424, 0.0
    %v3514 = vmax.f32 %v3426, 0.0
    %v3515 = vmax.f32 %v3428, 0.0
    %v3516 = vmax.f32 %v3432, 0.0
    %v3517 = vmax.f32 %v3434, 0.0
    %v3518 = vmax.f32 %v3436, 0.0
    %v3519 = vmax.f32 %v3438, 0.0
    %v3520 = vmax.f32 %v3442, 0.0
    %v3521 = vmax.f32 %v3444, 0.0
    %v3522 = vmax.f32 %v3446, 0.0
    %v3523 = vmax.f32 %v3448, 0.0
    %v3524 = vmax.f32 %v3452, 0.0
    %v3525 = vmax.f32 %v3454, 0.0
    %v3526 = vmax.f32 %v3456, 0.0
    %v3527 = vmax.f32 %v3458, 0.0
    %v3528 = vmax.f32 %v3462, 0.0
    %v3529 = vmax.f32 %v3464, 0.0
    %v3530 = vmax.f32 %v3466, 0.0
    %v3531 = vmax.f32 %v3468, 0.0
    %v3532 = vmax.f32 %v3472, 0.0
    %v3533 = vmax.f32 %v3474, 0.0
    %v3534 = vmax.f32 %v3476, 0.0
    %v3535 = vmax.f32 %v3478, 0.0
    %v3536 = vmax.f32 %v3482, 0.0
    %v3537 = vmax.f32 %v3484, 0.0
    %v3538 = vpack.c.bf16 %v3490, %v3488
    %v3539 = vpack.c.bf16 %v3491, %v3489
    %v3540 = vpack.c.bf16 %v3494, %v3492
    %v3541 = vpack.c.bf16 %v3495, %v3493
    %v3542 = vpack.c.bf16 %v3498, %v3496
    %v3543 = vpack.c.bf16 %v3499, %v3497
    %v3544 = vpack.c.bf16 %v3502, %v3500
    %v3545 = vpack.c.bf16 %v3503, %v3501
    %v3546 = vpack.c.bf16 %v3506, %v3504
    %v3547 = vpack.c.bf16 %v3507, %v3505
    %v3548 = vpack.c.bf16 %v3510, %v3508
    %v3549 = vpack.c.bf16 %v3511, %v3509
    %v3550 = vpack.c.bf16 %v3514, %v3512
    %v3551 = vpack.c.bf16 %v3515, %v3513
    %v3552 = vpack.c.bf16 %v3518, %v3516
    %v3553 = vpack.c.bf16 %v3519, %v3517
    %v3554 = vpack.c.bf16 %v3522, %v3520
    %v3555 = vpack.c.bf16 %v3523, %v3521
    %v3556 = vpack.c.bf16 %v3526, %v3524
    %v3557 = vpack.c.bf16 %v3527, %v3525
    %v3558 = vpack.c.bf16 %v3530, %v3528
    %v3559 = vpack.c.bf16 %v3531, %v3529
    %v3560 = vpack.c.bf16 %v3534, %v3532
    %v3561 = vpack.c.bf16 %v3535, %v3533
    %v3562 = vpack.c.bf16 %v3536, %v3536
    %v3563 = vpack.c.bf16 %v3537, %v3537
    %v3564 = vld [vmem:[%s11] sm:$0x3]
    %v3565 = vld [vmem:[%s12] sm:$0x3]
    %3567 = vset.pattern.permute.xlu0 0
    %3568 = vperm.xlu0 %3567, %v3565
    %v3569 = vpop.permute.xlu0 %3568
    %v3573 = vunpack.c.l.s4 1966171168
    %v3574 = vunpack.c.0.s8 %v3573
    %v3575 = vlaneseq
    %v3576 = vshrl.u32 %v3575, 7
    %v3577 = vsub.s32 %v3574, %v3576
    %v3578 = vrot.slane %v3564, %v3577
    %v3579 = vcombine.high %v3578, %v3578
    %v3581 = vunpack.c.l.s4 1966171168
    %v3582 = vunpack.c.0.s8 %v3581
    %v3583 = vlaneseq
    %v3584 = vshrl.u32 %v3583, 7
    %v3585 = vsub.s32 %v3582, %v3584
    %v3586 = vrot.slane %v3578, %v3585
    %v3588 = vunpack.c.l.s4 1966171168
    %v3589 = vunpack.c.0.s8 %v3588
    %v3590 = vlaneseq
    %v3591 = vshrl.u32 %v3590, 7
    %v3592 = vsub.s32 %v3589, %v3591
    %v3593 = vrot.slane %v3579, %v3592
    %v3596 = vsel %vm2169, %v3593, 0
    %v3599 = vsel %vm2245, %v3562, 0
    %v3602 = vsel %vm2245, %v3563, 0
    %3604 = vmatprep.subr.bf16.mxu0 %v3553
    %3605 = vmatpush1.bf16.msra.mxu0 %v3552
    %3606 = vmatprep.subr.bf16.mxu0 %v3551
    %3607 = vmatpush1.bf16.msra.mxu0 %v3550
    %3608 = vmatprep.subr.bf16.mxu0 %v3549
    %3609 = vmatpush1.bf16.msra.mxu0 %v3548
    %3610 = vmatprep.subr.bf16.mxu0 %v3547
    %3611 = vmatpush1.bf16.msra.mxu0 %v3546
    %3612 = vmatprep.subr.bf16.mxu0 %v3545
    %3613 = vmatpush1.bf16.msra.mxu0 %v3544
    %3614 = vmatprep.subr.bf16.mxu0 %v3543
    %3615 = vmatpush1.bf16.msra.mxu0 %v3542
    %3616 = vmatprep.subr.bf16.mxu0 %v3541
    %3617 = vmatpush1.bf16.msra.mxu0 %v3540
    %3618 = vmatprep.subr.bf16.mxu0 %v3539
    %3619 = vmatpush1.bf16.msra.mxu0 %v3538
    %3620 = vmatprep.subr.bf16.mxu0 0
    %3621 = vmatpush2.bf16.msra.mxu0 0
    %3622 = vmatprep.subr.bf16.mxu0 0
    %3623 = vmatpush2.bf16.msra.mxu0 0
    %3624 = vmatprep.subr.bf16.mxu0 0
    %3625 = vmatpush2.bf16.msra.mxu0 0
    %3626 = vmatprep.subr.bf16.mxu0 %v3602
    %3627 = vmatpush2.bf16.msra.mxu0 %v3599
    %3628 = vmatprep.subr.bf16.mxu0 %v3561
    %3629 = vmatpush2.bf16.msra.mxu0 %v3560
    %3630 = vmatprep.subr.bf16.mxu0 %v3559
    %3631 = vmatpush2.bf16.msra.mxu0 %v3558
    %3632 = vmatprep.subr.bf16.mxu0 %v3557
    %3633 = vmatpush2.bf16.msra.mxu0 %v3556
    %3634 = vmatprep.subr.bf16.mxu0 %v3555
    %3635 = vmatpush2.bf16.msra.mxu0 %v3554
    %3636 = vmatprep.mubr.bf16.mxu0 %v3596
    %3637 = vmatmul.mubr.bf16.gmra.mxu0 %v3586
    %v3638 = vpop.f32.mrf.mxu0
    %v3639 = vadd.f32 %v3569, %v3638
    %v3640 = vpop.f32.mrf.mxu0
    %v3641 = vadd.f32 %v3569, %v3640
    %v3642 = vpop.f32.mrf.mxu0
    %v3643 = vpop.f32.mrf.mxu0
    %3644 = vdwg.mxu0
    %s3645 = sld [smem:[#allocation2]]
    %v3646 = vstv %s3645
    %v3647 = vrcp.pop %v3646
    %s3648 = vtos %v3647
    %v3649 = vstv %s3648
    %v3650 = vmul.f32 %v3639, %v3649
    %v3651 = vmul.f32 %v3641, %v3649
    %v3654 = vcombine.low %v3650, %v3651
    %v3656 = vunpack.c.l.s4 1983009808
    %v3657 = vunpack.c.0.s8 %v3656
    %v3658 = vlaneseq
    %v3659 = vshrl.u32 %v3658, 7
    %v3660 = vsub.s32 %v3657, %v3659
    %v3661 = vrot.slane %v3654, %v3660
    %3663 = vst [vmem:[#allocation3] sm:$0xf] %v3661
    // Predicated region
    $region58: #{tpu_custom_call.1} parent=1 // pred_check
      _
    $region59: #{tpu_custom_call.1} parent=1 // pred_check_branch
      %3665 = sbr.rel (0) target = $region61
    $region60: #{tpu_custom_call.1} parent=1 // pred_region
      %s3667 = ssub.s32 64, 64
      %3668 = vsyncadd [#allocation4], %s3667
      %s3670 = sshll.u32 [#allocation3], 4
      %s3671 = int_to_ptr.vmem [resolvable:$true] %s3670
      %3673 = dma.vmem_to_hbm [thread:$0]  %s3671, 64, %s14, [#allocation4]
    $region61: #{tpu_custom_call.1} parent=1 // pred_fallthru
      _
    // Predicated region
    $region62: #{tpu_custom_call.1} parent=1 // pred_check
      _
    $region63: #{tpu_custom_call.1} parent=1 // pred_check_branch
      %3675 = sbr.rel (0) target = $region65
    $region64: #{tpu_custom_call.1} parent=1 // pred_region
      %3676 = dma.done [#allocation4], 64
    $region65: #{tpu_custom_call.1} parent=1 // pred_fallthru
      _
    %3677 = vsyncpa [#allocation4], 1

</llo_original>
